<compile_context>
chip_gen: v7x
topology: tpu7x:2x2x1
jax: 0.10.0
libtpu: 0.0.40
codegen_flags: <defaults>
</compile_context>

<pallas_src>
import jax
import jax.numpy as jnp
from jax.experimental import pallas as pl
from jax.experimental.pallas import tpu as pltpu


# ----------------------------------------------------------------------------
# Banded-weight builders (run ONCE, outside the jitted forward).
# Activation layout everywhere: (H, W*C) -- "row = image row, lanes = W*C".
# ----------------------------------------------------------------------------
def _band_conv_weight(w, w_in_dim, stride, wo):
    """w: (Cout, Cin, 3, 3) torch-layout conv weight (implicit ZeroPad2d(1)).

    Returns (3*W*Cin, Wo*Cout) with K index = dh*(W*Cin) + w_in*Cin + c and
    N index = j*Cout + co.  The horizontal taps and the left/right zero padding
    are folded into the band (out-of-range taps are zero)."""
    cout, cin, _, _ = w.shape
    w_t = jnp.transpose(w, (2, 3, 1, 0))                     # (dh, dw, Cin, Cout)
    wi = jnp.arange(w_in_dim)[:, None]
    j = jnp.arange(wo)[None, :]
    dw = wi - j * stride + 1                                 # (W, Wo)
    valid = ((dw >= 0) & (dw <= 2)).astype(w.dtype)
    dw_c = jnp.clip(dw, 0, 2)
    band = w_t[:, dw_c, :, :]                                # (3, W, Wo, Cin, Cout)
    band = band * valid[None, :, :, None, None]
    band = jnp.transpose(band, (0, 1, 3, 2, 4))              # (3, W, Cin, Wo, Cout)
    return band.reshape(3 * w_in_dim * cin, wo * cout)


def _band_deconv_weight(wt, w_in_dim, s):
    """wt: (Cin, Cout, s, s) ConvTranspose2d(kernel=s, stride=s) weight.

    Returns (s*W*Cin, W*s*Cout) with K index = p*(W*Cin) + j*Cin + c and
    N index = (j*s+q)*Cout + co."""
    cin, cout, _, _ = wt.shape
    blk = jnp.transpose(wt, (2, 0, 3, 1))                    # (p, Cin, q, Cout)
    eye = jnp.eye(w_in_dim, dtype=wt.dtype)
    d = jnp.einsum('jk,pcqo->pjckqo', eye, blk)              # (p, j, Cin, k, q, Cout)
    return d.reshape(s * w_in_dim * cin, w_in_dim * s * cout)


def _band_heads_weight(wh, bh, nuf, w_out, cpad):
    """wh: (Ctot, Csum) stacked 1x1-conv weights; bh: (Ctot,) stacked biases.

    Returns (W_out*Csum, W_out*Cpad) block-diagonal-per-pixel matrix + banded bias,
    matching the lane-banded fused feature map [stage0 | stage1 | stage2]."""
    ctot = wh.shape[0]
    eye = jnp.eye(w_out, dtype=wh.dtype)
    parts, base = [], 0
    for ck in nuf:
        blk = jnp.pad(wh[:, base:base + ck].T, ((0, 0), (0, cpad - ctot)))   # (ck, Cpad)
        parts.append(jnp.einsum('jJ,cO->jcJO', eye, blk).reshape(w_out * ck, w_out * cpad))
        base += ck
    bd = jnp.concatenate(parts, axis=0)
    bias = jnp.tile(jnp.pad(bh, (0, cpad - ctot)), w_out).reshape(1, w_out * cpad)
    return bd, bias


# ----------------------------------------------------------------------------
# In-kernel layer helpers (only full-block ref reads, 2-D slices/concats, matmuls).
# ----------------------------------------------------------------------------
def _row_taps(x, ho, stride):
    """x: (H, W*C) bf16.  Returns (Ho, 3*W*C): lane-concat of the 3 vertical taps.
    ZeroPad2d rows become zero rows (stride 1: shift+zero-row; stride 2: tiny 0/1
    selection matmuls built from a 2-D iota -- exact on bf16)."""
    h_in, wc = x.shape
    if stride == 1:
        zero = jnp.zeros((1, wc), x.dtype)
        taps = [jnp.concatenate([zero, x[:h_in - 1, :]], axis=0),
                x,
                jnp.concatenate([x[1:, :], zero], axis=0)]
    else:
        o = jax.lax.broadcasted_iota(jnp.int32, (ho, h_in), 0)
        h = jax.lax.broadcasted_iota(jnp.int32, (ho, h_in), 1)
        taps = []
        for dh in range(3):
            sel = jnp.where(h == stride * o + dh - 1, 1.0, 0.0).astype(x.dtype)
            taps.append(jnp.dot(sel, x, preferred_element_type=jnp.float32).astype(x.dtype))
    return jnp.concatenate(taps, axis=1)


def _conv_bn_relu(x, b_ref, sc_ref, sh_ref, stride, ho):
    a = _row_taps(x, ho, stride)                                      # (Ho, 3*W*C) bf16
    acc = jnp.dot(a, b_ref[...], preferred_element_type=jnp.float32)  # one deep-K matmul
    return jnp.maximum(acc * sc_ref[...] + sh_ref[...], 0.0).astype(jnp.bfloat16)


def _deconv_bn_relu(x, d_ref, sc_ref, sh_ref, s, h_out):
    h_in, _ = x.shape
    if s == 1:
        a = x
    else:
        r = jax.lax.broadcasted_iota(jnp.int32, (h_out, h_in), 0)
        h = jax.lax.broadcasted_iota(jnp.int32, (h_out, h_in), 1)
        parts = []
        for p in range(s):
            e = jnp.where(r == s * h + p, 1.0, 0.0).astype(x.dtype)   # row-expansion
            parts.append(jnp.dot(e, x, preferred_element_type=jnp.float32).astype(x.dtype))
        a = jnp.concatenate(parts, axis=1)                            # (H_out, s*W*C)
    acc = jnp.dot(a, d_ref[...], preferred_element_type=jnp.float32)
    return jnp.maximum(acc * sc_ref[...] + sh_ref[...], 0.0)          # f32 (H_out, W*s*Cout)


def _make_rpn_kernel(plan):
    def kernel(*args):
        x_ref = args[0]
        feat_ref, heads_ref = args[-2], args[-1]
        wrefs = iter(args[1:-2])

        x = x_ref[...]                                # (H, W*Cin) bf16 (cast once, in wrapper)
        feats = []
        for st in plan["stages"]:
            for c in st["convs"]:
                b, sc, sh = next(wrefs), next(wrefs), next(wrefs)
                x = _conv_bn_relu(x, b, sc, sh, c["stride"], c["Ho"])
            d, dsc, dsh = next(wrefs), next(wrefs), next(wrefs)
            feats.append(_deconv_bn_relu(x, d, dsc, dsh, st["up"], plan["H_out"]))

        feat = jnp.concatenate(feats, axis=1)         # (H_out, W_out*Csum) f32, in-kernel concat
        feat_ref[...] = feat                          # single lane-dense slab store

        bd, bias = next(wrefs), next(wrefs)           # fused conv_box|conv_cls|conv_dir_cls
        heads = jnp.dot(feat.astype(jnp.bfloat16), bd[...],
                        preferred_element_type=jnp.float32) + bias[...]
        heads_ref[...] = heads                        # single lane-dense slab store
    return kernel


# ----------------------------------------------------------------------------
# Parameter preparation (banding) + forward builder.
# ----------------------------------------------------------------------------
def prepare_rpn(params, cfg, H, W):
    nf, nuf = cfg["num_filters"], cfg["num_upsample_filters"]
    lstr, ups = cfg["layer_strides"], cfg["upsample_strides"]
    weights, stages = [], []
    h, w = H, W
    H_out = W_out = None
    for i, _ in enumerate(cfg["layer_nums"]):
        convs = []
        for j, layer in enumerate(params["blocks"][i]):
            stride = lstr[i] if j == 0 else 1
            ho = (h - 1) // stride + 1
            wo = (w - 1) // stride + 1
            weights += [
                _band_conv_weight(layer["w"], w, stride, wo).astype(jnp.bfloat16),
                jnp.tile(layer["scale"], wo).reshape(1, -1).astype(jnp.float32),
                jnp.tile(layer["shift"], wo).reshape(1, -1).astype(jnp.float32),
            ]
            convs.append(dict(stride=stride, Ho=ho))
            h, w = ho, wo
        s = ups[i]
        d = params["deblocks"][i]
        weights += [
            _band_deconv_weight(d["w"], w, s).astype(jnp.bfloat16),
            jnp.tile(d["scale"], w * s).reshape(1, -1).astype(jnp.float32),
            jnp.tile(d["shift"], w * s).reshape(1, -1).astype(jnp.float32),
        ]
        stages.append(dict(convs=convs, up=s))
        if H_out is None:
            H_out, W_out = h * s, w * s
        assert h * s == H_out and w * s == W_out, "deblock outputs must share a spatial size"

    head_ws = [params["conv_box"]["w"], params["conv_cls"]["w"]]
    head_bs = [params["conv_box"]["b"], params["conv_cls"]["b"]]
    if cfg["use_direction_classifier"]:
        head_ws.append(params["conv_dir_cls"]["w"])
        head_bs.append(params["conv_dir_cls"]["b"])
    head_cs = [int(hw.shape[0]) for hw in head_ws]
    wh = jnp.concatenate([hw.reshape(hw.shape[0], -1) for hw in head_ws], axis=0)  # (Ctot, Csum)
    bh = jnp.concatenate(head_bs)
    ctot = int(wh.shape[0])
    cpad = -(-ctot // 32) * 32
    bd, bias = _band_heads_weight(wh, bh, nuf, W_out, cpad)
    weights += [bd.astype(jnp.bfloat16), bias.astype(jnp.float32)]

    plan = dict(stages=stages, H_out=H_out, W_out=W_out, Cpad=cpad,
                head_cs=head_cs, Csum=sum(nuf), nuf=list(nuf))
    return weights, plan


def make_rpn_forward(params, cfg, N, H, W):
    Cin = cfg["num_input_features"]
    weights, plan = prepare_rpn(params, cfg, H, W)
    H_out, W_out = plan["H_out"], plan["W_out"]
    Csum, Cpad = plan["Csum"], plan["Cpad"]
    nuf, head_cs = plan["nuf"], plan["head_cs"]

    in_specs = [pl.BlockSpec((None, H, W * Cin), lambda n: (n, 0, 0))]
    for wgt in weights:
        in_specs.append(pl.BlockSpec(wgt.shape, lambda n: (0, 0)))    # VMEM-resident weights
    out_specs = [
        pl.BlockSpec((None, H_out, W_out * Csum), lambda n: (n, 0, 0)),
        pl.BlockSpec((None, H_out, W_out * Cpad), lambda n: (n, 0, 0)),
    ]
    out_shape = (
        jax.ShapeDtypeStruct((N, H_out, W_out * Csum), jnp.float32),
        jax.ShapeDtypeStruct((N, H_out, W_out * Cpad), jnp.float32),
    )

    fused = pl.pallas_call(
        _make_rpn_kernel(plan),
        grid=(N,),
        in_specs=in_specs,
        out_specs=out_specs,
        out_shape=out_shape,
        compiler_params=pltpu.CompilerParams(dimension_semantics=("parallel",)),
    )

    def forward(x_nchw, wts):
        # NCHW -> lane-banded (N, H, W*Cin), cast to bf16 once.
        xb = jnp.transpose(x_nchw, (0, 2, 3, 1)).reshape(N, H, W * Cin).astype(jnp.bfloat16)
        feat, heads = fused(xb, *wts)

        # split the lane-banded feature map into per-stage NHWC slabs (free reshapes)
        chs, off = [], 0
        for ck in nuf:
            chs.append(feat[:, :, off:off + W_out * ck].reshape(N, H_out, W_out, ck))
            off += W_out * ck
        x_nhwc = jnp.concatenate(chs, axis=-1)                         # (N, Ho, Wo, Csum)

        heads4 = heads.reshape(N, H_out, W_out, Cpad)
        o0 = head_cs[0]
        o1 = o0 + head_cs[1]
        ret = {"box_preds": heads4[..., :o0], "cls_preds": heads4[..., o0:o1]}
        if cfg["use_direction_classifier"]:
            ret["dir_cls_preds"] = heads4[..., o1:o1 + head_cs[2]]
        # x.permute(1,0,2,3) on NCHW == NHWC -> (C, N, H, W)
        ret["gated_bev_feat"] = jnp.transpose(x_nhwc, (3, 0, 1, 2))
        return ret

    return jax.jit(forward), weights


# ----------------------------------------------------------------------------
# Parameter init (deterministic, synthetic) + folded BN (inference form)
# ----------------------------------------------------------------------------
def _fold_bn(gamma, beta, mean, var, eps=1e-3):
    scale = gamma / jnp.sqrt(var + eps)
    shift = beta - mean * scale
    return scale, shift


def init_params(key, cfg):
    ks = iter(jax.random.split(key, 256))

    def conv_w(cout, cin, kh, kw):
        fan_in = cin * kh * kw
        return jax.random.normal(next(ks), (cout, cin, kh, kw), jnp.float32) / jnp.sqrt(fan_in)

    def bn(c):
        gamma = 1.0 + 0.1 * jax.random.normal(next(ks), (c,), jnp.float32)
        beta = 0.1 * jax.random.normal(next(ks), (c,), jnp.float32)
        mean = 0.1 * jax.random.normal(next(ks), (c,), jnp.float32)
        var = jnp.abs(1.0 + 0.1 * jax.random.normal(next(ks), (c,), jnp.float32))
        return _fold_bn(gamma, beta, mean, var)

    nf = cfg["num_filters"]
    nuf = cfg["num_upsample_filters"]
    in_filters = [cfg["num_input_features"], *nf[:-1]]

    blocks, deblocks = [], []
    for i, ln in enumerate(cfg["layer_nums"]):
        stage = []
        s, sh = bn(nf[i])
        stage.append({"w": conv_w(nf[i], in_filters[i], 3, 3), "scale": s, "shift": sh})
        for _ in range(ln):
            s, sh = bn(nf[i])
            stage.append({"w": conv_w(nf[i], nf[i], 3, 3), "scale": s, "shift": sh})
        blocks.append(stage)
        us = cfg["upsample_strides"][i]
        s, sh = bn(nuf[i])
        wt = jax.random.normal(next(ks), (nf[i], nuf[i], us, us), jnp.float32) / jnp.sqrt(nf[i])
        deblocks.append({"w": wt, "scale": s, "shift": sh})

    c_sum = sum(nuf)
    num_cls = cfg["num_anchor_per_loc"] * cfg["num_class"]
    num_box = cfg["num_anchor_per_loc"] * cfg["box_code_size"]

    def head(cout):
        return {"w": conv_w(cout, c_sum, 1, 1),
                "b": 0.1 * jax.random.normal(next(ks), (cout,), jnp.float32)}

    params = {"blocks": blocks, "deblocks": deblocks,
              "conv_cls": head(num_cls), "conv_box": head(num_box)}
    if cfg["use_direction_classifier"]:
        params["conv_dir_cls"] = head(cfg["num_anchor_per_loc"] * 2)
    return params


# ----------------------------------------------------------------------------
if __name__ == "__main__":
    cfg = dict(
        num_class=2,
        layer_nums=[1, 1, 1],
        layer_strides=[2, 2, 2],
        num_filters=[16, 16, 32],
        upsample_strides=[1, 2, 4],
        num_upsample_filters=[32, 32, 32],
        num_input_features=16,
        num_anchor_per_loc=2,
        use_direction_classifier=True,
        box_code_size=7,
    )

    key = jax.random.PRNGKey(0)
    kx, kp = jax.random.split(key)
    N, H, W = 2, 16, 16
    x = jax.random.normal(kx, (N, cfg["num_input_features"], H, W), jnp.float32)
    params = init_params(kp, cfg)

    fwd, weights = make_rpn_forward(params, cfg, N, H, W)
    out = jax.block_until_ready(fwd(x, weights))

    # basic sanity on shapes (stages: 16->8->4->2 spatial; all upsampled to 8x8)
    assert out["box_preds"].shape == (2, 8, 8, 14)
    assert out["cls_preds"].shape == (2, 8, 8, 4)
    assert out["dir_cls_preds"].shape == (2, 8, 8, 4)
    assert out["gated_bev_feat"].shape == (96, 2, 8, 8)

    print("KERNEL_OK")
</pallas_src>

<mosaic_0001>
module attributes {stable_mosaic.version = 11 : i64} {
  func.func @kernel(%arg0: i32, %arg1: memref<1x16x256xbf16, #tpu.memory_space<vmem>>, %arg2: memref<768x128xbf16, #tpu.memory_space<vmem>>, %arg3: memref<1x128xf32, #tpu.memory_space<vmem>>, %arg4: memref<1x128xf32, #tpu.memory_space<vmem>>, %arg5: memref<384x128xbf16, #tpu.memory_space<vmem>>, %arg6: memref<1x128xf32, #tpu.memory_space<vmem>>, %arg7: memref<1x128xf32, #tpu.memory_space<vmem>>, %arg8: memref<128x256xbf16, #tpu.memory_space<vmem>>, %arg9: memref<1x256xf32, #tpu.memory_space<vmem>>, %arg10: memref<1x256xf32, #tpu.memory_space<vmem>>, %arg11: memref<384x64xbf16, #tpu.memory_space<vmem>>, %arg12: memref<1x64xf32, #tpu.memory_space<vmem>>, %arg13: memref<1x64xf32, #tpu.memory_space<vmem>>, %arg14: memref<192x64xbf16, #tpu.memory_space<vmem>>, %arg15: memref<1x64xf32, #tpu.memory_space<vmem>>, %arg16: memref<1x64xf32, #tpu.memory_space<vmem>>, %arg17: memref<128x256xbf16, #tpu.memory_space<vmem>>, %arg18: memref<1x256xf32, #tpu.memory_space<vmem>>, %arg19: memref<1x256xf32, #tpu.memory_space<vmem>>, %arg20: memref<192x64xbf16, #tpu.memory_space<vmem>>, %arg21: memref<1x64xf32, #tpu.memory_space<vmem>>, %arg22: memref<1x64xf32, #tpu.memory_space<vmem>>, %arg23: memref<192x64xbf16, #tpu.memory_space<vmem>>, %arg24: memref<1x64xf32, #tpu.memory_space<vmem>>, %arg25: memref<1x64xf32, #tpu.memory_space<vmem>>, %arg26: memref<256x256xbf16, #tpu.memory_space<vmem>>, %arg27: memref<1x256xf32, #tpu.memory_space<vmem>>, %arg28: memref<1x256xf32, #tpu.memory_space<vmem>>, %arg29: memref<768x256xbf16, #tpu.memory_space<vmem>>, %arg30: memref<1x256xf32, #tpu.memory_space<vmem>>, %arg31: memref<1x8x768xf32, #tpu.memory_space<vmem>>, %arg32: memref<1x8x256xf32, #tpu.memory_space<vmem>>) attributes {dimension_semantics = [#tpu.dimension_semantics<parallel>], iteration_bounds = array<i64: 2>, scalar_prefetch = 0 : i64, scratch_operands = 0 : i64, tpu.core_type = #tpu.core_type<tc>, window_params = [{transform_indices = @transform_0, window_bounds = array<i64: 1, 16, 256>}, {pipeline_mode = #tpu.pipeline_mode<synchronous>, transform_indices = @transform_1, window_bounds = array<i64: 768, 128>}, {pipeline_mode = #tpu.pipeline_mode<synchronous>, transform_indices = @transform_2, window_bounds = array<i64: 1, 128>}, {pipeline_mode = #tpu.pipeline_mode<synchronous>, transform_indices = @transform_3, window_bounds = array<i64: 1, 128>}, {pipeline_mode = #tpu.pipeline_mode<synchronous>, transform_indices = @transform_4, window_bounds = array<i64: 384, 128>}, {pipeline_mode = #tpu.pipeline_mode<synchronous>, transform_indices = @transform_5, window_bounds = array<i64: 1, 128>}, {pipeline_mode = #tpu.pipeline_mode<synchronous>, transform_indices = @transform_6, window_bounds = array<i64: 1, 128>}, {pipeline_mode = #tpu.pipeline_mode<synchronous>, transform_indices = @transform_7, window_bounds = array<i64: 128, 256>}, {pipeline_mode = #tpu.pipeline_mode<synchronous>, transform_indices = @transform_8, window_bounds = array<i64: 1, 256>}, {pipeline_mode = #tpu.pipeline_mode<synchronous>, transform_indices = @transform_9, window_bounds = array<i64: 1, 256>}, {pipeline_mode = #tpu.pipeline_mode<synchronous>, transform_indices = @transform_10, window_bounds = array<i64: 384, 64>}, {pipeline_mode = #tpu.pipeline_mode<synchronous>, transform_indices = @transform_11, window_bounds = array<i64: 1, 64>}, {pipeline_mode = #tpu.pipeline_mode<synchronous>, transform_indices = @transform_12, window_bounds = array<i64: 1, 64>}, {pipeline_mode = #tpu.pipeline_mode<synchronous>, transform_indices = @transform_13, window_bounds = array<i64: 192, 64>}, {pipeline_mode = #tpu.pipeline_mode<synchronous>, transform_indices = @transform_14, window_bounds = array<i64: 1, 64>}, {pipeline_mode = #tpu.pipeline_mode<synchronous>, transform_indices = @transform_15, window_bounds = array<i64: 1, 64>}, {pipeline_mode = #tpu.pipeline_mode<synchronous>, transform_indices = @transform_16, window_bounds = array<i64: 128, 256>}, {pipeline_mode = #tpu.pipeline_mode<synchronous>, transform_indices = @transform_17, window_bounds = array<i64: 1, 256>}, {pipeline_mode = #tpu.pipeline_mode<synchronous>, transform_indices = @transform_18, window_bounds = array<i64: 1, 256>}, {pipeline_mode = #tpu.pipeline_mode<synchronous>, transform_indices = @transform_19, window_bounds = array<i64: 192, 64>}, {pipeline_mode = #tpu.pipeline_mode<synchronous>, transform_indices = @transform_20, window_bounds = array<i64: 1, 64>}, {pipeline_mode = #tpu.pipeline_mode<synchronous>, transform_indices = @transform_21, window_bounds = array<i64: 1, 64>}, {pipeline_mode = #tpu.pipeline_mode<synchronous>, transform_indices = @transform_22, window_bounds = array<i64: 192, 64>}, {pipeline_mode = #tpu.pipeline_mode<synchronous>, transform_indices = @transform_23, window_bounds = array<i64: 1, 64>}, {pipeline_mode = #tpu.pipeline_mode<synchronous>, transform_indices = @transform_24, window_bounds = array<i64: 1, 64>}, {pipeline_mode = #tpu.pipeline_mode<synchronous>, transform_indices = @transform_25, window_bounds = array<i64: 256, 256>}, {pipeline_mode = #tpu.pipeline_mode<synchronous>, transform_indices = @transform_26, window_bounds = array<i64: 1, 256>}, {pipeline_mode = #tpu.pipeline_mode<synchronous>, transform_indices = @transform_27, window_bounds = array<i64: 1, 256>}, {pipeline_mode = #tpu.pipeline_mode<synchronous>, transform_indices = @transform_28, window_bounds = array<i64: 768, 256>}, {pipeline_mode = #tpu.pipeline_mode<synchronous>, transform_indices = @transform_29, window_bounds = array<i64: 1, 256>}, {transform_indices = @transform_30, window_bounds = array<i64: 1, 8, 768>}, {transform_indices = @transform_31, window_bounds = array<i64: 1, 8, 256>}]} {
    %c0 = arith.constant 0 : index
    %c0_0 = arith.constant 0 : index
    %c0_1 = arith.constant 0 : index
    %0 = vector.load %arg1[%c0, %c0_0, %c0_1] : memref<1x16x256xbf16, #tpu.memory_space<vmem>>, vector<1x16x256xbf16>
    %1 = vector.shape_cast %0 : vector<1x16x256xbf16> to vector<16x256xbf16>
    %2 = tpu.iota {dimensions = array<i32: 0>} : vector<8x16xi32>
    %3 = tpu.iota {dimensions = array<i32: 1>} : vector<8x16xi32>
    %c2_i32 = arith.constant 2 : i32
    %4 = vector.broadcast %c2_i32 : i32 to vector<8x16xi32>
    %5 = arith.muli %4, %2 : vector<8x16xi32>
    %c0_i32 = arith.constant 0 : i32
    %6 = vector.broadcast %c0_i32 : i32 to vector<8x16xi32>
    %7 = arith.addi %5, %6 : vector<8x16xi32>
    %c1_i32 = arith.constant 1 : i32
    %8 = vector.broadcast %c1_i32 : i32 to vector<8x16xi32>
    %9 = arith.subi %7, %8 : vector<8x16xi32>
    %10 = arith.cmpi eq, %3, %9 : vector<8x16xi32>
    %cst = arith.constant 1.000000e+00 : f32
    %cst_2 = arith.constant 0.000000e+00 : f32
    %11 = vector.broadcast %cst : f32 to vector<8x16xf32>
    %12 = vector.broadcast %cst_2 : f32 to vector<8x16xf32>
    %13 = arith.select %10, %11, %12 : vector<8x16xi1>, vector<8x16xf32>
    %14 = arith.truncf %13 : vector<8x16xf32> to vector<8x16xbf16>
    %cst_3 = arith.constant dense<0.000000e+00> : vector<8x256xf32>
    %15 = tpu.matmul %14, %1, %cst_3 {dimension_numbers = #tpu.dot_dimension_numbers<[1], [0], [0], [1], [0, 0, 1, 1], [], []>} : vector<8x16xbf16>, vector<16x256xbf16>, vector<8x256xf32> -> vector<8x256xf32>
    %16 = arith.truncf %15 : vector<8x256xf32> to vector<8x256xbf16>
    %c2_i32_4 = arith.constant 2 : i32
    %17 = vector.broadcast %c2_i32_4 : i32 to vector<8x16xi32>
    %18 = arith.muli %17, %2 : vector<8x16xi32>
    %c1_i32_5 = arith.constant 1 : i32
    %19 = vector.broadcast %c1_i32_5 : i32 to vector<8x16xi32>
    %20 = arith.addi %18, %19 : vector<8x16xi32>
    %c1_i32_6 = arith.constant 1 : i32
    %21 = vector.broadcast %c1_i32_6 : i32 to vector<8x16xi32>
    %22 = arith.subi %20, %21 : vector<8x16xi32>
    %23 = arith.cmpi eq, %3, %22 : vector<8x16xi32>
    %cst_7 = arith.constant 1.000000e+00 : f32
    %cst_8 = arith.constant 0.000000e+00 : f32
    %24 = vector.broadcast %cst_7 : f32 to vector<8x16xf32>
    %25 = vector.broadcast %cst_8 : f32 to vector<8x16xf32>
    %26 = arith.select %23, %24, %25 : vector<8x16xi1>, vector<8x16xf32>
    %27 = arith.truncf %26 : vector<8x16xf32> to vector<8x16xbf16>
    %cst_9 = arith.constant dense<0.000000e+00> : vector<8x256xf32>
    %28 = tpu.matmul %27, %1, %cst_9 {dimension_numbers = #tpu.dot_dimension_numbers<[1], [0], [0], [1], [0, 0, 1, 1], [], []>} : vector<8x16xbf16>, vector<16x256xbf16>, vector<8x256xf32> -> vector<8x256xf32>
    %29 = arith.truncf %28 : vector<8x256xf32> to vector<8x256xbf16>
    %c2_i32_10 = arith.constant 2 : i32
    %30 = vector.broadcast %c2_i32_10 : i32 to vector<8x16xi32>
    %31 = arith.muli %30, %2 : vector<8x16xi32>
    %c2_i32_11 = arith.constant 2 : i32
    %32 = vector.broadcast %c2_i32_11 : i32 to vector<8x16xi32>
    %33 = arith.addi %31, %32 : vector<8x16xi32>
    %c1_i32_12 = arith.constant 1 : i32
    %34 = vector.broadcast %c1_i32_12 : i32 to vector<8x16xi32>
    %35 = arith.subi %33, %34 : vector<8x16xi32>
    %36 = arith.cmpi eq, %3, %35 : vector<8x16xi32>
    %cst_13 = arith.constant 1.000000e+00 : f32
    %cst_14 = arith.constant 0.000000e+00 : f32
    %37 = vector.broadcast %cst_13 : f32 to vector<8x16xf32>
    %38 = vector.broadcast %cst_14 : f32 to vector<8x16xf32>
    %39 = arith.select %36, %37, %38 : vector<8x16xi1>, vector<8x16xf32>
    %40 = arith.truncf %39 : vector<8x16xf32> to vector<8x16xbf16>
    %cst_15 = arith.constant dense<0.000000e+00> : vector<8x256xf32>
    %41 = tpu.matmul %40, %1, %cst_15 {dimension_numbers = #tpu.dot_dimension_numbers<[1], [0], [0], [1], [0, 0, 1, 1], [], []>} : vector<8x16xbf16>, vector<16x256xbf16>, vector<8x256xf32> -> vector<8x256xf32>
    %42 = arith.truncf %41 : vector<8x256xf32> to vector<8x256xbf16>
    %43 = tpu.concatenate %16, %29, %42 in 1 : vector<8x256xbf16>, vector<8x256xbf16>, vector<8x256xbf16> -> vector<8x768xbf16>
    %c0_16 = arith.constant 0 : index
    %c0_17 = arith.constant 0 : index
    %44 = vector.load %arg2[%c0_16, %c0_17] : memref<768x128xbf16, #tpu.memory_space<vmem>>, vector<768x128xbf16>
    %cst_18 = arith.constant dense<0.000000e+00> : vector<8x128xf32>
    %45 = tpu.matmul %43, %44, %cst_18 {dimension_numbers = #tpu.dot_dimension_numbers<[1], [0], [0], [1], [0, 0, 1, 1], [], []>} : vector<8x768xbf16>, vector<768x128xbf16>, vector<8x128xf32> -> vector<8x128xf32>
    %c0_19 = arith.constant 0 : index
    %c0_20 = arith.constant 0 : index
    %46 = vector.load %arg3[%c0_19, %c0_20] : memref<1x128xf32, #tpu.memory_space<vmem>>, vector<1x128xf32>
    %47 = vector.broadcast %46 : vector<1x128xf32> to vector<8x128xf32>
    %48 = arith.mulf %45, %47 : vector<8x128xf32>
    %c0_21 = arith.constant 0 : index
    %c0_22 = arith.constant 0 : index
    %49 = vector.load %arg4[%c0_21, %c0_22] : memref<1x128xf32, #tpu.memory_space<vmem>>, vector<1x128xf32>
    %50 = vector.broadcast %49 : vector<1x128xf32> to vector<8x128xf32>
    %51 = arith.addf %48, %50 : vector<8x128xf32>
    %cst_23 = arith.constant 0.000000e+00 : f32
    %52 = vector.broadcast %cst_23 : f32 to vector<8x128xf32>
    %53 = arith.maximumf %51, %52 : vector<8x128xf32>
    %54 = arith.truncf %53 : vector<8x128xf32> to vector<8x128xbf16>
    %cst_24 = arith.constant 0.000000e+00 : bf16
    %55 = vector.broadcast %cst_24 : bf16 to vector<1x128xbf16>
    %56 = vector.extract_strided_slice %54 {offsets = [0, 0], sizes = [7, 128], strides = [1, 1]} : vector<8x128xbf16> to vector<7x128xbf16>
    %57 = tpu.concatenate %55, %56 in 0 : vector<1x128xbf16>, vector<7x128xbf16> -> vector<8x128xbf16>
    %58 = vector.extract_strided_slice %54 {offsets = [1, 0], sizes = [7, 128], strides = [1, 1]} : vector<8x128xbf16> to vector<7x128xbf16>
    %59 = tpu.concatenate %58, %55 in 0 : vector<7x128xbf16>, vector<1x128xbf16> -> vector<8x128xbf16>
    %60 = tpu.concatenate %57, %54, %59 in 1 : vector<8x128xbf16>, vector<8x128xbf16>, vector<8x128xbf16> -> vector<8x384xbf16>
    %c0_25 = arith.constant 0 : index
    %c0_26 = arith.constant 0 : index
    %61 = vector.load %arg5[%c0_25, %c0_26] : memref<384x128xbf16, #tpu.memory_space<vmem>>, vector<384x128xbf16>
    %cst_27 = arith.constant dense<0.000000e+00> : vector<8x128xf32>
    %62 = tpu.matmul %60, %61, %cst_27 {dimension_numbers = #tpu.dot_dimension_numbers<[1], [0], [0], [1], [0, 0, 1, 1], [], []>} : vector<8x384xbf16>, vector<384x128xbf16>, vector<8x128xf32> -> vector<8x128xf32>
    %c0_28 = arith.constant 0 : index
    %c0_29 = arith.constant 0 : index
    %63 = vector.load %arg6[%c0_28, %c0_29] : memref<1x128xf32, #tpu.memory_space<vmem>>, vector<1x128xf32>
    %64 = vector.broadcast %63 : vector<1x128xf32> to vector<8x128xf32>
    %65 = arith.mulf %62, %64 : vector<8x128xf32>
    %c0_30 = arith.constant 0 : index
    %c0_31 = arith.constant 0 : index
    %66 = vector.load %arg7[%c0_30, %c0_31] : memref<1x128xf32, #tpu.memory_space<vmem>>, vector<1x128xf32>
    %67 = vector.broadcast %66 : vector<1x128xf32> to vector<8x128xf32>
    %68 = arith.addf %65, %67 : vector<8x128xf32>
    %cst_32 = arith.constant 0.000000e+00 : f32
    %69 = vector.broadcast %cst_32 : f32 to vector<8x128xf32>
    %70 = arith.maximumf %68, %69 : vector<8x128xf32>
    %71 = arith.truncf %70 : vector<8x128xf32> to vector<8x128xbf16>
    %c0_33 = arith.constant 0 : index
    %c0_34 = arith.constant 0 : index
    %72 = vector.load %arg8[%c0_33, %c0_34] : memref<128x256xbf16, #tpu.memory_space<vmem>>, vector<128x256xbf16>
    %cst_35 = arith.constant dense<0.000000e+00> : vector<8x256xf32>
    %73 = tpu.matmul %71, %72, %cst_35 {dimension_numbers = #tpu.dot_dimension_numbers<[1], [0], [0], [1], [0, 0, 1, 1], [], []>} : vector<8x128xbf16>, vector<128x256xbf16>, vector<8x256xf32> -> vector<8x256xf32>
    %c0_36 = arith.constant 0 : index
    %c0_37 = arith.constant 0 : index
    %74 = vector.load %arg9[%c0_36, %c0_37] : memref<1x256xf32, #tpu.memory_space<vmem>>, vector<1x256xf32>
    %75 = vector.broadcast %74 : vector<1x256xf32> to vector<8x256xf32>
    %76 = arith.mulf %73, %75 : vector<8x256xf32>
    %c0_38 = arith.constant 0 : index
    %c0_39 = arith.constant 0 : index
    %77 = vector.load %arg10[%c0_38, %c0_39] : memref<1x256xf32, #tpu.memory_space<vmem>>, vector<1x256xf32>
    %78 = vector.broadcast %77 : vector<1x256xf32> to vector<8x256xf32>
    %79 = arith.addf %76, %78 : vector<8x256xf32>
    %cst_40 = arith.constant 0.000000e+00 : f32
    %80 = vector.broadcast %cst_40 : f32 to vector<8x256xf32>
    %81 = arith.maximumf %79, %80 : vector<8x256xf32>
    %82 = tpu.iota {dimensions = array<i32: 0>} : vector<4x8xi32>
    %83 = tpu.iota {dimensions = array<i32: 1>} : vector<4x8xi32>
    %c2_i32_41 = arith.constant 2 : i32
    %84 = vector.broadcast %c2_i32_41 : i32 to vector<4x8xi32>
    %85 = arith.muli %84, %82 : vector<4x8xi32>
    %c0_i32_42 = arith.constant 0 : i32
    %86 = vector.broadcast %c0_i32_42 : i32 to vector<4x8xi32>
    %87 = arith.addi %85, %86 : vector<4x8xi32>
    %c1_i32_43 = arith.constant 1 : i32
    %88 = vector.broadcast %c1_i32_43 : i32 to vector<4x8xi32>
    %89 = arith.subi %87, %88 : vector<4x8xi32>
    %90 = arith.cmpi eq, %83, %89 : vector<4x8xi32>
    %cst_44 = arith.constant 1.000000e+00 : f32
    %cst_45 = arith.constant 0.000000e+00 : f32
    %91 = vector.broadcast %cst_44 : f32 to vector<4x8xf32>
    %92 = vector.broadcast %cst_45 : f32 to vector<4x8xf32>
    %93 = arith.select %90, %91, %92 : vector<4x8xi1>, vector<4x8xf32>
    %94 = arith.truncf %93 : vector<4x8xf32> to vector<4x8xbf16>
    %cst_46 = arith.constant dense<0.000000e+00> : vector<4x128xf32>
    %95 = tpu.matmul %94, %71, %cst_46 {dimension_numbers = #tpu.dot_dimension_numbers<[1], [0], [0], [1], [0, 0, 1, 1], [], []>} : vector<4x8xbf16>, vector<8x128xbf16>, vector<4x128xf32> -> vector<4x128xf32>
    %96 = arith.truncf %95 : vector<4x128xf32> to vector<4x128xbf16>
    %c2_i32_47 = arith.constant 2 : i32
    %97 = vector.broadcast %c2_i32_47 : i32 to vector<4x8xi32>
    %98 = arith.muli %97, %82 : vector<4x8xi32>
    %c1_i32_48 = arith.constant 1 : i32
    %99 = vector.broadcast %c1_i32_48 : i32 to vector<4x8xi32>
    %100 = arith.addi %98, %99 : vector<4x8xi32>
    %c1_i32_49 = arith.constant 1 : i32
    %101 = vector.broadcast %c1_i32_49 : i32 to vector<4x8xi32>
    %102 = arith.subi %100, %101 : vector<4x8xi32>
    %103 = arith.cmpi eq, %83, %102 : vector<4x8xi32>
    %cst_50 = arith.constant 1.000000e+00 : f32
    %cst_51 = arith.constant 0.000000e+00 : f32
    %104 = vector.broadcast %cst_50 : f32 to vector<4x8xf32>
    %105 = vector.broadcast %cst_51 : f32 to vector<4x8xf32>
    %106 = arith.select %103, %104, %105 : vector<4x8xi1>, vector<4x8xf32>
    %107 = arith.truncf %106 : vector<4x8xf32> to vector<4x8xbf16>
    %cst_52 = arith.constant dense<0.000000e+00> : vector<4x128xf32>
    %108 = tpu.matmul %107, %71, %cst_52 {dimension_numbers = #tpu.dot_dimension_numbers<[1], [0], [0], [1], [0, 0, 1, 1], [], []>} : vector<4x8xbf16>, vector<8x128xbf16>, vector<4x128xf32> -> vector<4x128xf32>
    %109 = arith.truncf %108 : vector<4x128xf32> to vector<4x128xbf16>
    %c2_i32_53 = arith.constant 2 : i32
    %110 = vector.broadcast %c2_i32_53 : i32 to vector<4x8xi32>
    %111 = arith.muli %110, %82 : vector<4x8xi32>
    %c2_i32_54 = arith.constant 2 : i32
    %112 = vector.broadcast %c2_i32_54 : i32 to vector<4x8xi32>
    %113 = arith.addi %111, %112 : vector<4x8xi32>
    %c1_i32_55 = arith.constant 1 : i32
    %114 = vector.broadcast %c1_i32_55 : i32 to vector<4x8xi32>
    %115 = arith.subi %113, %114 : vector<4x8xi32>
    %116 = arith.cmpi eq, %83, %115 : vector<4x8xi32>
    %cst_56 = arith.constant 1.000000e+00 : f32
    %cst_57 = arith.constant 0.000000e+00 : f32
    %117 = vector.broadcast %cst_56 : f32 to vector<4x8xf32>
    %118 = vector.broadcast %cst_57 : f32 to vector<4x8xf32>
    %119 = arith.select %116, %117, %118 : vector<4x8xi1>, vector<4x8xf32>
    %120 = arith.truncf %119 : vector<4x8xf32> to vector<4x8xbf16>
    %cst_58 = arith.constant dense<0.000000e+00> : vector<4x128xf32>
    %121 = tpu.matmul %120, %71, %cst_58 {dimension_numbers = #tpu.dot_dimension_numbers<[1], [0], [0], [1], [0, 0, 1, 1], [], []>} : vector<4x8xbf16>, vector<8x128xbf16>, vector<4x128xf32> -> vector<4x128xf32>
    %122 = arith.truncf %121 : vector<4x128xf32> to vector<4x128xbf16>
    %123 = tpu.concatenate %96, %109, %122 in 1 : vector<4x128xbf16>, vector<4x128xbf16>, vector<4x128xbf16> -> vector<4x384xbf16>
    %c0_59 = arith.constant 0 : index
    %c0_60 = arith.constant 0 : index
    %124 = vector.load %arg11[%c0_59, %c0_60] : memref<384x64xbf16, #tpu.memory_space<vmem>>, vector<384x64xbf16>
    %cst_61 = arith.constant dense<0.000000e+00> : vector<4x64xf32>
    %125 = tpu.matmul %123, %124, %cst_61 {dimension_numbers = #tpu.dot_dimension_numbers<[1], [0], [0], [1], [0, 0, 1, 1], [], []>} : vector<4x384xbf16>, vector<384x64xbf16>, vector<4x64xf32> -> vector<4x64xf32>
    %c0_62 = arith.constant 0 : index
    %c0_63 = arith.constant 0 : index
    %126 = vector.load %arg12[%c0_62, %c0_63] : memref<1x64xf32, #tpu.memory_space<vmem>>, vector<1x64xf32>
    %127 = vector.broadcast %126 : vector<1x64xf32> to vector<4x64xf32>
    %128 = arith.mulf %125, %127 : vector<4x64xf32>
    %c0_64 = arith.constant 0 : index
    %c0_65 = arith.constant 0 : index
    %129 = vector.load %arg13[%c0_64, %c0_65] : memref<1x64xf32, #tpu.memory_space<vmem>>, vector<1x64xf32>
    %130 = vector.broadcast %129 : vector<1x64xf32> to vector<4x64xf32>
    %131 = arith.addf %128, %130 : vector<4x64xf32>
    %cst_66 = arith.constant 0.000000e+00 : f32
    %132 = vector.broadcast %cst_66 : f32 to vector<4x64xf32>
    %133 = arith.maximumf %131, %132 : vector<4x64xf32>
    %134 = arith.truncf %133 : vector<4x64xf32> to vector<4x64xbf16>
    %cst_67 = arith.constant 0.000000e+00 : bf16
    %135 = vector.broadcast %cst_67 : bf16 to vector<1x64xbf16>
    %136 = vector.extract_strided_slice %134 {offsets = [0, 0], sizes = [3, 64], strides = [1, 1]} : vector<4x64xbf16> to vector<3x64xbf16>
    %137 = tpu.concatenate %135, %136 in 0 : vector<1x64xbf16>, vector<3x64xbf16> -> vector<4x64xbf16>
    %138 = vector.extract_strided_slice %134 {offsets = [1, 0], sizes = [3, 64], strides = [1, 1]} : vector<4x64xbf16> to vector<3x64xbf16>
    %139 = tpu.concatenate %138, %135 in 0 : vector<3x64xbf16>, vector<1x64xbf16> -> vector<4x64xbf16>
    %140 = tpu.concatenate %137, %134, %139 in 1 : vector<4x64xbf16>, vector<4x64xbf16>, vector<4x64xbf16> -> vector<4x192xbf16>
    %c0_68 = arith.constant 0 : index
    %c0_69 = arith.constant 0 : index
    %141 = vector.load %arg14[%c0_68, %c0_69] : memref<192x64xbf16, #tpu.memory_space<vmem>>, vector<192x64xbf16>
    %cst_70 = arith.constant dense<0.000000e+00> : vector<4x64xf32>
    %142 = tpu.matmul %140, %141, %cst_70 {dimension_numbers = #tpu.dot_dimension_numbers<[1], [0], [0], [1], [0, 0, 1, 1], [], []>} : vector<4x192xbf16>, vector<192x64xbf16>, vector<4x64xf32> -> vector<4x64xf32>
    %c0_71 = arith.constant 0 : index
    %c0_72 = arith.constant 0 : index
    %143 = vector.load %arg15[%c0_71, %c0_72] : memref<1x64xf32, #tpu.memory_space<vmem>>, vector<1x64xf32>
    %144 = vector.broadcast %143 : vector<1x64xf32> to vector<4x64xf32>
    %145 = arith.mulf %142, %144 : vector<4x64xf32>
    %c0_73 = arith.constant 0 : index
    %c0_74 = arith.constant 0 : index
    %146 = vector.load %arg16[%c0_73, %c0_74] : memref<1x64xf32, #tpu.memory_space<vmem>>, vector<1x64xf32>
    %147 = vector.broadcast %146 : vector<1x64xf32> to vector<4x64xf32>
    %148 = arith.addf %145, %147 : vector<4x64xf32>
    %cst_75 = arith.constant 0.000000e+00 : f32
    %149 = vector.broadcast %cst_75 : f32 to vector<4x64xf32>
    %150 = arith.maximumf %148, %149 : vector<4x64xf32>
    %151 = arith.truncf %150 : vector<4x64xf32> to vector<4x64xbf16>
    %152 = tpu.iota {dimensions = array<i32: 0>} : vector<8x4xi32>
    %153 = tpu.iota {dimensions = array<i32: 1>} : vector<8x4xi32>
    %c2_i32_76 = arith.constant 2 : i32
    %154 = vector.broadcast %c2_i32_76 : i32 to vector<8x4xi32>
    %155 = arith.muli %154, %153 : vector<8x4xi32>
    %c0_i32_77 = arith.constant 0 : i32
    %156 = vector.broadcast %c0_i32_77 : i32 to vector<8x4xi32>
    %157 = arith.addi %155, %156 : vector<8x4xi32>
    %158 = arith.cmpi eq, %152, %157 : vector<8x4xi32>
    %cst_78 = arith.constant 1.000000e+00 : f32
    %cst_79 = arith.constant 0.000000e+00 : f32
    %159 = vector.broadcast %cst_78 : f32 to vector<8x4xf32>
    %160 = vector.broadcast %cst_79 : f32 to vector<8x4xf32>
    %161 = arith.select %158, %159, %160 : vector<8x4xi1>, vector<8x4xf32>
    %162 = arith.truncf %161 : vector<8x4xf32> to vector<8x4xbf16>
    %cst_80 = arith.constant dense<0.000000e+00> : vector<8x64xf32>
    %163 = tpu.matmul %162, %151, %cst_80 {dimension_numbers = #tpu.dot_dimension_numbers<[1], [0], [0], [1], [0, 0, 1, 1], [], []>} : vector<8x4xbf16>, vector<4x64xbf16>, vector<8x64xf32> -> vector<8x64xf32>
    %164 = arith.truncf %163 : vector<8x64xf32> to vector<8x64xbf16>
    %c2_i32_81 = arith.constant 2 : i32
    %165 = vector.broadcast %c2_i32_81 : i32 to vector<8x4xi32>
    %166 = arith.muli %165, %153 : vector<8x4xi32>
    %c1_i32_82 = arith.constant 1 : i32
    %167 = vector.broadcast %c1_i32_82 : i32 to vector<8x4xi32>
    %168 = arith.addi %166, %167 : vector<8x4xi32>
    %169 = arith.cmpi eq, %152, %168 : vector<8x4xi32>
    %cst_83 = arith.constant 1.000000e+00 : f32
    %cst_84 = arith.constant 0.000000e+00 : f32
    %170 = vector.broadcast %cst_83 : f32 to vector<8x4xf32>
    %171 = vector.broadcast %cst_84 : f32 to vector<8x4xf32>
    %172 = arith.select %169, %170, %171 : vector<8x4xi1>, vector<8x4xf32>
    %173 = arith.truncf %172 : vector<8x4xf32> to vector<8x4xbf16>
    %cst_85 = arith.constant dense<0.000000e+00> : vector<8x64xf32>
    %174 = tpu.matmul %173, %151, %cst_85 {dimension_numbers = #tpu.dot_dimension_numbers<[1], [0], [0], [1], [0, 0, 1, 1], [], []>} : vector<8x4xbf16>, vector<4x64xbf16>, vector<8x64xf32> -> vector<8x64xf32>
    %175 = arith.truncf %174 : vector<8x64xf32> to vector<8x64xbf16>
    %176 = tpu.concatenate %164, %175 in 1 : vector<8x64xbf16>, vector<8x64xbf16> -> vector<8x128xbf16>
    %c0_86 = arith.constant 0 : index
    %c0_87 = arith.constant 0 : index
    %177 = vector.load %arg17[%c0_86, %c0_87] : memref<128x256xbf16, #tpu.memory_space<vmem>>, vector<128x256xbf16>
    %cst_88 = arith.constant dense<0.000000e+00> : vector<8x256xf32>
    %178 = tpu.matmul %176, %177, %cst_88 {dimension_numbers = #tpu.dot_dimension_numbers<[1], [0], [0], [1], [0, 0, 1, 1], [], []>} : vector<8x128xbf16>, vector<128x256xbf16>, vector<8x256xf32> -> vector<8x256xf32>
    %c0_89 = arith.constant 0 : index
    %c0_90 = arith.constant 0 : index
    %179 = vector.load %arg18[%c0_89, %c0_90] : memref<1x256xf32, #tpu.memory_space<vmem>>, vector<1x256xf32>
    %180 = vector.broadcast %179 : vector<1x256xf32> to vector<8x256xf32>
    %181 = arith.mulf %178, %180 : vector<8x256xf32>
    %c0_91 = arith.constant 0 : index
    %c0_92 = arith.constant 0 : index
    %182 = vector.load %arg19[%c0_91, %c0_92] : memref<1x256xf32, #tpu.memory_space<vmem>>, vector<1x256xf32>
    %183 = vector.broadcast %182 : vector<1x256xf32> to vector<8x256xf32>
    %184 = arith.addf %181, %183 : vector<8x256xf32>
    %cst_93 = arith.constant 0.000000e+00 : f32
    %185 = vector.broadcast %cst_93 : f32 to vector<8x256xf32>
    %186 = arith.maximumf %184, %185 : vector<8x256xf32>
    %187 = tpu.iota {dimensions = array<i32: 0>} : vector<2x4xi32>
    %188 = tpu.iota {dimensions = array<i32: 1>} : vector<2x4xi32>
    %c2_i32_94 = arith.constant 2 : i32
    %189 = vector.broadcast %c2_i32_94 : i32 to vector<2x4xi32>
    %190 = arith.muli %189, %187 : vector<2x4xi32>
    %c0_i32_95 = arith.constant 0 : i32
    %191 = vector.broadcast %c0_i32_95 : i32 to vector<2x4xi32>
    %192 = arith.addi %190, %191 : vector<2x4xi32>
    %c1_i32_96 = arith.constant 1 : i32
    %193 = vector.broadcast %c1_i32_96 : i32 to vector<2x4xi32>
    %194 = arith.subi %192, %193 : vector<2x4xi32>
    %195 = arith.cmpi eq, %188, %194 : vector<2x4xi32>
    %cst_97 = arith.constant 1.000000e+00 : f32
    %cst_98 = arith.constant 0.000000e+00 : f32
    %196 = vector.broadcast %cst_97 : f32 to vector<2x4xf32>
    %197 = vector.broadcast %cst_98 : f32 to vector<2x4xf32>
    %198 = arith.select %195, %196, %197 : vector<2x4xi1>, vector<2x4xf32>
    %199 = arith.truncf %198 : vector<2x4xf32> to vector<2x4xbf16>
    %cst_99 = arith.constant dense<0.000000e+00> : vector<2x64xf32>
    %200 = tpu.matmul %199, %151, %cst_99 {dimension_numbers = #tpu.dot_dimension_numbers<[1], [0], [0], [1], [0, 0, 1, 1], [], []>} : vector<2x4xbf16>, vector<4x64xbf16>, vector<2x64xf32> -> vector<2x64xf32>
    %201 = arith.truncf %200 : vector<2x64xf32> to vector<2x64xbf16>
    %c2_i32_100 = arith.constant 2 : i32
    %202 = vector.broadcast %c2_i32_100 : i32 to vector<2x4xi32>
    %203 = arith.muli %202, %187 : vector<2x4xi32>
    %c1_i32_101 = arith.constant 1 : i32
    %204 = vector.broadcast %c1_i32_101 : i32 to vector<2x4xi32>
    %205 = arith.addi %203, %204 : vector<2x4xi32>
    %c1_i32_102 = arith.constant 1 : i32
    %206 = vector.broadcast %c1_i32_102 : i32 to vector<2x4xi32>
    %207 = arith.subi %205, %206 : vector<2x4xi32>
    %208 = arith.cmpi eq, %188, %207 : vector<2x4xi32>
    %cst_103 = arith.constant 1.000000e+00 : f32
    %cst_104 = arith.constant 0.000000e+00 : f32
    %209 = vector.broadcast %cst_103 : f32 to vector<2x4xf32>
    %210 = vector.broadcast %cst_104 : f32 to vector<2x4xf32>
    %211 = arith.select %208, %209, %210 : vector<2x4xi1>, vector<2x4xf32>
    %212 = arith.truncf %211 : vector<2x4xf32> to vector<2x4xbf16>
    %cst_105 = arith.constant dense<0.000000e+00> : vector<2x64xf32>
    %213 = tpu.matmul %212, %151, %cst_105 {dimension_numbers = #tpu.dot_dimension_numbers<[1], [0], [0], [1], [0, 0, 1, 1], [], []>} : vector<2x4xbf16>, vector<4x64xbf16>, vector<2x64xf32> -> vector<2x64xf32>
    %214 = arith.truncf %213 : vector<2x64xf32> to vector<2x64xbf16>
    %c2_i32_106 = arith.constant 2 : i32
    %215 = vector.broadcast %c2_i32_106 : i32 to vector<2x4xi32>
    %216 = arith.muli %215, %187 : vector<2x4xi32>
    %c2_i32_107 = arith.constant 2 : i32
    %217 = vector.broadcast %c2_i32_107 : i32 to vector<2x4xi32>
    %218 = arith.addi %216, %217 : vector<2x4xi32>
    %c1_i32_108 = arith.constant 1 : i32
    %219 = vector.broadcast %c1_i32_108 : i32 to vector<2x4xi32>
    %220 = arith.subi %218, %219 : vector<2x4xi32>
    %221 = arith.cmpi eq, %188, %220 : vector<2x4xi32>
    %cst_109 = arith.constant 1.000000e+00 : f32
    %cst_110 = arith.constant 0.000000e+00 : f32
    %222 = vector.broadcast %cst_109 : f32 to vector<2x4xf32>
    %223 = vector.broadcast %cst_110 : f32 to vector<2x4xf32>
    %224 = arith.select %221, %222, %223 : vector<2x4xi1>, vector<2x4xf32>
    %225 = arith.truncf %224 : vector<2x4xf32> to vector<2x4xbf16>
    %cst_111 = arith.constant dense<0.000000e+00> : vector<2x64xf32>
    %226 = tpu.matmul %225, %151, %cst_111 {dimension_numbers = #tpu.dot_dimension_numbers<[1], [0], [0], [1], [0, 0, 1, 1], [], []>} : vector<2x4xbf16>, vector<4x64xbf16>, vector<2x64xf32> -> vector<2x64xf32>
    %227 = arith.truncf %226 : vector<2x64xf32> to vector<2x64xbf16>
    %228 = tpu.concatenate %201, %214, %227 in 1 : vector<2x64xbf16>, vector<2x64xbf16>, vector<2x64xbf16> -> vector<2x192xbf16>
    %c0_112 = arith.constant 0 : index
    %c0_113 = arith.constant 0 : index
    %229 = vector.load %arg20[%c0_112, %c0_113] : memref<192x64xbf16, #tpu.memory_space<vmem>>, vector<192x64xbf16>
    %cst_114 = arith.constant dense<0.000000e+00> : vector<2x64xf32>
    %230 = tpu.matmul %228, %229, %cst_114 {dimension_numbers = #tpu.dot_dimension_numbers<[1], [0], [0], [1], [0, 0, 1, 1], [], []>} : vector<2x192xbf16>, vector<192x64xbf16>, vector<2x64xf32> -> vector<2x64xf32>
    %c0_115 = arith.constant 0 : index
    %c0_116 = arith.constant 0 : index
    %231 = vector.load %arg21[%c0_115, %c0_116] : memref<1x64xf32, #tpu.memory_space<vmem>>, vector<1x64xf32>
    %232 = vector.broadcast %231 : vector<1x64xf32> to vector<2x64xf32>
    %233 = arith.mulf %230, %232 : vector<2x64xf32>
    %c0_117 = arith.constant 0 : index
    %c0_118 = arith.constant 0 : index
    %234 = vector.load %arg22[%c0_117, %c0_118] : memref<1x64xf32, #tpu.memory_space<vmem>>, vector<1x64xf32>
    %235 = vector.broadcast %234 : vector<1x64xf32> to vector<2x64xf32>
    %236 = arith.addf %233, %235 : vector<2x64xf32>
    %cst_119 = arith.constant 0.000000e+00 : f32
    %237 = vector.broadcast %cst_119 : f32 to vector<2x64xf32>
    %238 = arith.maximumf %236, %237 : vector<2x64xf32>
    %239 = arith.truncf %238 : vector<2x64xf32> to vector<2x64xbf16>
    %cst_120 = arith.constant 0.000000e+00 : bf16
    %240 = vector.broadcast %cst_120 : bf16 to vector<1x64xbf16>
    %241 = vector.extract_strided_slice %239 {offsets = [0, 0], sizes = [1, 64], strides = [1, 1]} : vector<2x64xbf16> to vector<1x64xbf16>
    %242 = tpu.concatenate %240, %241 in 0 : vector<1x64xbf16>, vector<1x64xbf16> -> vector<2x64xbf16>
    %243 = vector.extract_strided_slice %239 {offsets = [1, 0], sizes = [1, 64], strides = [1, 1]} : vector<2x64xbf16> to vector<1x64xbf16>
    %244 = tpu.concatenate %243, %240 in 0 : vector<1x64xbf16>, vector<1x64xbf16> -> vector<2x64xbf16>
    %245 = tpu.concatenate %242, %239, %244 in 1 : vector<2x64xbf16>, vector<2x64xbf16>, vector<2x64xbf16> -> vector<2x192xbf16>
    %c0_121 = arith.constant 0 : index
    %c0_122 = arith.constant 0 : index
    %246 = vector.load %arg23[%c0_121, %c0_122] : memref<192x64xbf16, #tpu.memory_space<vmem>>, vector<192x64xbf16>
    %cst_123 = arith.constant dense<0.000000e+00> : vector<2x64xf32>
    %247 = tpu.matmul %245, %246, %cst_123 {dimension_numbers = #tpu.dot_dimension_numbers<[1], [0], [0], [1], [0, 0, 1, 1], [], []>} : vector<2x192xbf16>, vector<192x64xbf16>, vector<2x64xf32> -> vector<2x64xf32>
    %c0_124 = arith.constant 0 : index
    %c0_125 = arith.constant 0 : index
    %248 = vector.load %arg24[%c0_124, %c0_125] : memref<1x64xf32, #tpu.memory_space<vmem>>, vector<1x64xf32>
    %249 = vector.broadcast %248 : vector<1x64xf32> to vector<2x64xf32>
    %250 = arith.mulf %247, %249 : vector<2x64xf32>
    %c0_126 = arith.constant 0 : index
    %c0_127 = arith.constant 0 : index
    %251 = vector.load %arg25[%c0_126, %c0_127] : memref<1x64xf32, #tpu.memory_space<vmem>>, vector<1x64xf32>
    %252 = vector.broadcast %251 : vector<1x64xf32> to vector<2x64xf32>
    %253 = arith.addf %250, %252 : vector<2x64xf32>
    %cst_128 = arith.constant 0.000000e+00 : f32
    %254 = vector.broadcast %cst_128 : f32 to vector<2x64xf32>
    %255 = arith.maximumf %253, %254 : vector<2x64xf32>
    %256 = arith.truncf %255 : vector<2x64xf32> to vector<2x64xbf16>
    %257 = tpu.iota {dimensions = array<i32: 0>} : vector<8x2xi32>
    %258 = tpu.iota {dimensions = array<i32: 1>} : vector<8x2xi32>
    %c4_i32 = arith.constant 4 : i32
    %259 = vector.broadcast %c4_i32 : i32 to vector<8x2xi32>
    %260 = arith.muli %259, %258 : vector<8x2xi32>
    %c0_i32_129 = arith.constant 0 : i32
    %261 = vector.broadcast %c0_i32_129 : i32 to vector<8x2xi32>
    %262 = arith.addi %260, %261 : vector<8x2xi32>
    %263 = arith.cmpi eq, %257, %262 : vector<8x2xi32>
    %cst_130 = arith.constant 1.000000e+00 : f32
    %cst_131 = arith.constant 0.000000e+00 : f32
    %264 = vector.broadcast %cst_130 : f32 to vector<8x2xf32>
    %265 = vector.broadcast %cst_131 : f32 to vector<8x2xf32>
    %266 = arith.select %263, %264, %265 : vector<8x2xi1>, vector<8x2xf32>
    %267 = arith.truncf %266 : vector<8x2xf32> to vector<8x2xbf16>
    %cst_132 = arith.constant dense<0.000000e+00> : vector<8x64xf32>
    %268 = tpu.matmul %267, %256, %cst_132 {dimension_numbers = #tpu.dot_dimension_numbers<[1], [0], [0], [1], [0, 0, 1, 1], [], []>} : vector<8x2xbf16>, vector<2x64xbf16>, vector<8x64xf32> -> vector<8x64xf32>
    %269 = arith.truncf %268 : vector<8x64xf32> to vector<8x64xbf16>
    %c4_i32_133 = arith.constant 4 : i32
    %270 = vector.broadcast %c4_i32_133 : i32 to vector<8x2xi32>
    %271 = arith.muli %270, %258 : vector<8x2xi32>
    %c1_i32_134 = arith.constant 1 : i32
    %272 = vector.broadcast %c1_i32_134 : i32 to vector<8x2xi32>
    %273 = arith.addi %271, %272 : vector<8x2xi32>
    %274 = arith.cmpi eq, %257, %273 : vector<8x2xi32>
    %cst_135 = arith.constant 1.000000e+00 : f32
    %cst_136 = arith.constant 0.000000e+00 : f32
    %275 = vector.broadcast %cst_135 : f32 to vector<8x2xf32>
    %276 = vector.broadcast %cst_136 : f32 to vector<8x2xf32>
    %277 = arith.select %274, %275, %276 : vector<8x2xi1>, vector<8x2xf32>
    %278 = arith.truncf %277 : vector<8x2xf32> to vector<8x2xbf16>
    %cst_137 = arith.constant dense<0.000000e+00> : vector<8x64xf32>
    %279 = tpu.matmul %278, %256, %cst_137 {dimension_numbers = #tpu.dot_dimension_numbers<[1], [0], [0], [1], [0, 0, 1, 1], [], []>} : vector<8x2xbf16>, vector<2x64xbf16>, vector<8x64xf32> -> vector<8x64xf32>
    %280 = arith.truncf %279 : vector<8x64xf32> to vector<8x64xbf16>
    %c4_i32_138 = arith.constant 4 : i32
    %281 = vector.broadcast %c4_i32_138 : i32 to vector<8x2xi32>
    %282 = arith.muli %281, %258 : vector<8x2xi32>
    %c2_i32_139 = arith.constant 2 : i32
    %283 = vector.broadcast %c2_i32_139 : i32 to vector<8x2xi32>
    %284 = arith.addi %282, %283 : vector<8x2xi32>
    %285 = arith.cmpi eq, %257, %284 : vector<8x2xi32>
    %cst_140 = arith.constant 1.000000e+00 : f32
    %cst_141 = arith.constant 0.000000e+00 : f32
    %286 = vector.broadcast %cst_140 : f32 to vector<8x2xf32>
    %287 = vector.broadcast %cst_141 : f32 to vector<8x2xf32>
    %288 = arith.select %285, %286, %287 : vector<8x2xi1>, vector<8x2xf32>
    %289 = arith.truncf %288 : vector<8x2xf32> to vector<8x2xbf16>
    %cst_142 = arith.constant dense<0.000000e+00> : vector<8x64xf32>
    %290 = tpu.matmul %289, %256, %cst_142 {dimension_numbers = #tpu.dot_dimension_numbers<[1], [0], [0], [1], [0, 0, 1, 1], [], []>} : vector<8x2xbf16>, vector<2x64xbf16>, vector<8x64xf32> -> vector<8x64xf32>
    %291 = arith.truncf %290 : vector<8x64xf32> to vector<8x64xbf16>
    %c4_i32_143 = arith.constant 4 : i32
    %292 = vector.broadcast %c4_i32_143 : i32 to vector<8x2xi32>
    %293 = arith.muli %292, %258 : vector<8x2xi32>
    %c3_i32 = arith.constant 3 : i32
    %294 = vector.broadcast %c3_i32 : i32 to vector<8x2xi32>
    %295 = arith.addi %293, %294 : vector<8x2xi32>
    %296 = arith.cmpi eq, %257, %295 : vector<8x2xi32>
    %cst_144 = arith.constant 1.000000e+00 : f32
    %cst_145 = arith.constant 0.000000e+00 : f32
    %297 = vector.broadcast %cst_144 : f32 to vector<8x2xf32>
    %298 = vector.broadcast %cst_145 : f32 to vector<8x2xf32>
    %299 = arith.select %296, %297, %298 : vector<8x2xi1>, vector<8x2xf32>
    %300 = arith.truncf %299 : vector<8x2xf32> to vector<8x2xbf16>
    %cst_146 = arith.constant dense<0.000000e+00> : vector<8x64xf32>
    %301 = tpu.matmul %300, %256, %cst_146 {dimension_numbers = #tpu.dot_dimension_numbers<[1], [0], [0], [1], [0, 0, 1, 1], [], []>} : vector<8x2xbf16>, vector<2x64xbf16>, vector<8x64xf32> -> vector<8x64xf32>
    %302 = arith.truncf %301 : vector<8x64xf32> to vector<8x64xbf16>
    %303 = tpu.concatenate %269, %280, %291, %302 in 1 : vector<8x64xbf16>, vector<8x64xbf16>, vector<8x64xbf16>, vector<8x64xbf16> -> vector<8x256xbf16>
    %c0_147 = arith.constant 0 : index
    %c0_148 = arith.constant 0 : index
    %304 = vector.load %arg26[%c0_147, %c0_148] : memref<256x256xbf16, #tpu.memory_space<vmem>>, vector<256x256xbf16>
    %cst_149 = arith.constant dense<0.000000e+00> : vector<8x256xf32>
    %305 = tpu.matmul %303, %304, %cst_149 {dimension_numbers = #tpu.dot_dimension_numbers<[1], [0], [0], [1], [0, 0, 1, 1], [], []>} : vector<8x256xbf16>, vector<256x256xbf16>, vector<8x256xf32> -> vector<8x256xf32>
    %c0_150 = arith.constant 0 : index
    %c0_151 = arith.constant 0 : index
    %306 = vector.load %arg27[%c0_150, %c0_151] : memref<1x256xf32, #tpu.memory_space<vmem>>, vector<1x256xf32>
    %307 = vector.broadcast %306 : vector<1x256xf32> to vector<8x256xf32>
    %308 = arith.mulf %305, %307 : vector<8x256xf32>
    %c0_152 = arith.constant 0 : index
    %c0_153 = arith.constant 0 : index
    %309 = vector.load %arg28[%c0_152, %c0_153] : memref<1x256xf32, #tpu.memory_space<vmem>>, vector<1x256xf32>
    %310 = vector.broadcast %309 : vector<1x256xf32> to vector<8x256xf32>
    %311 = arith.addf %308, %310 : vector<8x256xf32>
    %cst_154 = arith.constant 0.000000e+00 : f32
    %312 = vector.broadcast %cst_154 : f32 to vector<8x256xf32>
    %313 = arith.maximumf %311, %312 : vector<8x256xf32>
    %314 = tpu.concatenate %81, %186, %313 in 1 : vector<8x256xf32>, vector<8x256xf32>, vector<8x256xf32> -> vector<8x768xf32>
    %c0_155 = arith.constant 0 : index
    %c0_156 = arith.constant 0 : index
    %c0_157 = arith.constant 0 : index
    %315 = vector.load %arg31[%c0_155, %c0_156, %c0_157] : memref<1x8x768xf32, #tpu.memory_space<vmem>>, vector<1x8x768xf32>
    %316 = vector.shape_cast %315 : vector<1x8x768xf32> to vector<8x768xf32>
    %317 = vector.shape_cast %314 : vector<8x768xf32> to vector<1x8x768xf32>
    tpu.vector_store %arg31[%c0_155, %c0_156, %c0_157], %317 {strides = array<i32>} : memref<1x8x768xf32, #tpu.memory_space<vmem>>, vector<1x8x768xf32>,
    %318 = arith.truncf %314 : vector<8x768xf32> to vector<8x768xbf16>
    %c0_158 = arith.constant 0 : index
    %c0_159 = arith.constant 0 : index
    %319 = vector.load %arg29[%c0_158, %c0_159] : memref<768x256xbf16, #tpu.memory_space<vmem>>, vector<768x256xbf16>
    %cst_160 = arith.constant dense<0.000000e+00> : vector<8x256xf32>
    %320 = tpu.matmul %318, %319, %cst_160 {dimension_numbers = #tpu.dot_dimension_numbers<[1], [0], [0], [1], [0, 0, 1, 1], [], []>} : vector<8x768xbf16>, vector<768x256xbf16>, vector<8x256xf32> -> vector<8x256xf32>
    %c0_161 = arith.constant 0 : index
    %c0_162 = arith.constant 0 : index
    %321 = vector.load %arg30[%c0_161, %c0_162] : memref<1x256xf32, #tpu.memory_space<vmem>>, vector<1x256xf32>
    %322 = vector.broadcast %321 : vector<1x256xf32> to vector<8x256xf32>
    %323 = arith.addf %320, %322 : vector<8x256xf32>
    %c0_163 = arith.constant 0 : index
    %c0_164 = arith.constant 0 : index
    %c0_165 = arith.constant 0 : index
    %324 = vector.load %arg32[%c0_163, %c0_164, %c0_165] : memref<1x8x256xf32, #tpu.memory_space<vmem>>, vector<1x8x256xf32>
    %325 = vector.shape_cast %324 : vector<1x8x256xf32> to vector<8x256xf32>
    %326 = vector.shape_cast %323 : vector<8x256xf32> to vector<1x8x256xf32>
    tpu.vector_store %arg32[%c0_163, %c0_164, %c0_165], %326 {strides = array<i32>} : memref<1x8x256xf32, #tpu.memory_space<vmem>>, vector<1x8x256xf32>,
    return
  }
  func.func @transform_0(%arg0: i32) -> (i32, i32, i32) {
    %c0_i32 = arith.constant 0 : i32
    %c0_i32_0 = arith.constant 0 : i32
    %c0_i32_1 = arith.constant 0 : i32
    return %arg0, %c0_i32, %c0_i32_0 : i32, i32, i32
  }
  func.func @transform_1(%arg0: i32) -> (i32, i32) {
    %c0_i32 = arith.constant 0 : i32
    %c0_i32_0 = arith.constant 0 : i32
    %c0_i32_1 = arith.constant 0 : i32
    return %c0_i32, %c0_i32_0 : i32, i32
  }
  func.func @transform_2(%arg0: i32) -> (i32, i32) {
    %c0_i32 = arith.constant 0 : i32
    %c0_i32_0 = arith.constant 0 : i32
    %c0_i32_1 = arith.constant 0 : i32
    return %c0_i32, %c0_i32_0 : i32, i32
  }
  func.func @transform_3(%arg0: i32) -> (i32, i32) {
    %c0_i32 = arith.constant 0 : i32
    %c0_i32_0 = arith.constant 0 : i32
    %c0_i32_1 = arith.constant 0 : i32
    return %c0_i32, %c0_i32_0 : i32, i32
  }
  func.func @transform_4(%arg0: i32) -> (i32, i32) {
    %c0_i32 = arith.constant 0 : i32
    %c0_i32_0 = arith.constant 0 : i32
    %c0_i32_1 = arith.constant 0 : i32
    return %c0_i32, %c0_i32_0 : i32, i32
  }
  func.func @transform_5(%arg0: i32) -> (i32, i32) {
    %c0_i32 = arith.constant 0 : i32
    %c0_i32_0 = arith.constant 0 : i32
    %c0_i32_1 = arith.constant 0 : i32
    return %c0_i32, %c0_i32_0 : i32, i32
  }
  func.func @transform_6(%arg0: i32) -> (i32, i32) {
    %c0_i32 = arith.constant 0 : i32
    %c0_i32_0 = arith.constant 0 : i32
    %c0_i32_1 = arith.constant 0 : i32
    return %c0_i32, %c0_i32_0 : i32, i32
  }
  func.func @transform_7(%arg0: i32) -> (i32, i32) {
    %c0_i32 = arith.constant 0 : i32
    %c0_i32_0 = arith.constant 0 : i32
    %c0_i32_1 = arith.constant 0 : i32
    return %c0_i32, %c0_i32_0 : i32, i32
  }
  func.func @transform_8(%arg0: i32) -> (i32, i32) {
    %c0_i32 = arith.constant 0 : i32
    %c0_i32_0 = arith.constant 0 : i32
    %c0_i32_1 = arith.constant 0 : i32
    return %c0_i32, %c0_i32_0 : i32, i32
  }
  func.func @transform_9(%arg0: i32) -> (i32, i32) {
    %c0_i32 = arith.constant 0 : i32
    %c0_i32_0 = arith.constant 0 : i32
    %c0_i32_1 = arith.constant 0 : i32
    return %c0_i32, %c0_i32_0 : i32, i32
  }
  func.func @transform_10(%arg0: i32) -> (i32, i32) {
    %c0_i32 = arith.constant 0 : i32
    %c0_i32_0 = arith.constant 0 : i32
    %c0_i32_1 = arith.constant 0 : i32
    return %c0_i32, %c0_i32_0 : i32, i32
  }
  func.func @transform_11(%arg0: i32) -> (i32, i32) {
    %c0_i32 = arith.constant 0 : i32
    %c0_i32_0 = arith.constant 0 : i32
    %c0_i32_1 = arith.constant 0 : i32
    return %c0_i32, %c0_i32_0 : i32, i32
  }
  func.func @transform_12(%arg0: i32) -> (i32, i32) {
    %c0_i32 = arith.constant 0 : i32
    %c0_i32_0 = arith.constant 0 : i32
    %c0_i32_1 = arith.constant 0 : i32
    return %c0_i32, %c0_i32_0 : i32, i32
  }
  func.func @transform_13(%arg0: i32) -> (i32, i32) {
    %c0_i32 = arith.constant 0 : i32
    %c0_i32_0 = arith.constant 0 : i32
    %c0_i32_1 = arith.constant 0 : i32
    return %c0_i32, %c0_i32_0 : i32, i32
  }
  func.func @transform_14(%arg0: i32) -> (i32, i32) {
    %c0_i32 = arith.constant 0 : i32
    %c0_i32_0 = arith.constant 0 : i32
    %c0_i32_1 = arith.constant 0 : i32
    return %c0_i32, %c0_i32_0 : i32, i32
  }
  func.func @transform_15(%arg0: i32) -> (i32, i32) {
    %c0_i32 = arith.constant 0 : i32
    %c0_i32_0 = arith.constant 0 : i32
    %c0_i32_1 = arith.constant 0 : i32
    return %c0_i32, %c0_i32_0 : i32, i32
  }
  func.func @transform_16(%arg0: i32) -> (i32, i32) {
    %c0_i32 = arith.constant 0 : i32
    %c0_i32_0 = arith.constant 0 : i32
    %c0_i32_1 = arith.constant 0 : i32
    return %c0_i32, %c0_i32_0 : i32, i32
  }
  func.func @transform_17(%arg0: i32) -> (i32, i32) {
    %c0_i32 = arith.constant 0 : i32
    %c0_i32_0 = arith.constant 0 : i32
    %c0_i32_1 = arith.constant 0 : i32
    return %c0_i32, %c0_i32_0 : i32, i32
  }
  func.func @transform_18(%arg0: i32) -> (i32, i32) {
    %c0_i32 = arith.constant 0 : i32
    %c0_i32_0 = arith.constant 0 : i32
    %c0_i32_1 = arith.constant 0 : i32
    return %c0_i32, %c0_i32_0 : i32, i32
  }
  func.func @transform_19(%arg0: i32) -> (i32, i32) {
    %c0_i32 = arith.constant 0 : i32
    %c0_i32_0 = arith.constant 0 : i32
    %c0_i32_1 = arith.constant 0 : i32
    return %c0_i32, %c0_i32_0 : i32, i32
  }
  func.func @transform_20(%arg0: i32) -> (i32, i32) {
    %c0_i32 = arith.constant 0 : i32
    %c0_i32_0 = arith.constant 0 : i32
    %c0_i32_1 = arith.constant 0 : i32
    return %c0_i32, %c0_i32_0 : i32, i32
  }
  func.func @transform_21(%arg0: i32) -> (i32, i32) {
    %c0_i32 = arith.constant 0 : i32
    %c0_i32_0 = arith.constant 0 : i32
    %c0_i32_1 = arith.constant 0 : i32
    return %c0_i32, %c0_i32_0 : i32, i32
  }
  func.func @transform_22(%arg0: i32) -> (i32, i32) {
    %c0_i32 = arith.constant 0 : i32
    %c0_i32_0 = arith.constant 0 : i32
    %c0_i32_1 = arith.constant 0 : i32
    return %c0_i32, %c0_i32_0 : i32, i32
  }
  func.func @transform_23(%arg0: i32) -> (i32, i32) {
    %c0_i32 = arith.constant 0 : i32
    %c0_i32_0 = arith.constant 0 : i32
    %c0_i32_1 = arith.constant 0 : i32
    return %c0_i32, %c0_i32_0 : i32, i32
  }
  func.func @transform_24(%arg0: i32) -> (i32, i32) {
    %c0_i32 = arith.constant 0 : i32
    %c0_i32_0 = arith.constant 0 : i32
    %c0_i32_1 = arith.constant 0 : i32
    return %c0_i32, %c0_i32_0 : i32, i32
  }
  func.func @transform_25(%arg0: i32) -> (i32, i32) {
    %c0_i32 = arith.constant 0 : i32
    %c0_i32_0 = arith.constant 0 : i32
    %c0_i32_1 = arith.constant 0 : i32
    return %c0_i32, %c0_i32_0 : i32, i32
  }
  func.func @transform_26(%arg0: i32) -> (i32, i32) {
    %c0_i32 = arith.constant 0 : i32
    %c0_i32_0 = arith.constant 0 : i32
    %c0_i32_1 = arith.constant 0 : i32
    return %c0_i32, %c0_i32_0 : i32, i32
  }
  func.func @transform_27(%arg0: i32) -> (i32, i32) {
    %c0_i32 = arith.constant 0 : i32
    %c0_i32_0 = arith.constant 0 : i32
    %c0_i32_1 = arith.constant 0 : i32
    return %c0_i32, %c0_i32_0 : i32, i32
  }
  func.func @transform_28(%arg0: i32) -> (i32, i32) {
    %c0_i32 = arith.constant 0 : i32
    %c0_i32_0 = arith.constant 0 : i32
    %c0_i32_1 = arith.constant 0 : i32
    return %c0_i32, %c0_i32_0 : i32, i32
  }
  func.func @transform_29(%arg0: i32) -> (i32, i32) {
    %c0_i32 = arith.constant 0 : i32
    %c0_i32_0 = arith.constant 0 : i32
    %c0_i32_1 = arith.constant 0 : i32
    return %c0_i32, %c0_i32_0 : i32, i32
  }
  func.func @transform_30(%arg0: i32) -> (i32, i32, i32) {
    %c0_i32 = arith.constant 0 : i32
    %c0_i32_0 = arith.constant 0 : i32
    %c0_i32_1 = arith.constant 0 : i32
    return %arg0, %c0_i32, %c0_i32_0 : i32, i32, i32
  }
  func.func @transform_31(%arg0: i32) -> (i32, i32, i32) {
    %c0_i32 = arith.constant 0 : i32
    %c0_i32_0 = arith.constant 0 : i32
    %c0_i32_1 = arith.constant 0 : i32
    return %arg0, %c0_i32, %c0_i32_0 : i32, i32, i32
  }
}

</mosaic_0001>

<llo_original>
// kernel: forward.1
$region0: #{forward.1}
  #allocation0 [shape = 'u32[]', space=smem, size = 0x4, offset = 0x4, fixed_abs, tag = 'smem constant byte address 0x4 - core index']
  #allocation1 [shape = 'u32[144,128]{1,0:T(1,128)}', space=vmem, size = 0x12000, scoped, tag = 'internal scratch']
  %s0 = inlined_call_operand.smem [shape: u32[32], index: -1, kind: input, shape index: {}]
  %s1 = sld [smem:[%s0]]
  %s2 = scalar_lea.smem %s0, 1
  %s3 = sld [smem:[%s2]]
  %s4 = scalar_lea.smem %s0, 2
  %s5 = sld [smem:[%s4]]
  %s6 = scalar_lea.smem %s0, 3
  %s7 = sld [smem:[%s6]]
  %s8 = scalar_lea.smem %s0, 4
  %s9 = sld [smem:[%s8]]
  %s10 = scalar_lea.smem %s0, 5
  %s11 = sld [smem:[%s10]]
  %s12 = scalar_lea.smem %s0, 6
  %s13 = sld [smem:[%s12]]
  %s14 = scalar_lea.smem %s0, 7
  %s15 = sld [smem:[%s14]]
  %s16 = scalar_lea.smem %s0, 8
  %s17 = sld [smem:[%s16]]
  %s18 = scalar_lea.smem %s0, 9
  %s19 = sld [smem:[%s18]]
  %s20 = scalar_lea.smem %s0, 10
  %s21 = sld [smem:[%s20]]
  %s22 = scalar_lea.smem %s0, 11
  %s23 = sld [smem:[%s22]]
  %s24 = scalar_lea.smem %s0, 12
  %s25 = sld [smem:[%s24]]
  %s26 = scalar_lea.smem %s0, 13
  %s27 = sld [smem:[%s26]]
  %s28 = scalar_lea.smem %s0, 14
  %s29 = sld [smem:[%s28]]
  %s30 = scalar_lea.smem %s0, 15
  %s31 = sld [smem:[%s30]]
  %s32 = scalar_lea.smem %s0, 16
  %s33 = sld [smem:[%s32]]
  %s34 = scalar_lea.smem %s0, 17
  %s35 = sld [smem:[%s34]]
  %s36 = scalar_lea.smem %s0, 18
  %s37 = sld [smem:[%s36]]
  %s38 = scalar_lea.smem %s0, 19
  %s39 = sld [smem:[%s38]]
  %s40 = scalar_lea.smem %s0, 20
  %s41 = sld [smem:[%s40]]
  %s42 = scalar_lea.smem %s0, 21
  %s43 = sld [smem:[%s42]]
  %s44 = scalar_lea.smem %s0, 22
  %s45 = sld [smem:[%s44]]
  %s46 = scalar_lea.smem %s0, 23
  %s47 = sld [smem:[%s46]]
  %s48 = scalar_lea.smem %s0, 24
  %s49 = sld [smem:[%s48]]
  %s50 = scalar_lea.smem %s0, 25
  %s51 = sld [smem:[%s50]]
  %s52 = scalar_lea.smem %s0, 26
  %s53 = sld [smem:[%s52]]
  %s54 = scalar_lea.smem %s0, 27
  %s55 = sld [smem:[%s54]]
  %s56 = scalar_lea.smem %s0, 28
  %s57 = sld [smem:[%s56]]
  %s58 = scalar_lea.smem %s0, 29
  %s59 = sld [smem:[%s58]]
  %s60 = scalar_lea.smem %s0, 30
  %s61 = sld [smem:[%s60]]
  %s62 = scalar_lea.smem %s0, 31
  %s63 = sld [smem:[%s62]]
  %64 = xla_tuple %s61, %s63
  %s65 = sld [smem:[#allocation0]]
  $region161: #{forward.1} parent=0
    _
  %s67 = ssub.s32 1, %s65
  %s68 = scalar_select 0, %s67, %s65
  loop: start=0, step=1, limit=4
  $region2: #{forward.1} parent=0 // loop_pre_header
    _
  $region3: #{forward.1} parent=0 // loop_header
    %s70 = sphi 0, %s74
    %p71 = scmp.ge.s32.totalorder %s70, 4
    %s80 = sphi 0, %s82
    %s83 = sphi 0, %s80
    %s84 = sphi 0, %s83
    %s100 = sphi 0, %s84
    %s104 = sphi 0, %s104
    %s106 = sphi 0, %s104
    %s107 = sphi 0, %s106
    %s121 = sphi 0, %s107
    %s125 = sphi 0, %s125
    %s127 = sphi 0, %s125
    %s128 = sphi 0, %s127
    %s142 = sphi 0, %s128
    %s146 = sphi 0, %s146
    %s148 = sphi 0, %s146
    %s149 = sphi 0, %s148
    %s163 = sphi 0, %s149
    %s167 = sphi 0, %s167
    %s169 = sphi 0, %s167
    %s170 = sphi 0, %s169
    %s184 = sphi 0, %s170
    %s188 = sphi 0, %s188
    %s190 = sphi 0, %s188
    %s191 = sphi 0, %s190
    %s205 = sphi 0, %s191
    %s209 = sphi 0, %s209
    %s211 = sphi 0, %s209
    %s212 = sphi 0, %s211
    %s226 = sphi 0, %s212
    %s230 = sphi 0, %s230
    %s232 = sphi 0, %s230
    %s233 = sphi 0, %s232
    %s247 = sphi 0, %s233
    %s251 = sphi 0, %s251
    %s253 = sphi 0, %s251
    %s254 = sphi 0, %s253
    %s268 = sphi 0, %s254
    %s272 = sphi 0, %s272
    %s274 = sphi 0, %s272
    %s275 = sphi 0, %s274
    %s289 = sphi 0, %s275
    %s293 = sphi 0, %s293
    %s295 = sphi 0, %s293
    %s296 = sphi 0, %s295
    %s310 = sphi 0, %s296
    %s314 = sphi 0, %s314
    %s316 = sphi 0, %s314
    %s317 = sphi 0, %s316
    %s331 = sphi 0, %s317
    %s335 = sphi 0, %s335
    %s337 = sphi 0, %s335
    %s338 = sphi 0, %s337
    %s352 = sphi 0, %s338
    %s356 = sphi 0, %s356
    %s358 = sphi 0, %s356
    %s359 = sphi 0, %s358
    %s373 = sphi 0, %s359
    %s377 = sphi 0, %s377
    %s379 = sphi 0, %s377
    %s380 = sphi 0, %s379
    %s394 = sphi 0, %s380
    %s398 = sphi 0, %s398
    %s400 = sphi 0, %s398
    %s401 = sphi 0, %s400
    %s415 = sphi 0, %s401
    %s419 = sphi 0, %s419
    %s421 = sphi 0, %s419
    %s422 = sphi 0, %s421
    %s436 = sphi 0, %s422
    %s440 = sphi 0, %s440
    %s442 = sphi 0, %s440
    %s443 = sphi 0, %s442
    %s457 = sphi 0, %s443
    %s461 = sphi 0, %s461
    %s463 = sphi 0, %s461
    %s464 = sphi 0, %s463
    %s478 = sphi 0, %s464
    %s482 = sphi 0, %s482
    %s484 = sphi 0, %s482
    %s485 = sphi 0, %s484
    %s499 = sphi 0, %s485
    %s503 = sphi 0, %s503
    %s505 = sphi 0, %s503
    %s506 = sphi 0, %s505
    %s520 = sphi 0, %s506
    %s524 = sphi 0, %s524
    %s526 = sphi 0, %s524
    %s527 = sphi 0, %s526
    %s541 = sphi 0, %s527
    %s545 = sphi 0, %s545
    %s547 = sphi 0, %s545
    %s548 = sphi 0, %s547
    %s562 = sphi 0, %s548
    %s566 = sphi 0, %s566
    %s568 = sphi 0, %s566
    %s569 = sphi 0, %s568
    %s583 = sphi 0, %s569
    %s587 = sphi 0, %s587
    %s589 = sphi 0, %s587
    %s590 = sphi 0, %s589
    %s604 = sphi 0, %s590
    %s608 = sphi 0, %s608
    %s610 = sphi 0, %s608
    %s611 = sphi 0, %s610
    %s625 = sphi 0, %s611
    %s629 = sphi 0, %s629
    %s631 = sphi 0, %s629
    %s632 = sphi 0, %s631
    %s646 = sphi 0, %s632
    %s650 = sphi 0, %s650
    %s652 = sphi 0, %s650
    %s653 = sphi 0, %s652
    %s667 = sphi 0, %s653
    %s671 = sphi 0, %s671
    %s673 = sphi 0, %s671
    %s674 = sphi 0, %s673
    %s688 = sphi 0, %s674
    %s692 = sphi 0, %s692
    %s694 = sphi 0, %s692
    %s695 = sphi 0, %s694
    %s709 = sphi 0, %s695
    %s715 = sphi 0, %s717
    %s718 = sphi 0, %s715
    %s719 = sphi 0, %s718
    %s735 = sphi 0, %s719
    %s741 = sphi 0, %s743
    %s744 = sphi 0, %s741
    %s745 = sphi 0, %s744
    %s761 = sphi 0, %s745
  $region4: #{forward.1} parent=0 // loop_header_branch
    %73 = sbr.rel (%p71) target = $region8
  $region5: #{forward.1} parent=0 // loop_body
    %s75 = ssub.s32 %s70, 1
    %s76 = ssub.s32 %s70, 2
    %s77 = sadd.s32 %s70, 1
    %s78 = ssub.s32 %s70, %s77
    %p79 = scmp.eq.s32.totalorder %s78, 0
    %s81 = sadd.s32 %s80, 1
    %s82 = scalar_select %p79, %s80, %s81
    %p85 = pneg %p79
    %p86 = scmp.eq.s32.totalorder %s70, 1
    %p87 = por %p85, %p86
    %p88 = scmp.ne.s32.totalorder %s80, %s83
    %p89 = scmp.eq.s32.totalorder %s70, 0
    %p90 = por %p88, %p89
    %p91 = scmp.ne.s32.totalorder %s80, %s83
    %p92 = scmp.eq.s32.totalorder %s75, 1
    %p93 = por %p91, %p92
    %p94 = scmp.ne.s32.totalorder %s83, %s84
    %p95 = scmp.eq.s32.totalorder %s75, 0
    %p96 = por %p94, %p95
    %p97 = scmp.ne.s32.totalorder %s83, %s84
    %p98 = scmp.eq.s32.totalorder %s76, 1
    %p99 = por %p97, %p98
    %p101 = scmp.ne.s32.totalorder %s84, %s100
    %p102 = scmp.eq.s32.totalorder %s76, 0
    %p103 = por %p101, %p102
    %s105 = sadd.s32 %s104, 1
    %p108 = scmp.eq.s32.totalorder %s70, 1
    %p109 = scmp.ne.s32.totalorder %s104, %s106
    %p110 = scmp.eq.s32.totalorder %s70, 0
    %p111 = por %p109, %p110
    %p112 = scmp.ne.s32.totalorder %s104, %s106
    %p113 = scmp.eq.s32.totalorder %s75, 1
    %p114 = por %p112, %p113
    %p115 = scmp.ne.s32.totalorder %s106, %s107
    %p116 = scmp.eq.s32.totalorder %s75, 0
    %p117 = por %p115, %p116
    %p118 = scmp.ne.s32.totalorder %s106, %s107
    %p119 = scmp.eq.s32.totalorder %s76, 1
    %p120 = por %p118, %p119
    %p122 = scmp.ne.s32.totalorder %s107, %s121
    %p123 = scmp.eq.s32.totalorder %s76, 0
    %p124 = por %p122, %p123
    %s126 = sadd.s32 %s125, 1
    %p129 = scmp.eq.s32.totalorder %s70, 1
    %p130 = scmp.ne.s32.totalorder %s125, %s127
    %p131 = scmp.eq.s32.totalorder %s70, 0
    %p132 = por %p130, %p131
    %p133 = scmp.ne.s32.totalorder %s125, %s127
    %p134 = scmp.eq.s32.totalorder %s75, 1
    %p135 = por %p133, %p134
    %p136 = scmp.ne.s32.totalorder %s127, %s128
    %p137 = scmp.eq.s32.totalorder %s75, 0
    %p138 = por %p136, %p137
    %p139 = scmp.ne.s32.totalorder %s127, %s128
    %p140 = scmp.eq.s32.totalorder %s76, 1
    %p141 = por %p139, %p140
    %p143 = scmp.ne.s32.totalorder %s128, %s142
    %p144 = scmp.eq.s32.totalorder %s76, 0
    %p145 = por %p143, %p144
    %s147 = sadd.s32 %s146, 1
    %p150 = scmp.eq.s32.totalorder %s70, 1
    %p151 = scmp.ne.s32.totalorder %s146, %s148
    %p152 = scmp.eq.s32.totalorder %s70, 0
    %p153 = por %p151, %p152
    %p154 = scmp.ne.s32.totalorder %s146, %s148
    %p155 = scmp.eq.s32.totalorder %s75, 1
    %p156 = por %p154, %p155
    %p157 = scmp.ne.s32.totalorder %s148, %s149
    %p158 = scmp.eq.s32.totalorder %s75, 0
    %p159 = por %p157, %p158
    %p160 = scmp.ne.s32.totalorder %s148, %s149
    %p161 = scmp.eq.s32.totalorder %s76, 1
    %p162 = por %p160, %p161
    %p164 = scmp.ne.s32.totalorder %s149, %s163
    %p165 = scmp.eq.s32.totalorder %s76, 0
    %p166 = por %p164, %p165
    %s168 = sadd.s32 %s167, 1
    %p171 = scmp.eq.s32.totalorder %s70, 1
    %p172 = scmp.ne.s32.totalorder %s167, %s169
    %p173 = scmp.eq.s32.totalorder %s70, 0
    %p174 = por %p172, %p173
    %p175 = scmp.ne.s32.totalorder %s167, %s169
    %p176 = scmp.eq.s32.totalorder %s75, 1
    %p177 = por %p175, %p176
    %p178 = scmp.ne.s32.totalorder %s169, %s170
    %p179 = scmp.eq.s32.totalorder %s75, 0
    %p180 = por %p178, %p179
    %p181 = scmp.ne.s32.totalorder %s169, %s170
    %p182 = scmp.eq.s32.totalorder %s76, 1
    %p183 = por %p181, %p182
    %p185 = scmp.ne.s32.totalorder %s170, %s184
    %p186 = scmp.eq.s32.totalorder %s76, 0
    %p187 = por %p185, %p186
    %s189 = sadd.s32 %s188, 1
    %p192 = scmp.eq.s32.totalorder %s70, 1
    %p193 = scmp.ne.s32.totalorder %s188, %s190
    %p194 = scmp.eq.s32.totalorder %s70, 0
    %p195 = por %p193, %p194
    %p196 = scmp.ne.s32.totalorder %s188, %s190
    %p197 = scmp.eq.s32.totalorder %s75, 1
    %p198 = por %p196, %p197
    %p199 = scmp.ne.s32.totalorder %s190, %s191
    %p200 = scmp.eq.s32.totalorder %s75, 0
    %p201 = por %p199, %p200
    %p202 = scmp.ne.s32.totalorder %s190, %s191
    %p203 = scmp.eq.s32.totalorder %s76, 1
    %p204 = por %p202, %p203
    %p206 = scmp.ne.s32.totalorder %s191, %s205
    %p207 = scmp.eq.s32.totalorder %s76, 0
    %p208 = por %p206, %p207
    %s210 = sadd.s32 %s209, 1
    %p213 = scmp.eq.s32.totalorder %s70, 1
    %p214 = scmp.ne.s32.totalorder %s209, %s211
    %p215 = scmp.eq.s32.totalorder %s70, 0
    %p216 = por %p214, %p215
    %p217 = scmp.ne.s32.totalorder %s209, %s211
    %p218 = scmp.eq.s32.totalorder %s75, 1
    %p219 = por %p217, %p218
    %p220 = scmp.ne.s32.totalorder %s211, %s212
    %p221 = scmp.eq.s32.totalorder %s75, 0
    %p222 = por %p220, %p221
    %p223 = scmp.ne.s32.totalorder %s211, %s212
    %p224 = scmp.eq.s32.totalorder %s76, 1
    %p225 = por %p223, %p224
    %p227 = scmp.ne.s32.totalorder %s212, %s226
    %p228 = scmp.eq.s32.totalorder %s76, 0
    %p229 = por %p227, %p228
    %s231 = sadd.s32 %s230, 1
    %p234 = scmp.eq.s32.totalorder %s70, 1
    %p235 = scmp.ne.s32.totalorder %s230, %s232
    %p236 = scmp.eq.s32.totalorder %s70, 0
    %p237 = por %p235, %p236
    %p238 = scmp.ne.s32.totalorder %s230, %s232
    %p239 = scmp.eq.s32.totalorder %s75, 1
    %p240 = por %p238, %p239
    %p241 = scmp.ne.s32.totalorder %s232, %s233
    %p242 = scmp.eq.s32.totalorder %s75, 0
    %p243 = por %p241, %p242
    %p244 = scmp.ne.s32.totalorder %s232, %s233
    %p245 = scmp.eq.s32.totalorder %s76, 1
    %p246 = por %p244, %p245
    %p248 = scmp.ne.s32.totalorder %s233, %s247
    %p249 = scmp.eq.s32.totalorder %s76, 0
    %p250 = por %p248, %p249
    %s252 = sadd.s32 %s251, 1
    %p255 = scmp.eq.s32.totalorder %s70, 1
    %p256 = scmp.ne.s32.totalorder %s251, %s253
    %p257 = scmp.eq.s32.totalorder %s70, 0
    %p258 = por %p256, %p257
    %p259 = scmp.ne.s32.totalorder %s251, %s253
    %p260 = scmp.eq.s32.totalorder %s75, 1
    %p261 = por %p259, %p260
    %p262 = scmp.ne.s32.totalorder %s253, %s254
    %p263 = scmp.eq.s32.totalorder %s75, 0
    %p264 = por %p262, %p263
    %p265 = scmp.ne.s32.totalorder %s253, %s254
    %p266 = scmp.eq.s32.totalorder %s76, 1
    %p267 = por %p265, %p266
    %p269 = scmp.ne.s32.totalorder %s254, %s268
    %p270 = scmp.eq.s32.totalorder %s76, 0
    %p271 = por %p269, %p270
    %s273 = sadd.s32 %s272, 1
    %p276 = scmp.eq.s32.totalorder %s70, 1
    %p277 = scmp.ne.s32.totalorder %s272, %s274
    %p278 = scmp.eq.s32.totalorder %s70, 0
    %p279 = por %p277, %p278
    %p280 = scmp.ne.s32.totalorder %s272, %s274
    %p281 = scmp.eq.s32.totalorder %s75, 1
    %p282 = por %p280, %p281
    %p283 = scmp.ne.s32.totalorder %s274, %s275
    %p284 = scmp.eq.s32.totalorder %s75, 0
    %p285 = por %p283, %p284
    %p286 = scmp.ne.s32.totalorder %s274, %s275
    %p287 = scmp.eq.s32.totalorder %s76, 1
    %p288 = por %p286, %p287
    %p290 = scmp.ne.s32.totalorder %s275, %s289
    %p291 = scmp.eq.s32.totalorder %s76, 0
    %p292 = por %p290, %p291
    %s294 = sadd.s32 %s293, 1
    %p297 = scmp.eq.s32.totalorder %s70, 1
    %p298 = scmp.ne.s32.totalorder %s293, %s295
    %p299 = scmp.eq.s32.totalorder %s70, 0
    %p300 = por %p298, %p299
    %p301 = scmp.ne.s32.totalorder %s293, %s295
    %p302 = scmp.eq.s32.totalorder %s75, 1
    %p303 = por %p301, %p302
    %p304 = scmp.ne.s32.totalorder %s295, %s296
    %p305 = scmp.eq.s32.totalorder %s75, 0
    %p306 = por %p304, %p305
    %p307 = scmp.ne.s32.totalorder %s295, %s296
    %p308 = scmp.eq.s32.totalorder %s76, 1
    %p309 = por %p307, %p308
    %p311 = scmp.ne.s32.totalorder %s296, %s310
    %p312 = scmp.eq.s32.totalorder %s76, 0
    %p313 = por %p311, %p312
    %s315 = sadd.s32 %s314, 1
    %p318 = scmp.eq.s32.totalorder %s70, 1
    %p319 = scmp.ne.s32.totalorder %s314, %s316
    %p320 = scmp.eq.s32.totalorder %s70, 0
    %p321 = por %p319, %p320
    %p322 = scmp.ne.s32.totalorder %s314, %s316
    %p323 = scmp.eq.s32.totalorder %s75, 1
    %p324 = por %p322, %p323
    %p325 = scmp.ne.s32.totalorder %s316, %s317
    %p326 = scmp.eq.s32.totalorder %s75, 0
    %p327 = por %p325, %p326
    %p328 = scmp.ne.s32.totalorder %s316, %s317
    %p329 = scmp.eq.s32.totalorder %s76, 1
    %p330 = por %p328, %p329
    %p332 = scmp.ne.s32.totalorder %s317, %s331
    %p333 = scmp.eq.s32.totalorder %s76, 0
    %p334 = por %p332, %p333
    %s336 = sadd.s32 %s335, 1
    %p339 = scmp.eq.s32.totalorder %s70, 1
    %p340 = scmp.ne.s32.totalorder %s335, %s337
    %p341 = scmp.eq.s32.totalorder %s70, 0
    %p342 = por %p340, %p341
    %p343 = scmp.ne.s32.totalorder %s335, %s337
    %p344 = scmp.eq.s32.totalorder %s75, 1
    %p345 = por %p343, %p344
    %p346 = scmp.ne.s32.totalorder %s337, %s338
    %p347 = scmp.eq.s32.totalorder %s75, 0
    %p348 = por %p346, %p347
    %p349 = scmp.ne.s32.totalorder %s337, %s338
    %p350 = scmp.eq.s32.totalorder %s76, 1
    %p351 = por %p349, %p350
    %p353 = scmp.ne.s32.totalorder %s338, %s352
    %p354 = scmp.eq.s32.totalorder %s76, 0
    %p355 = por %p353, %p354
    %s357 = sadd.s32 %s356, 1
    %p360 = scmp.eq.s32.totalorder %s70, 1
    %p361 = scmp.ne.s32.totalorder %s356, %s358
    %p362 = scmp.eq.s32.totalorder %s70, 0
    %p363 = por %p361, %p362
    %p364 = scmp.ne.s32.totalorder %s356, %s358
    %p365 = scmp.eq.s32.totalorder %s75, 1
    %p366 = por %p364, %p365
    %p367 = scmp.ne.s32.totalorder %s358, %s359
    %p368 = scmp.eq.s32.totalorder %s75, 0
    %p369 = por %p367, %p368
    %p370 = scmp.ne.s32.totalorder %s358, %s359
    %p371 = scmp.eq.s32.totalorder %s76, 1
    %p372 = por %p370, %p371
    %p374 = scmp.ne.s32.totalorder %s359, %s373
    %p375 = scmp.eq.s32.totalorder %s76, 0
    %p376 = por %p374, %p375
    %s378 = sadd.s32 %s377, 1
    %p381 = scmp.eq.s32.totalorder %s70, 1
    %p382 = scmp.ne.s32.totalorder %s377, %s379
    %p383 = scmp.eq.s32.totalorder %s70, 0
    %p384 = por %p382, %p383
    %p385 = scmp.ne.s32.totalorder %s377, %s379
    %p386 = scmp.eq.s32.totalorder %s75, 1
    %p387 = por %p385, %p386
    %p388 = scmp.ne.s32.totalorder %s379, %s380
    %p389 = scmp.eq.s32.totalorder %s75, 0
    %p390 = por %p388, %p389
    %p391 = scmp.ne.s32.totalorder %s379, %s380
    %p392 = scmp.eq.s32.totalorder %s76, 1
    %p393 = por %p391, %p392
    %p395 = scmp.ne.s32.totalorder %s380, %s394
    %p396 = scmp.eq.s32.totalorder %s76, 0
    %p397 = por %p395, %p396
    %s399 = sadd.s32 %s398, 1
    %p402 = scmp.eq.s32.totalorder %s70, 1
    %p403 = scmp.ne.s32.totalorder %s398, %s400
    %p404 = scmp.eq.s32.totalorder %s70, 0
    %p405 = por %p403, %p404
    %p406 = scmp.ne.s32.totalorder %s398, %s400
    %p407 = scmp.eq.s32.totalorder %s75, 1
    %p408 = por %p406, %p407
    %p409 = scmp.ne.s32.totalorder %s400, %s401
    %p410 = scmp.eq.s32.totalorder %s75, 0
    %p411 = por %p409, %p410
    %p412 = scmp.ne.s32.totalorder %s400, %s401
    %p413 = scmp.eq.s32.totalorder %s76, 1
    %p414 = por %p412, %p413
    %p416 = scmp.ne.s32.totalorder %s401, %s415
    %p417 = scmp.eq.s32.totalorder %s76, 0
    %p418 = por %p416, %p417
    %s420 = sadd.s32 %s419, 1
    %p423 = scmp.eq.s32.totalorder %s70, 1
    %p424 = scmp.ne.s32.totalorder %s419, %s421
    %p425 = scmp.eq.s32.totalorder %s70, 0
    %p426 = por %p424, %p425
    %p427 = scmp.ne.s32.totalorder %s419, %s421
    %p428 = scmp.eq.s32.totalorder %s75, 1
    %p429 = por %p427, %p428
    %p430 = scmp.ne.s32.totalorder %s421, %s422
    %p431 = scmp.eq.s32.totalorder %s75, 0
    %p432 = por %p430, %p431
    %p433 = scmp.ne.s32.totalorder %s421, %s422
    %p434 = scmp.eq.s32.totalorder %s76, 1
    %p435 = por %p433, %p434
    %p437 = scmp.ne.s32.totalorder %s422, %s436
    %p438 = scmp.eq.s32.totalorder %s76, 0
    %p439 = por %p437, %p438
    %s441 = sadd.s32 %s440, 1
    %p444 = scmp.eq.s32.totalorder %s70, 1
    %p445 = scmp.ne.s32.totalorder %s440, %s442
    %p446 = scmp.eq.s32.totalorder %s70, 0
    %p447 = por %p445, %p446
    %p448 = scmp.ne.s32.totalorder %s440, %s442
    %p449 = scmp.eq.s32.totalorder %s75, 1
    %p450 = por %p448, %p449
    %p451 = scmp.ne.s32.totalorder %s442, %s443
    %p452 = scmp.eq.s32.totalorder %s75, 0
    %p453 = por %p451, %p452
    %p454 = scmp.ne.s32.totalorder %s442, %s443
    %p455 = scmp.eq.s32.totalorder %s76, 1
    %p456 = por %p454, %p455
    %p458 = scmp.ne.s32.totalorder %s443, %s457
    %p459 = scmp.eq.s32.totalorder %s76, 0
    %p460 = por %p458, %p459
    %s462 = sadd.s32 %s461, 1
    %p465 = scmp.eq.s32.totalorder %s70, 1
    %p466 = scmp.ne.s32.totalorder %s461, %s463
    %p467 = scmp.eq.s32.totalorder %s70, 0
    %p468 = por %p466, %p467
    %p469 = scmp.ne.s32.totalorder %s461, %s463
    %p470 = scmp.eq.s32.totalorder %s75, 1
    %p471 = por %p469, %p470
    %p472 = scmp.ne.s32.totalorder %s463, %s464
    %p473 = scmp.eq.s32.totalorder %s75, 0
    %p474 = por %p472, %p473
    %p475 = scmp.ne.s32.totalorder %s463, %s464
    %p476 = scmp.eq.s32.totalorder %s76, 1
    %p477 = por %p475, %p476
    %p479 = scmp.ne.s32.totalorder %s464, %s478
    %p480 = scmp.eq.s32.totalorder %s76, 0
    %p481 = por %p479, %p480
    %s483 = sadd.s32 %s482, 1
    %p486 = scmp.eq.s32.totalorder %s70, 1
    %p487 = scmp.ne.s32.totalorder %s482, %s484
    %p488 = scmp.eq.s32.totalorder %s70, 0
    %p489 = por %p487, %p488
    %p490 = scmp.ne.s32.totalorder %s482, %s484
    %p491 = scmp.eq.s32.totalorder %s75, 1
    %p492 = por %p490, %p491
    %p493 = scmp.ne.s32.totalorder %s484, %s485
    %p494 = scmp.eq.s32.totalorder %s75, 0
    %p495 = por %p493, %p494
    %p496 = scmp.ne.s32.totalorder %s484, %s485
    %p497 = scmp.eq.s32.totalorder %s76, 1
    %p498 = por %p496, %p497
    %p500 = scmp.ne.s32.totalorder %s485, %s499
    %p501 = scmp.eq.s32.totalorder %s76, 0
    %p502 = por %p500, %p501
    %s504 = sadd.s32 %s503, 1
    %p507 = scmp.eq.s32.totalorder %s70, 1
    %p508 = scmp.ne.s32.totalorder %s503, %s505
    %p509 = scmp.eq.s32.totalorder %s70, 0
    %p510 = por %p508, %p509
    %p511 = scmp.ne.s32.totalorder %s503, %s505
    %p512 = scmp.eq.s32.totalorder %s75, 1
    %p513 = por %p511, %p512
    %p514 = scmp.ne.s32.totalorder %s505, %s506
    %p515 = scmp.eq.s32.totalorder %s75, 0
    %p516 = por %p514, %p515
    %p517 = scmp.ne.s32.totalorder %s505, %s506
    %p518 = scmp.eq.s32.totalorder %s76, 1
    %p519 = por %p517, %p518
    %p521 = scmp.ne.s32.totalorder %s506, %s520
    %p522 = scmp.eq.s32.totalorder %s76, 0
    %p523 = por %p521, %p522
    %s525 = sadd.s32 %s524, 1
    %p528 = scmp.eq.s32.totalorder %s70, 1
    %p529 = scmp.ne.s32.totalorder %s524, %s526
    %p530 = scmp.eq.s32.totalorder %s70, 0
    %p531 = por %p529, %p530
    %p532 = scmp.ne.s32.totalorder %s524, %s526
    %p533 = scmp.eq.s32.totalorder %s75, 1
    %p534 = por %p532, %p533
    %p535 = scmp.ne.s32.totalorder %s526, %s527
    %p536 = scmp.eq.s32.totalorder %s75, 0
    %p537 = por %p535, %p536
    %p538 = scmp.ne.s32.totalorder %s526, %s527
    %p539 = scmp.eq.s32.totalorder %s76, 1
    %p540 = por %p538, %p539
    %p542 = scmp.ne.s32.totalorder %s527, %s541
    %p543 = scmp.eq.s32.totalorder %s76, 0
    %p544 = por %p542, %p543
    %s546 = sadd.s32 %s545, 1
    %p549 = scmp.eq.s32.totalorder %s70, 1
    %p550 = scmp.ne.s32.totalorder %s545, %s547
    %p551 = scmp.eq.s32.totalorder %s70, 0
    %p552 = por %p550, %p551
    %p553 = scmp.ne.s32.totalorder %s545, %s547
    %p554 = scmp.eq.s32.totalorder %s75, 1
    %p555 = por %p553, %p554
    %p556 = scmp.ne.s32.totalorder %s547, %s548
    %p557 = scmp.eq.s32.totalorder %s75, 0
    %p558 = por %p556, %p557
    %p559 = scmp.ne.s32.totalorder %s547, %s548
    %p560 = scmp.eq.s32.totalorder %s76, 1
    %p561 = por %p559, %p560
    %p563 = scmp.ne.s32.totalorder %s548, %s562
    %p564 = scmp.eq.s32.totalorder %s76, 0
    %p565 = por %p563, %p564
    %s567 = sadd.s32 %s566, 1
    %p570 = scmp.eq.s32.totalorder %s70, 1
    %p571 = scmp.ne.s32.totalorder %s566, %s568
    %p572 = scmp.eq.s32.totalorder %s70, 0
    %p573 = por %p571, %p572
    %p574 = scmp.ne.s32.totalorder %s566, %s568
    %p575 = scmp.eq.s32.totalorder %s75, 1
    %p576 = por %p574, %p575
    %p577 = scmp.ne.s32.totalorder %s568, %s569
    %p578 = scmp.eq.s32.totalorder %s75, 0
    %p579 = por %p577, %p578
    %p580 = scmp.ne.s32.totalorder %s568, %s569
    %p581 = scmp.eq.s32.totalorder %s76, 1
    %p582 = por %p580, %p581
    %p584 = scmp.ne.s32.totalorder %s569, %s583
    %p585 = scmp.eq.s32.totalorder %s76, 0
    %p586 = por %p584, %p585
    %s588 = sadd.s32 %s587, 1
    %p591 = scmp.eq.s32.totalorder %s70, 1
    %p592 = scmp.ne.s32.totalorder %s587, %s589
    %p593 = scmp.eq.s32.totalorder %s70, 0
    %p594 = por %p592, %p593
    %p595 = scmp.ne.s32.totalorder %s587, %s589
    %p596 = scmp.eq.s32.totalorder %s75, 1
    %p597 = por %p595, %p596
    %p598 = scmp.ne.s32.totalorder %s589, %s590
    %p599 = scmp.eq.s32.totalorder %s75, 0
    %p600 = por %p598, %p599
    %p601 = scmp.ne.s32.totalorder %s589, %s590
    %p602 = scmp.eq.s32.totalorder %s76, 1
    %p603 = por %p601, %p602
    %p605 = scmp.ne.s32.totalorder %s590, %s604
    %p606 = scmp.eq.s32.totalorder %s76, 0
    %p607 = por %p605, %p606
    %s609 = sadd.s32 %s608, 1
    %p612 = scmp.eq.s32.totalorder %s70, 1
    %p613 = scmp.ne.s32.totalorder %s608, %s610
    %p614 = scmp.eq.s32.totalorder %s70, 0
    %p615 = por %p613, %p614
    %p616 = scmp.ne.s32.totalorder %s608, %s610
    %p617 = scmp.eq.s32.totalorder %s75, 1
    %p618 = por %p616, %p617
    %p619 = scmp.ne.s32.totalorder %s610, %s611
    %p620 = scmp.eq.s32.totalorder %s75, 0
    %p621 = por %p619, %p620
    %p622 = scmp.ne.s32.totalorder %s610, %s611
    %p623 = scmp.eq.s32.totalorder %s76, 1
    %p624 = por %p622, %p623
    %p626 = scmp.ne.s32.totalorder %s611, %s625
    %p627 = scmp.eq.s32.totalorder %s76, 0
    %p628 = por %p626, %p627
    %s630 = sadd.s32 %s629, 1
    %p633 = scmp.eq.s32.totalorder %s70, 1
    %p634 = scmp.ne.s32.totalorder %s629, %s631
    %p635 = scmp.eq.s32.totalorder %s70, 0
    %p636 = por %p634, %p635
    %p637 = scmp.ne.s32.totalorder %s629, %s631
    %p638 = scmp.eq.s32.totalorder %s75, 1
    %p639 = por %p637, %p638
    %p640 = scmp.ne.s32.totalorder %s631, %s632
    %p641 = scmp.eq.s32.totalorder %s75, 0
    %p642 = por %p640, %p641
    %p643 = scmp.ne.s32.totalorder %s631, %s632
    %p644 = scmp.eq.s32.totalorder %s76, 1
    %p645 = por %p643, %p644
    %p647 = scmp.ne.s32.totalorder %s632, %s646
    %p648 = scmp.eq.s32.totalorder %s76, 0
    %p649 = por %p647, %p648
    %s651 = sadd.s32 %s650, 1
    %p654 = scmp.eq.s32.totalorder %s70, 1
    %p655 = scmp.ne.s32.totalorder %s650, %s652
    %p656 = scmp.eq.s32.totalorder %s70, 0
    %p657 = por %p655, %p656
    %p658 = scmp.ne.s32.totalorder %s650, %s652
    %p659 = scmp.eq.s32.totalorder %s75, 1
    %p660 = por %p658, %p659
    %p661 = scmp.ne.s32.totalorder %s652, %s653
    %p662 = scmp.eq.s32.totalorder %s75, 0
    %p663 = por %p661, %p662
    %p664 = scmp.ne.s32.totalorder %s652, %s653
    %p665 = scmp.eq.s32.totalorder %s76, 1
    %p666 = por %p664, %p665
    %p668 = scmp.ne.s32.totalorder %s653, %s667
    %p669 = scmp.eq.s32.totalorder %s76, 0
    %p670 = por %p668, %p669
    %s672 = sadd.s32 %s671, 1
    %p675 = scmp.eq.s32.totalorder %s70, 1
    %p676 = scmp.ne.s32.totalorder %s671, %s673
    %p677 = scmp.eq.s32.totalorder %s70, 0
    %p678 = por %p676, %p677
    %p679 = scmp.ne.s32.totalorder %s671, %s673
    %p680 = scmp.eq.s32.totalorder %s75, 1
    %p681 = por %p679, %p680
    %p682 = scmp.ne.s32.totalorder %s673, %s674
    %p683 = scmp.eq.s32.totalorder %s75, 0
    %p684 = por %p682, %p683
    %p685 = scmp.ne.s32.totalorder %s673, %s674
    %p686 = scmp.eq.s32.totalorder %s76, 1
    %p687 = por %p685, %p686
    %p689 = scmp.ne.s32.totalorder %s674, %s688
    %p690 = scmp.eq.s32.totalorder %s76, 0
    %p691 = por %p689, %p690
    %s693 = sadd.s32 %s692, 1
    %p696 = scmp.eq.s32.totalorder %s70, 1
    %p697 = scmp.ne.s32.totalorder %s692, %s694
    %p698 = scmp.eq.s32.totalorder %s70, 0
    %p699 = por %p697, %p698
    %p700 = scmp.ne.s32.totalorder %s692, %s694
    %p701 = scmp.eq.s32.totalorder %s75, 1
    %p702 = por %p700, %p701
    %p703 = scmp.ne.s32.totalorder %s694, %s695
    %p704 = scmp.eq.s32.totalorder %s75, 0
    %p705 = por %p703, %p704
    %p706 = scmp.ne.s32.totalorder %s694, %s695
    %p707 = scmp.eq.s32.totalorder %s76, 1
    %p708 = por %p706, %p707
    %p710 = scmp.ne.s32.totalorder %s695, %s709
    %p711 = scmp.eq.s32.totalorder %s76, 0
    %p712 = por %p710, %p711
    %s713 = ssub.s32 %s70, %s77
    %p714 = scmp.eq.s32.totalorder %s713, 0
    %s716 = sadd.s32 %s715, 1
    %s717 = scalar_select %p714, %s715, %s716
    %p720 = pneg %p714
    %p721 = scmp.eq.s32.totalorder %s70, 1
    %p722 = por %p720, %p721
    %p723 = scmp.ne.s32.totalorder %s715, %s718
    %p724 = scmp.eq.s32.totalorder %s70, 0
    %p725 = por %p723, %p724
    %p726 = scmp.ne.s32.totalorder %s715, %s718
    %p727 = scmp.eq.s32.totalorder %s75, 1
    %p728 = por %p726, %p727
    %p729 = scmp.ne.s32.totalorder %s718, %s719
    %p730 = scmp.eq.s32.totalorder %s75, 0
    %p731 = por %p729, %p730
    %p732 = scmp.ne.s32.totalorder %s718, %s719
    %p733 = scmp.eq.s32.totalorder %s76, 1
    %p734 = por %p732, %p733
    %p736 = scmp.ne.s32.totalorder %s719, %s735
    %p737 = scmp.eq.s32.totalorder %s76, 0
    %p738 = por %p736, %p737
    %s739 = ssub.s32 %s70, %s77
    %p740 = scmp.eq.s32.totalorder %s739, 0
    %s742 = sadd.s32 %s741, 1
    %s743 = scalar_select %p740, %s741, %s742
    %p746 = pneg %p740
    %p747 = scmp.eq.s32.totalorder %s70, 1
    %p748 = por %p746, %p747
    %p749 = scmp.ne.s32.totalorder %s741, %s744
    %p750 = scmp.eq.s32.totalorder %s70, 0
    %p751 = por %p749, %p750
    %p752 = scmp.ne.s32.totalorder %s741, %s744
    %p753 = scmp.eq.s32.totalorder %s75, 1
    %p754 = por %p752, %p753
    %p755 = scmp.ne.s32.totalorder %s744, %s745
    %p756 = scmp.eq.s32.totalorder %s75, 0
    %p757 = por %p755, %p756
    %p758 = scmp.ne.s32.totalorder %s744, %s745
    %p759 = scmp.eq.s32.totalorder %s76, 1
    %p760 = por %p758, %p759
    %p762 = scmp.ne.s32.totalorder %s745, %s761
    %p763 = scmp.eq.s32.totalorder %s76, 0
    %p764 = por %p762, %p763
    %p765 = scmp.le.s32.totalorder 1, %s70
    %p766 = scmp.lt.s32.totalorder %s70, 3
    %p767 = pnand %p765, %p766
    %p768 = pneg %p767
    // Predicated region
    $region9: #{forward.1} parent=5 // pred_check
      _
    $region10: #{forward.1} parent=5 // pred_check_branch
      %770 = sbr.rel (%p767) target = $region12
    $region11: #{forward.1} parent=5 // pred_region
      %s771 = ssub.s32 %s70, 1
      // Predicated region
      $region13: #{forward.1} parent=11 // pred_check
        %p772 = pneg %p117
      $region14: #{forward.1} parent=11 // pred_check_branch
        %774 = sbr.rel (%p772) target = $region16
      $region15: #{forward.1} parent=11 // pred_region
        _
      $region16: #{forward.1} parent=11 // pred_fallthru
        _
      // Predicated region
      $region17: #{forward.1} parent=11 // pred_check
        %p775 = pneg %p138
      $region18: #{forward.1} parent=11 // pred_check_branch
        %777 = sbr.rel (%p775) target = $region20
      $region19: #{forward.1} parent=11 // pred_region
        _
      $region20: #{forward.1} parent=11 // pred_fallthru
        _
      // Predicated region
      $region21: #{forward.1} parent=11 // pred_check
        %p778 = pneg %p159
      $region22: #{forward.1} parent=11 // pred_check_branch
        %780 = sbr.rel (%p778) target = $region24
      $region23: #{forward.1} parent=11 // pred_region
        _
      $region24: #{forward.1} parent=11 // pred_fallthru
        _
      // Predicated region
      $region25: #{forward.1} parent=11 // pred_check
        %p781 = pneg %p180
      $region26: #{forward.1} parent=11 // pred_check_branch
        %783 = sbr.rel (%p781) target = $region28
      $region27: #{forward.1} parent=11 // pred_region
        _
      $region28: #{forward.1} parent=11 // pred_fallthru
        _
      // Predicated region
      $region29: #{forward.1} parent=11 // pred_check
        %p784 = pneg %p201
      $region30: #{forward.1} parent=11 // pred_check_branch
        %786 = sbr.rel (%p784) target = $region32
      $region31: #{forward.1} parent=11 // pred_region
        _
      $region32: #{forward.1} parent=11 // pred_fallthru
        _
      // Predicated region
      $region33: #{forward.1} parent=11 // pred_check
        %p787 = pneg %p222
      $region34: #{forward.1} parent=11 // pred_check_branch
        %789 = sbr.rel (%p787) target = $region36
      $region35: #{forward.1} parent=11 // pred_region
        _
      $region36: #{forward.1} parent=11 // pred_fallthru
        _
      // Predicated region
      $region37: #{forward.1} parent=11 // pred_check
        %p790 = pneg %p243
      $region38: #{forward.1} parent=11 // pred_check_branch
        %792 = sbr.rel (%p790) target = $region40
      $region39: #{forward.1} parent=11 // pred_region
        _
      $region40: #{forward.1} parent=11 // pred_fallthru
        _
      // Predicated region
      $region41: #{forward.1} parent=11 // pred_check
        %p793 = pneg %p264
      $region42: #{forward.1} parent=11 // pred_check_branch
        %795 = sbr.rel (%p793) target = $region44
      $region43: #{forward.1} parent=11 // pred_region
        _
      $region44: #{forward.1} parent=11 // pred_fallthru
        _
      // Predicated region
      $region45: #{forward.1} parent=11 // pred_check
        %p796 = pneg %p285
      $region46: #{forward.1} parent=11 // pred_check_branch
        %798 = sbr.rel (%p796) target = $region48
      $region47: #{forward.1} parent=11 // pred_region
        _
      $region48: #{forward.1} parent=11 // pred_fallthru
        _
      // Predicated region
      $region49: #{forward.1} parent=11 // pred_check
        %p799 = pneg %p306
      $region50: #{forward.1} parent=11 // pred_check_branch
        %801 = sbr.rel (%p799) target = $region52
      $region51: #{forward.1} parent=11 // pred_region
        _
      $region52: #{forward.1} parent=11 // pred_fallthru
        _
      // Predicated region
      $region53: #{forward.1} parent=11 // pred_check
        %p802 = pneg %p327
      $region54: #{forward.1} parent=11 // pred_check_branch
        %804 = sbr.rel (%p802) target = $region56
      $region55: #{forward.1} parent=11 // pred_region
        _
      $region56: #{forward.1} parent=11 // pred_fallthru
        _
      // Predicated region
      $region57: #{forward.1} parent=11 // pred_check
        %p805 = pneg %p348
      $region58: #{forward.1} parent=11 // pred_check_branch
        %807 = sbr.rel (%p805) target = $region60
      $region59: #{forward.1} parent=11 // pred_region
        _
      $region60: #{forward.1} parent=11 // pred_fallthru
        _
      // Predicated region
      $region61: #{forward.1} parent=11 // pred_check
        %p808 = pneg %p369
      $region62: #{forward.1} parent=11 // pred_check_branch
        %810 = sbr.rel (%p808) target = $region64
      $region63: #{forward.1} parent=11 // pred_region
        _
      $region64: #{forward.1} parent=11 // pred_fallthru
        _
      // Predicated region
      $region65: #{forward.1} parent=11 // pred_check
        %p811 = pneg %p390
      $region66: #{forward.1} parent=11 // pred_check_branch
        %813 = sbr.rel (%p811) target = $region68
      $region67: #{forward.1} parent=11 // pred_region
        _
      $region68: #{forward.1} parent=11 // pred_fallthru
        _
      // Predicated region
      $region69: #{forward.1} parent=11 // pred_check
        %p814 = pneg %p411
      $region70: #{forward.1} parent=11 // pred_check_branch
        %816 = sbr.rel (%p814) target = $region72
      $region71: #{forward.1} parent=11 // pred_region
        _
      $region72: #{forward.1} parent=11 // pred_fallthru
        _
      // Predicated region
      $region73: #{forward.1} parent=11 // pred_check
        %p817 = pneg %p432
      $region74: #{forward.1} parent=11 // pred_check_branch
        %819 = sbr.rel (%p817) target = $region76
      $region75: #{forward.1} parent=11 // pred_region
        _
      $region76: #{forward.1} parent=11 // pred_fallthru
        _
      // Predicated region
      $region77: #{forward.1} parent=11 // pred_check
        %p820 = pneg %p453
      $region78: #{forward.1} parent=11 // pred_check_branch
        %822 = sbr.rel (%p820) target = $region80
      $region79: #{forward.1} parent=11 // pred_region
        _
      $region80: #{forward.1} parent=11 // pred_fallthru
        _
      // Predicated region
      $region81: #{forward.1} parent=11 // pred_check
        %p823 = pneg %p474
      $region82: #{forward.1} parent=11 // pred_check_branch
        %825 = sbr.rel (%p823) target = $region84
      $region83: #{forward.1} parent=11 // pred_region
        _
      $region84: #{forward.1} parent=11 // pred_fallthru
        _
      // Predicated region
      $region85: #{forward.1} parent=11 // pred_check
        %p826 = pneg %p495
      $region86: #{forward.1} parent=11 // pred_check_branch
        %828 = sbr.rel (%p826) target = $region88
      $region87: #{forward.1} parent=11 // pred_region
        _
      $region88: #{forward.1} parent=11 // pred_fallthru
        _
      // Predicated region
      $region89: #{forward.1} parent=11 // pred_check
        %p829 = pneg %p516
      $region90: #{forward.1} parent=11 // pred_check_branch
        %831 = sbr.rel (%p829) target = $region92
      $region91: #{forward.1} parent=11 // pred_region
        _
      $region92: #{forward.1} parent=11 // pred_fallthru
        _
      // Predicated region
      $region93: #{forward.1} parent=11 // pred_check
        %p832 = pneg %p537
      $region94: #{forward.1} parent=11 // pred_check_branch
        %834 = sbr.rel (%p832) target = $region96
      $region95: #{forward.1} parent=11 // pred_region
        _
      $region96: #{forward.1} parent=11 // pred_fallthru
        _
      // Predicated region
      $region97: #{forward.1} parent=11 // pred_check
        %p835 = pneg %p558
      $region98: #{forward.1} parent=11 // pred_check_branch
        %837 = sbr.rel (%p835) target = $region100
      $region99: #{forward.1} parent=11 // pred_region
        _
      $region100: #{forward.1} parent=11 // pred_fallthru
        _
      // Predicated region
      $region101: #{forward.1} parent=11 // pred_check
        %p838 = pneg %p579
      $region102: #{forward.1} parent=11 // pred_check_branch
        %840 = sbr.rel (%p838) target = $region104
      $region103: #{forward.1} parent=11 // pred_region
        _
      $region104: #{forward.1} parent=11 // pred_fallthru
        _
      // Predicated region
      $region105: #{forward.1} parent=11 // pred_check
        %p841 = pneg %p600
      $region106: #{forward.1} parent=11 // pred_check_branch
        %843 = sbr.rel (%p841) target = $region108
      $region107: #{forward.1} parent=11 // pred_region
        _
      $region108: #{forward.1} parent=11 // pred_fallthru
        _
      // Predicated region
      $region109: #{forward.1} parent=11 // pred_check
        %p844 = pneg %p621
      $region110: #{forward.1} parent=11 // pred_check_branch
        %846 = sbr.rel (%p844) target = $region112
      $region111: #{forward.1} parent=11 // pred_region
        _
      $region112: #{forward.1} parent=11 // pred_fallthru
        _
      // Predicated region
      $region113: #{forward.1} parent=11 // pred_check
        %p847 = pneg %p642
      $region114: #{forward.1} parent=11 // pred_check_branch
        %849 = sbr.rel (%p847) target = $region116
      $region115: #{forward.1} parent=11 // pred_region
        _
      $region116: #{forward.1} parent=11 // pred_fallthru
        _
      // Predicated region
      $region117: #{forward.1} parent=11 // pred_check
        %p850 = pneg %p663
      $region118: #{forward.1} parent=11 // pred_check_branch
        %852 = sbr.rel (%p850) target = $region120
      $region119: #{forward.1} parent=11 // pred_region
        _
      $region120: #{forward.1} parent=11 // pred_fallthru
        _
      // Predicated region
      $region121: #{forward.1} parent=11 // pred_check
        %p853 = pneg %p684
      $region122: #{forward.1} parent=11 // pred_check_branch
        %855 = sbr.rel (%p853) target = $region124
      $region123: #{forward.1} parent=11 // pred_region
        _
      $region124: #{forward.1} parent=11 // pred_fallthru
        _
      // Predicated region
      $region125: #{forward.1} parent=11 // pred_check
        %p856 = pneg %p705
      $region126: #{forward.1} parent=11 // pred_check_branch
        %858 = sbr.rel (%p856) target = $region128
      $region127: #{forward.1} parent=11 // pred_region
        _
      $region128: #{forward.1} parent=11 // pred_fallthru
        _
    $region12: #{forward.1} parent=5 // pred_fallthru
      _
    %p859 = scmp.lt.s32.totalorder %s70, 2
    // Predicated region
    $region129: #{forward.1} parent=5 // pred_check
      %p860 = pneg %p859
    $region130: #{forward.1} parent=5 // pred_check_branch
      %862 = sbr.rel (%p860) target = $region132
    $region131: #{forward.1} parent=5 // pred_region
      // Predicated region
      $region133: #{forward.1} parent=131 // pred_check
        %p863 = pneg %p90
      $region134: #{forward.1} parent=131 // pred_check_branch
        %865 = sbr.rel (%p863) target = $region136
      $region135: #{forward.1} parent=131 // pred_region
        %p866 = scmp.lt.s32.totalorder %s70, 1
        %s867 = scalar_select %p866, %s70, 1
        %s868 = smul.addr %s867, 4
        %s869 = smul.addr %s868, 4
        %s870 = scalar_lea.vmem %s1, %s869
      $region136: #{forward.1} parent=131 // pred_fallthru
        _
    $region132: #{forward.1} parent=5 // pred_fallthru
      _
    %p871 = scmp.le.s32.totalorder 1, %s70
    %p872 = scmp.lt.s32.totalorder %s70, 3
    %p873 = pnand %p871, %p872
    %p874 = pneg %p873
    // Predicated region
    $region137: #{forward.1} parent=5 // pred_check
      _
    $region138: #{forward.1} parent=5 // pred_check_branch
      %876 = sbr.rel (%p873) target = $region140
    $region139: #{forward.1} parent=5 // pred_region
      %s877 = ssub.s32 %s70, 1
      %p878 = scmp.lt.s32.totalorder %s75, 1
      %s879 = scalar_select %p878, %s75, 1
      %s880 = smul.addr %s879, 4
      %s881 = smul.addr %s880, 4
      %s882 = scalar_lea.vmem %s1, %s881
      %p883 = pneg %p96
      %p884 = pneg %p93
      %p885 = pneg %p117
      %p886 = pneg %p114
      %p887 = pneg %p138
      %p888 = pneg %p135
      %p889 = pneg %p159
      %p890 = pneg %p156
      %p891 = pneg %p180
      %p892 = pneg %p177
      %p893 = pneg %p201
      %p894 = pneg %p198
      %p895 = pneg %p222
      %p896 = pneg %p219
      %p897 = pneg %p243
      %p898 = pneg %p240
      %p899 = pneg %p264
      %p900 = pneg %p261
      %p901 = pneg %p285
      %p902 = pneg %p282
      %p903 = pneg %p306
      %p904 = pneg %p303
      %p905 = pneg %p327
      %p906 = pneg %p324
      %p907 = pneg %p348
      %p908 = pneg %p345
      %p909 = pneg %p369
      %p910 = pneg %p366
      %p911 = pneg %p390
      %p912 = pneg %p387
      %p913 = pneg %p411
      %p914 = pneg %p408
      %p915 = pneg %p432
      %p916 = pneg %p429
      %p917 = pneg %p453
      %p918 = pneg %p450
      %p919 = pneg %p474
      %p920 = pneg %p471
      %p921 = pneg %p495
      %p922 = pneg %p492
      %p923 = pneg %p516
      %p924 = pneg %p513
      %p925 = pneg %p537
      %p926 = pneg %p534
      %p927 = pneg %p558
      %p928 = pneg %p555
      %p929 = pneg %p579
      %p930 = pneg %p576
      %p931 = pneg %p600
      %p932 = pneg %p597
      %p933 = pneg %p621
      %p934 = pneg %p618
      %p935 = pneg %p642
      %p936 = pneg %p639
      %p937 = pneg %p663
      %p938 = pneg %p660
      %p939 = pneg %p684
      %p940 = pneg %p681
      %p941 = pneg %p705
      %p942 = pneg %p702
      %p943 = pneg %p731
      %p944 = pneg %p728
      %p945 = scmp.lt.s32.totalorder %s75, 1
      %s946 = scalar_select %p945, %s75, 1
      %s947 = smul.addr %s946, 6
      %s948 = smul.addr %s947, 8
      %s949 = scalar_lea.vmem %s61, %s948
      %p950 = pneg %p757
      %p951 = pneg %p754
      %p952 = scmp.lt.s32.totalorder %s75, 1
      %s953 = scalar_select %p952, %s75, 1
      %s954 = smul.addr %s953, 2
      %s955 = smul.addr %s954, 8
      %s956 = scalar_lea.vmem %s63, %s955
      %p957 = scmp.lt.s32.totalorder %s75, 1
      %s958 = scalar_select %p957, %s75, 1
      %s959 = smul.addr %s958, 4
      %s960 = smul.addr %s959, 4
      %s961 = scalar_lea.vmem %s1, %s960
      %p962 = scmp.lt.s32.totalorder %s75, 1
      %s963 = scalar_select %p962, %s75, 1
      %s964 = smul.addr %s963, 6
      %s965 = smul.addr %s964, 8
      %s966 = scalar_lea.vmem %s61, %s965
      %p967 = scmp.lt.s32.totalorder %s75, 1
      %s968 = scalar_select %p967, %s75, 1
      %s969 = smul.addr %s968, 2
      %s970 = smul.addr %s969, 8
      %s971 = scalar_lea.vmem %s63, %s970
      %v973 = vld [vmem:[%s961] sm:$0xff]
      %v974 = vld [vmem:[%s961 + $0x8] sm:$0xff]
      %v975 = vlaneseq
      %v976 = vshrl.u32 %v975, 7
      %v977 = vlaneseq
      %v978 = vand.u32 %v977, 127
      %v979 = vmul.u32 %v976, 2
      %v980 = vsub.s32 %v979, 1
      %vm981 = vcmp.eq.s32.totalorder %v978, %v980
      %v982 = vsel %vm981, 1.0, 0.0
      %v983 = vpack.c.bf16 %v982, %v982
      %v986 = vunpack.c.l.b16 %v973
      %v987 = vunpack.c.h.b16 %v973
      %v988 = vunpack.c.l.b16 %v974
      %v989 = vunpack.c.h.b16 %v974
      %v990 = vpack.c.b16 %v988, %v986
      %v991 = vpack.c.b16 %v989, %v987
      %vm994 = vcmask 130048
      %v996 = vsel %vm994, %v983, 0
      %998 = vmatprep.subr.bf16.mxu0 %v991
      %999 = vmatpush1.bf16.msra.mxu0 %v990
      %1000 = vmatprep.subr.bf16.mxu0 0
      %1001 = vmatpush1.bf16.msra.mxu0 0
      %1002 = vmatprep.subr.bf16.mxu0 0
      %1003 = vmatpush1.bf16.msra.mxu0 0
      %1004 = vmatprep.subr.bf16.mxu0 0
      %1005 = vmatpush1.bf16.msra.mxu0 0
      %1006 = vmatprep.subr.bf16.mxu0 0
      %1007 = vmatpush1.bf16.msra.mxu0 0
      %1008 = vmatprep.subr.bf16.mxu0 0
      %1009 = vmatpush1.bf16.msra.mxu0 0
      %1010 = vmatprep.subr.bf16.mxu0 0
      %1011 = vmatpush1.bf16.msra.mxu0 0
      %1012 = vmatprep.subr.bf16.mxu0 0
      %1013 = vmatpush1.bf16.msra.mxu0 0
      %1014 = vmatprep.subr.bf16.mxu0 0
      %1015 = vmatpush1.bf16.msra.mxu0 0
      %1016 = vmatprep.subr.bf16.mxu0 0
      %1017 = vmatpush1.bf16.msra.mxu0 0
      %1018 = vmatprep.subr.bf16.mxu0 0
      %1019 = vmatpush1.bf16.msra.mxu0 0
      %1020 = vmatprep.subr.bf16.mxu0 0
      %1021 = vmatpush1.bf16.msra.mxu0 0
      %1022 = vmatprep.subr.bf16.mxu0 0
      %1023 = vmatpush1.bf16.msra.mxu0 0
      %1024 = vmatprep.subr.bf16.mxu0 0
      %1025 = vmatpush1.bf16.msra.mxu0 0
      %1026 = vmatprep.subr.bf16.mxu0 0
      %1027 = vmatpush1.bf16.msra.mxu0 0
      %1028 = vmatprep.subr.bf16.mxu0 0
      %1029 = vmatpush1.bf16.msra.mxu0 0
      %1030 = vmatprep.mubr.bf16.mxu0 0
      %1031 = vmatmul.mubr.bf16.gmra.mrb[0].mxu0 %v996
      %v1032 = vpop.f32.mrb[0].mxu0
      %v1033 = vadd.f32 0.0, %v1032
      %v1034 = vpop.f32.mrb[0].mxu0
      %v1035 = vadd.f32 0.0, %v1034
      %v1036 = vpop.f32.mrb[0].mxu0
      %v1037 = vpop.f32.mrb[0].mxu0
      %1038 = vdwg.mxu0
      %v1039 = vpack.c.bf16 %v1033, %v1033
      %v1040 = vpack.c.bf16 %v1035, %v1035
      %vm1041 = vcmp.eq.s32.totalorder %v978, %v979
      %v1042 = vsel %vm1041, 1.0, 0.0
      %v1043 = vpack.c.bf16 %v1042, %v1042
      %v1045 = vsel %vm994, %v1043, 0
      %1047 = vmatprep.subr.bf16.mxu0 %v991
      %1048 = vmatpush1.bf16.msra.mxu0 %v990
      %1049 = vmatprep.subr.bf16.mxu0 0
      %1050 = vmatpush1.bf16.msra.mxu0 0
      %1051 = vmatprep.subr.bf16.mxu0 0
      %1052 = vmatpush1.bf16.msra.mxu0 0
      %1053 = vmatprep.subr.bf16.mxu0 0
      %1054 = vmatpush1.bf16.msra.mxu0 0
      %1055 = vmatprep.subr.bf16.mxu0 0
      %1056 = vmatpush1.bf16.msra.mxu0 0
      %1057 = vmatprep.subr.bf16.mxu0 0
      %1058 = vmatpush1.bf16.msra.mxu0 0
      %1059 = vmatprep.subr.bf16.mxu0 0
      %1060 = vmatpush1.bf16.msra.mxu0 0
      %1061 = vmatprep.subr.bf16.mxu0 0
      %1062 = vmatpush1.bf16.msra.mxu0 0
      %1063 = vmatprep.subr.bf16.mxu0 0
      %1064 = vmatpush1.bf16.msra.mxu0 0
      %1065 = vmatprep.subr.bf16.mxu0 0
      %1066 = vmatpush1.bf16.msra.mxu0 0
      %1067 = vmatprep.subr.bf16.mxu0 0
      %1068 = vmatpush1.bf16.msra.mxu0 0
      %1069 = vmatprep.subr.bf16.mxu0 0
      %1070 = vmatpush1.bf16.msra.mxu0 0
      %1071 = vmatprep.subr.bf16.mxu0 0
      %1072 = vmatpush1.bf16.msra.mxu0 0
      %1073 = vmatprep.subr.bf16.mxu0 0
      %1074 = vmatpush1.bf16.msra.mxu0 0
      %1075 = vmatprep.subr.bf16.mxu0 0
      %1076 = vmatpush1.bf16.msra.mxu0 0
      %1077 = vmatprep.subr.bf16.mxu0 0
      %1078 = vmatpush1.bf16.msra.mxu0 0
      %1079 = vmatprep.mubr.bf16.mxu0 0
      %1080 = vmatmul.mubr.bf16.gmra.mrb[0].mxu0 %v1045
      %v1081 = vpop.f32.mrb[0].mxu0
      %v1082 = vadd.f32 0.0, %v1081
      %v1083 = vpop.f32.mrb[0].mxu0
      %v1084 = vadd.f32 0.0, %v1083
      %v1085 = vpop.f32.mrb[0].mxu0
      %v1086 = vpop.f32.mrb[0].mxu0
      %1087 = vdwg.mxu0
      %v1088 = vpack.c.bf16 %v1082, %v1082
      %v1089 = vpack.c.bf16 %v1084, %v1084
      %v1090 = vadd.s32 %v979, 2
      %v1091 = vsub.s32 %v1090, 1
      %vm1092 = vcmp.eq.s32.totalorder %v978, %v1091
      %v1093 = vsel %vm1092, 1.0, 0.0
      %v1094 = vpack.c.bf16 %v1093, %v1093
      %v1096 = vsel %vm994, %v1094, 0
      %1098 = vmatprep.subr.bf16.mxu0 %v991
      %1099 = vmatpush1.bf16.msra.mxu0 %v990
      %1100 = vmatprep.subr.bf16.mxu0 0
      %1101 = vmatpush1.bf16.msra.mxu0 0
      %1102 = vmatprep.subr.bf16.mxu0 0
      %1103 = vmatpush1.bf16.msra.mxu0 0
      %1104 = vmatprep.subr.bf16.mxu0 0
      %1105 = vmatpush1.bf16.msra.mxu0 0
      %1106 = vmatprep.subr.bf16.mxu0 0
      %1107 = vmatpush1.bf16.msra.mxu0 0
      %1108 = vmatprep.subr.bf16.mxu0 0
      %1109 = vmatpush1.bf16.msra.mxu0 0
      %1110 = vmatprep.subr.bf16.mxu0 0
      %1111 = vmatpush1.bf16.msra.mxu0 0
      %1112 = vmatprep.subr.bf16.mxu0 0
      %1113 = vmatpush1.bf16.msra.mxu0 0
      %1114 = vmatprep.subr.bf16.mxu0 0
      %1115 = vmatpush1.bf16.msra.mxu0 0
      %1116 = vmatprep.subr.bf16.mxu0 0
      %1117 = vmatpush1.bf16.msra.mxu0 0
      %1118 = vmatprep.subr.bf16.mxu0 0
      %1119 = vmatpush1.bf16.msra.mxu0 0
      %1120 = vmatprep.subr.bf16.mxu0 0
      %1121 = vmatpush1.bf16.msra.mxu0 0
      %1122 = vmatprep.subr.bf16.mxu0 0
      %1123 = vmatpush1.bf16.msra.mxu0 0
      %1124 = vmatprep.subr.bf16.mxu0 0
      %1125 = vmatpush1.bf16.msra.mxu0 0
      %1126 = vmatprep.subr.bf16.mxu0 0
      %1127 = vmatpush1.bf16.msra.mxu0 0
      %1128 = vmatprep.subr.bf16.mxu0 0
      %1129 = vmatpush1.bf16.msra.mxu0 0
      %1130 = vmatprep.mubr.bf16.mxu0 0
      %1131 = vmatmul.mubr.bf16.gmra.mrb[0].mxu0 %v1096
      %v1132 = vpop.f32.mrb[0].mxu0
      %v1133 = vadd.f32 0.0, %v1132
      %v1134 = vpop.f32.mrb[0].mxu0
      %v1135 = vadd.f32 0.0, %v1134
      %v1136 = vpop.f32.mrb[0].mxu0
      %v1137 = vpop.f32.mrb[0].mxu0
      %1138 = vdwg.mxu0
      %v1139 = vpack.c.bf16 %v1133, %v1133
      %v1140 = vpack.c.bf16 %v1135, %v1135
      %v1141 = vld [vmem:[%s3] sm:$0xf]
      %v1142 = vld [vmem:[%s3 + $0x4] sm:$0xf]
      %v1143 = vld [vmem:[%s3 + $0x8] sm:$0xf]
      %v1144 = vld [vmem:[%s3 + $0xc] sm:$0xf]
      %v1145 = vld [vmem:[%s3 + $0x10] sm:$0xf]
      %v1146 = vld [vmem:[%s3 + $0x14] sm:$0xf]
      %v1147 = vld [vmem:[%s3 + $0x18] sm:$0xf]
      %v1148 = vld [vmem:[%s3 + $0x1c] sm:$0xf]
      %v1149 = vld [vmem:[%s3 + $0x20] sm:$0xf]
      %v1150 = vld [vmem:[%s3 + $0x24] sm:$0xf]
      %v1151 = vld [vmem:[%s3 + $0x28] sm:$0xf]
      %v1152 = vld [vmem:[%s3 + $0x2c] sm:$0xf]
      %v1153 = vld [vmem:[%s3 + $0x30] sm:$0xf]
      %v1154 = vld [vmem:[%s3 + $0x34] sm:$0xf]
      %v1155 = vld [vmem:[%s3 + $0x38] sm:$0xf]
      %v1156 = vld [vmem:[%s3 + $0x3c] sm:$0xf]
      %v1157 = vld [vmem:[%s3 + $0x40] sm:$0xf]
      %v1158 = vld [vmem:[%s3 + $0x44] sm:$0xf]
      %v1159 = vld [vmem:[%s3 + $0x48] sm:$0xf]
      %v1160 = vld [vmem:[%s3 + $0x4c] sm:$0xf]
      %v1161 = vld [vmem:[%s3 + $0x50] sm:$0xf]
      %v1162 = vld [vmem:[%s3 + $0x54] sm:$0xf]
      %v1163 = vld [vmem:[%s3 + $0x58] sm:$0xf]
      %v1164 = vld [vmem:[%s3 + $0x5c] sm:$0xf]
      %v1165 = vld [vmem:[%s3 + $0x60] sm:$0xf]
      %v1166 = vld [vmem:[%s3 + $0x64] sm:$0xf]
      %v1167 = vld [vmem:[%s3 + $0x68] sm:$0xf]
      %v1168 = vld [vmem:[%s3 + $0x6c] sm:$0xf]
      %v1169 = vld [vmem:[%s3 + $0x70] sm:$0xf]
      %v1170 = vld [vmem:[%s3 + $0x74] sm:$0xf]
      %v1171 = vld [vmem:[%s3 + $0x78] sm:$0xf]
      %v1172 = vld [vmem:[%s3 + $0x7c] sm:$0xf]
      %v1173 = vld [vmem:[%s3 + $0x80] sm:$0xf]
      %v1174 = vld [vmem:[%s3 + $0x84] sm:$0xf]
      %v1175 = vld [vmem:[%s3 + $0x88] sm:$0xf]
      %v1176 = vld [vmem:[%s3 + $0x8c] sm:$0xf]
      %v1177 = vld [vmem:[%s3 + $0x90] sm:$0xf]
      %v1178 = vld [vmem:[%s3 + $0x94] sm:$0xf]
      %v1179 = vld [vmem:[%s3 + $0x98] sm:$0xf]
      %v1180 = vld [vmem:[%s3 + $0x9c] sm:$0xf]
      %v1181 = vld [vmem:[%s3 + $0xa0] sm:$0xf]
      %v1182 = vld [vmem:[%s3 + $0xa4] sm:$0xf]
      %v1183 = vld [vmem:[%s3 + $0xa8] sm:$0xf]
      %v1184 = vld [vmem:[%s3 + $0xac] sm:$0xf]
      %v1185 = vld [vmem:[%s3 + $0xb0] sm:$0xf]
      %v1186 = vld [vmem:[%s3 + $0xb4] sm:$0xf]
      %v1187 = vld [vmem:[%s3 + $0xb8] sm:$0xf]
      %v1188 = vld [vmem:[%s3 + $0xbc] sm:$0xf]
      %v1189 = vld [vmem:[%s3 + $0xc0] sm:$0xf]
      %v1190 = vld [vmem:[%s3 + $0xc4] sm:$0xf]
      %v1191 = vld [vmem:[%s3 + $0xc8] sm:$0xf]
      %v1192 = vld [vmem:[%s3 + $0xcc] sm:$0xf]
      %v1193 = vld [vmem:[%s3 + $0xd0] sm:$0xf]
      %v1194 = vld [vmem:[%s3 + $0xd4] sm:$0xf]
      %v1195 = vld [vmem:[%s3 + $0xd8] sm:$0xf]
      %v1196 = vld [vmem:[%s3 + $0xdc] sm:$0xf]
      %v1197 = vld [vmem:[%s3 + $0xe0] sm:$0xf]
      %v1198 = vld [vmem:[%s3 + $0xe4] sm:$0xf]
      %v1199 = vld [vmem:[%s3 + $0xe8] sm:$0xf]
      %v1200 = vld [vmem:[%s3 + $0xec] sm:$0xf]
      %v1201 = vld [vmem:[%s3 + $0xf0] sm:$0xf]
      %v1202 = vld [vmem:[%s3 + $0xf4] sm:$0xf]
      %v1203 = vld [vmem:[%s3 + $0xf8] sm:$0xf]
      %v1204 = vld [vmem:[%s3 + $0xfc] sm:$0xf]
      %v1205 = vld [vmem:[%s3 + $0x100] sm:$0xf]
      %v1206 = vld [vmem:[%s3 + $0x104] sm:$0xf]
      %v1207 = vld [vmem:[%s3 + $0x108] sm:$0xf]
      %v1208 = vld [vmem:[%s3 + $0x10c] sm:$0xf]
      %v1209 = vld [vmem:[%s3 + $0x110] sm:$0xf]
      %v1210 = vld [vmem:[%s3 + $0x114] sm:$0xf]
      %v1211 = vld [vmem:[%s3 + $0x118] sm:$0xf]
      %v1212 = vld [vmem:[%s3 + $0x11c] sm:$0xf]
      %v1213 = vld [vmem:[%s3 + $0x120] sm:$0xf]
      %v1214 = vld [vmem:[%s3 + $0x124] sm:$0xf]
      %v1215 = vld [vmem:[%s3 + $0x128] sm:$0xf]
      %v1216 = vld [vmem:[%s3 + $0x12c] sm:$0xf]
      %v1217 = vld [vmem:[%s3 + $0x130] sm:$0xf]
      %v1218 = vld [vmem:[%s3 + $0x134] sm:$0xf]
      %v1219 = vld [vmem:[%s3 + $0x138] sm:$0xf]
      %v1220 = vld [vmem:[%s3 + $0x13c] sm:$0xf]
      %v1221 = vld [vmem:[%s3 + $0x140] sm:$0xf]
      %v1222 = vld [vmem:[%s3 + $0x144] sm:$0xf]
      %v1223 = vld [vmem:[%s3 + $0x148] sm:$0xf]
      %v1224 = vld [vmem:[%s3 + $0x14c] sm:$0xf]
      %v1225 = vld [vmem:[%s3 + $0x150] sm:$0xf]
      %v1226 = vld [vmem:[%s3 + $0x154] sm:$0xf]
      %v1227 = vld [vmem:[%s3 + $0x158] sm:$0xf]
      %v1228 = vld [vmem:[%s3 + $0x15c] sm:$0xf]
      %v1229 = vld [vmem:[%s3 + $0x160] sm:$0xf]
      %v1230 = vld [vmem:[%s3 + $0x164] sm:$0xf]
      %v1231 = vld [vmem:[%s3 + $0x168] sm:$0xf]
      %v1232 = vld [vmem:[%s3 + $0x16c] sm:$0xf]
      %v1233 = vld [vmem:[%s3 + $0x170] sm:$0xf]
      %v1234 = vld [vmem:[%s3 + $0x174] sm:$0xf]
      %v1235 = vld [vmem:[%s3 + $0x178] sm:$0xf]
      %v1236 = vld [vmem:[%s3 + $0x17c] sm:$0xf]
      %v1333 = vunpack.c.l.b16 %v1141
      %v1334 = vunpack.c.l.b16 %v1142
      %v1335 = vunpack.c.l.b16 %v1143
      %v1336 = vunpack.c.l.b16 %v1144
      %v1337 = vunpack.c.l.b16 %v1145
      %v1338 = vunpack.c.l.b16 %v1146
      %v1339 = vunpack.c.l.b16 %v1147
      %v1340 = vunpack.c.l.b16 %v1148
      %v1341 = vunpack.c.l.b16 %v1149
      %v1342 = vunpack.c.l.b16 %v1150
      %v1343 = vunpack.c.l.b16 %v1151
      %v1344 = vunpack.c.l.b16 %v1152
      %v1345 = vunpack.c.l.b16 %v1153
      %v1346 = vunpack.c.l.b16 %v1154
      %v1347 = vunpack.c.l.b16 %v1155
      %v1348 = vunpack.c.l.b16 %v1156
      %v1349 = vunpack.c.l.b16 %v1157
      %v1350 = vunpack.c.l.b16 %v1158
      %v1351 = vunpack.c.l.b16 %v1159
      %v1352 = vunpack.c.l.b16 %v1160
      %v1353 = vunpack.c.l.b16 %v1161
      %v1354 = vunpack.c.l.b16 %v1162
      %v1355 = vunpack.c.l.b16 %v1163
      %v1356 = vunpack.c.l.b16 %v1164
      %v1357 = vunpack.c.l.b16 %v1165
      %v1358 = vunpack.c.l.b16 %v1166
      %v1359 = vunpack.c.l.b16 %v1167
      %v1360 = vunpack.c.l.b16 %v1168
      %v1361 = vunpack.c.l.b16 %v1169
      %v1362 = vunpack.c.l.b16 %v1170
      %v1363 = vunpack.c.l.b16 %v1171
      %v1364 = vunpack.c.l.b16 %v1172
      %v1365 = vunpack.c.l.b16 %v1173
      %v1366 = vunpack.c.l.b16 %v1174
      %v1367 = vunpack.c.l.b16 %v1175
      %v1368 = vunpack.c.l.b16 %v1176
      %v1369 = vunpack.c.l.b16 %v1177
      %v1370 = vunpack.c.l.b16 %v1178
      %v1371 = vunpack.c.l.b16 %v1179
      %v1372 = vunpack.c.l.b16 %v1180
      %v1373 = vunpack.c.l.b16 %v1181
      %v1374 = vunpack.c.l.b16 %v1182
      %v1375 = vunpack.c.l.b16 %v1183
      %v1376 = vunpack.c.l.b16 %v1184
      %v1377 = vunpack.c.l.b16 %v1185
      %v1378 = vunpack.c.l.b16 %v1186
      %v1379 = vunpack.c.l.b16 %v1187
      %v1380 = vunpack.c.l.b16 %v1188
      %v1381 = vunpack.c.l.b16 %v1189
      %v1382 = vunpack.c.l.b16 %v1190
      %v1383 = vunpack.c.l.b16 %v1191
      %v1384 = vunpack.c.l.b16 %v1192
      %v1385 = vunpack.c.l.b16 %v1193
      %v1386 = vunpack.c.l.b16 %v1194
      %v1387 = vunpack.c.l.b16 %v1195
      %v1388 = vunpack.c.l.b16 %v1196
      %v1389 = vunpack.c.l.b16 %v1197
      %v1390 = vunpack.c.l.b16 %v1198
      %v1391 = vunpack.c.l.b16 %v1199
      %v1392 = vunpack.c.l.b16 %v1200
      %v1393 = vunpack.c.l.b16 %v1201
      %v1394 = vunpack.c.l.b16 %v1202
      %v1395 = vunpack.c.l.b16 %v1203
      %v1396 = vunpack.c.l.b16 %v1204
      %v1397 = vunpack.c.l.b16 %v1205
      %v1398 = vunpack.c.l.b16 %v1206
      %v1399 = vunpack.c.l.b16 %v1207
      %v1400 = vunpack.c.l.b16 %v1208
      %v1401 = vunpack.c.l.b16 %v1209
      %v1402 = vunpack.c.l.b16 %v1210
      %v1403 = vunpack.c.l.b16 %v1211
      %v1404 = vunpack.c.l.b16 %v1212
      %v1405 = vunpack.c.l.b16 %v1213
      %v1406 = vunpack.c.l.b16 %v1214
      %v1407 = vunpack.c.l.b16 %v1215
      %v1408 = vunpack.c.l.b16 %v1216
      %v1409 = vunpack.c.l.b16 %v1217
      %v1410 = vunpack.c.l.b16 %v1218
      %v1411 = vunpack.c.l.b16 %v1219
      %v1412 = vunpack.c.l.b16 %v1220
      %v1413 = vunpack.c.l.b16 %v1221
      %v1414 = vunpack.c.l.b16 %v1222
      %v1415 = vunpack.c.l.b16 %v1223
      %v1416 = vunpack.c.l.b16 %v1224
      %v1417 = vunpack.c.l.b16 %v1225
      %v1418 = vunpack.c.l.b16 %v1226
      %v1419 = vunpack.c.l.b16 %v1227
      %v1420 = vunpack.c.l.b16 %v1228
      %v1421 = vunpack.c.l.b16 %v1229
      %v1422 = vunpack.c.l.b16 %v1230
      %v1423 = vunpack.c.l.b16 %v1231
      %v1424 = vunpack.c.l.b16 %v1232
      %v1425 = vunpack.c.l.b16 %v1233
      %v1426 = vunpack.c.l.b16 %v1234
      %v1427 = vunpack.c.l.b16 %v1235
      %v1428 = vunpack.c.l.b16 %v1236
      %v1429 = vpack.c.b16 %v1334, %v1333
      %v1430 = vpack.c.b16 %v1336, %v1335
      %v1431 = vpack.c.b16 %v1338, %v1337
      %v1432 = vpack.c.b16 %v1340, %v1339
      %v1433 = vpack.c.b16 %v1342, %v1341
      %v1434 = vpack.c.b16 %v1344, %v1343
      %v1435 = vpack.c.b16 %v1346, %v1345
      %v1436 = vpack.c.b16 %v1348, %v1347
      %v1437 = vpack.c.b16 %v1350, %v1349
      %v1438 = vpack.c.b16 %v1352, %v1351
      %v1439 = vpack.c.b16 %v1354, %v1353
      %v1440 = vpack.c.b16 %v1356, %v1355
      %v1441 = vpack.c.b16 %v1358, %v1357
      %v1442 = vpack.c.b16 %v1360, %v1359
      %v1443 = vpack.c.b16 %v1362, %v1361
      %v1444 = vpack.c.b16 %v1364, %v1363
      %v1445 = vpack.c.b16 %v1366, %v1365
      %v1446 = vpack.c.b16 %v1368, %v1367
      %v1447 = vpack.c.b16 %v1370, %v1369
      %v1448 = vpack.c.b16 %v1372, %v1371
      %v1449 = vpack.c.b16 %v1374, %v1373
      %v1450 = vpack.c.b16 %v1376, %v1375
      %v1451 = vpack.c.b16 %v1378, %v1377
      %v1452 = vpack.c.b16 %v1380, %v1379
      %v1453 = vpack.c.b16 %v1382, %v1381
      %v1454 = vpack.c.b16 %v1384, %v1383
      %v1455 = vpack.c.b16 %v1386, %v1385
      %v1456 = vpack.c.b16 %v1388, %v1387
      %v1457 = vpack.c.b16 %v1390, %v1389
      %v1458 = vpack.c.b16 %v1392, %v1391
      %v1459 = vpack.c.b16 %v1394, %v1393
      %v1460 = vpack.c.b16 %v1396, %v1395
      %v1461 = vpack.c.b16 %v1398, %v1397
      %v1462 = vpack.c.b16 %v1400, %v1399
      %v1463 = vpack.c.b16 %v1402, %v1401
      %v1464 = vpack.c.b16 %v1404, %v1403
      %v1465 = vpack.c.b16 %v1406, %v1405
      %v1466 = vpack.c.b16 %v1408, %v1407
      %v1467 = vpack.c.b16 %v1410, %v1409
      %v1468 = vpack.c.b16 %v1412, %v1411
      %v1469 = vpack.c.b16 %v1414, %v1413
      %v1470 = vpack.c.b16 %v1416, %v1415
      %v1471 = vpack.c.b16 %v1418, %v1417
      %v1472 = vpack.c.b16 %v1420, %v1419
      %v1473 = vpack.c.b16 %v1422, %v1421
      %v1474 = vpack.c.b16 %v1424, %v1423
      %v1475 = vpack.c.b16 %v1426, %v1425
      %v1476 = vpack.c.b16 %v1428, %v1427
      %1525 = vmatprep.subr.bf16.mxu0 0
      %1526 = vmatpush1.bf16.msra.mxu0 %v1429
      %1527 = vmatprep.subr.bf16.mxu0 0
      %1528 = vmatpush1.bf16.msra.mxu0 %v1430
      %1529 = vmatprep.subr.bf16.mxu0 0
      %1530 = vmatpush1.bf16.msra.mxu0 %v1431
      %1531 = vmatprep.subr.bf16.mxu0 0
      %1532 = vmatpush1.bf16.msra.mxu0 %v1432
      %1533 = vmatprep.subr.bf16.mxu0 0
      %1534 = vmatpush1.bf16.msra.mxu0 %v1433
      %1535 = vmatprep.subr.bf16.mxu0 0
      %1536 = vmatpush1.bf16.msra.mxu0 %v1434
      %1537 = vmatprep.subr.bf16.mxu0 0
      %1538 = vmatpush1.bf16.msra.mxu0 %v1435
      %1539 = vmatprep.subr.bf16.mxu0 0
      %1540 = vmatpush1.bf16.msra.mxu0 %v1436
      %1541 = vmatprep.subr.bf16.mxu0 0
      %1542 = vmatpush1.bf16.msra.mxu0 %v1437
      %1543 = vmatprep.subr.bf16.mxu0 0
      %1544 = vmatpush1.bf16.msra.mxu0 %v1438
      %1545 = vmatprep.subr.bf16.mxu0 0
      %1546 = vmatpush1.bf16.msra.mxu0 %v1439
      %1547 = vmatprep.subr.bf16.mxu0 0
      %1548 = vmatpush1.bf16.msra.mxu0 %v1440
      %1549 = vmatprep.subr.bf16.mxu0 0
      %1550 = vmatpush1.bf16.msra.mxu0 %v1441
      %1551 = vmatprep.subr.bf16.mxu0 0
      %1552 = vmatpush1.bf16.msra.mxu0 %v1442
      %1553 = vmatprep.subr.bf16.mxu0 0
      %1554 = vmatpush1.bf16.msra.mxu0 %v1443
      %1555 = vmatprep.subr.bf16.mxu0 0
      %1556 = vmatpush1.bf16.msra.mxu0 %v1444
      %1557 = vmatprep.mubr.bf16.mxu0 %v1040
      %1558 = vmatmul.mubr.bf16.gmra.mrb[0].mxu0 %v1039
      %v1559 = vpop.f32.mrb[0].mxu0
      %v1560 = vadd.f32 0.0, %v1559
      %v1561 = vpop.f32.mrb[0].mxu0
      %v1562 = vpop.f32.mrb[0].mxu0
      %v1563 = vpop.f32.mrb[0].mxu0
      %1564 = vdwg.mxu0
      %1565 = vmatprep.subr.bf16.mxu0 0
      %1566 = vmatpush1.bf16.msra.mxu0 %v1445
      %1567 = vmatprep.subr.bf16.mxu0 0
      %1568 = vmatpush1.bf16.msra.mxu0 %v1446
      %1569 = vmatprep.subr.bf16.mxu0 0
      %1570 = vmatpush1.bf16.msra.mxu0 %v1447
      %1571 = vmatprep.subr.bf16.mxu0 0
      %1572 = vmatpush1.bf16.msra.mxu0 %v1448
      %1573 = vmatprep.subr.bf16.mxu0 0
      %1574 = vmatpush1.bf16.msra.mxu0 %v1449
      %1575 = vmatprep.subr.bf16.mxu0 0
      %1576 = vmatpush1.bf16.msra.mxu0 %v1450
      %1577 = vmatprep.subr.bf16.mxu0 0
      %1578 = vmatpush1.bf16.msra.mxu0 %v1451
      %1579 = vmatprep.subr.bf16.mxu0 0
      %1580 = vmatpush1.bf16.msra.mxu0 %v1452
      %1581 = vmatprep.subr.bf16.mxu0 0
      %1582 = vmatpush1.bf16.msra.mxu0 %v1453
      %1583 = vmatprep.subr.bf16.mxu0 0
      %1584 = vmatpush1.bf16.msra.mxu0 %v1454
      %1585 = vmatprep.subr.bf16.mxu0 0
      %1586 = vmatpush1.bf16.msra.mxu0 %v1455
      %1587 = vmatprep.subr.bf16.mxu0 0
      %1588 = vmatpush1.bf16.msra.mxu0 %v1456
      %1589 = vmatprep.subr.bf16.mxu0 0
      %1590 = vmatpush1.bf16.msra.mxu0 %v1457
      %1591 = vmatprep.subr.bf16.mxu0 0
      %1592 = vmatpush1.bf16.msra.mxu0 %v1458
      %1593 = vmatprep.subr.bf16.mxu0 0
      %1594 = vmatpush1.bf16.msra.mxu0 %v1459
      %1595 = vmatprep.subr.bf16.mxu0 0
      %1596 = vmatpush1.bf16.msra.mxu0 %v1460
      %1597 = vmatprep.mubr.bf16.mxu0 %v1089
      %1598 = vmatmul.mubr.bf16.gmra.mrb[0].mxu0 %v1088
      %v1599 = vpop.f32.mrb[0].mxu0
      %v1600 = vadd.f32 %v1560, %v1599
      %v1601 = vpop.f32.mrb[0].mxu0
      %v1602 = vpop.f32.mrb[0].mxu0
      %v1603 = vpop.f32.mrb[0].mxu0
      %1604 = vdwg.mxu0
      %1605 = vmatprep.subr.bf16.mxu0 0
      %1606 = vmatpush1.bf16.msra.mxu0 %v1461
      %1607 = vmatprep.subr.bf16.mxu0 0
      %1608 = vmatpush1.bf16.msra.mxu0 %v1462
      %1609 = vmatprep.subr.bf16.mxu0 0
      %1610 = vmatpush1.bf16.msra.mxu0 %v1463
      %1611 = vmatprep.subr.bf16.mxu0 0
      %1612 = vmatpush1.bf16.msra.mxu0 %v1464
      %1613 = vmatprep.subr.bf16.mxu0 0
      %1614 = vmatpush1.bf16.msra.mxu0 %v1465
      %1615 = vmatprep.subr.bf16.mxu0 0
      %1616 = vmatpush1.bf16.msra.mxu0 %v1466
      %1617 = vmatprep.subr.bf16.mxu0 0
      %1618 = vmatpush1.bf16.msra.mxu0 %v1467
      %1619 = vmatprep.subr.bf16.mxu0 0
      %1620 = vmatpush1.bf16.msra.mxu0 %v1468
      %1621 = vmatprep.subr.bf16.mxu0 0
      %1622 = vmatpush1.bf16.msra.mxu0 %v1469
      %1623 = vmatprep.subr.bf16.mxu0 0
      %1624 = vmatpush1.bf16.msra.mxu0 %v1470
      %1625 = vmatprep.subr.bf16.mxu0 0
      %1626 = vmatpush1.bf16.msra.mxu0 %v1471
      %1627 = vmatprep.subr.bf16.mxu0 0
      %1628 = vmatpush1.bf16.msra.mxu0 %v1472
      %1629 = vmatprep.subr.bf16.mxu0 0
      %1630 = vmatpush1.bf16.msra.mxu0 %v1473
      %1631 = vmatprep.subr.bf16.mxu0 0
      %1632 = vmatpush1.bf16.msra.mxu0 %v1474
      %1633 = vmatprep.subr.bf16.mxu0 0
      %1634 = vmatpush1.bf16.msra.mxu0 %v1475
      %1635 = vmatprep.subr.bf16.mxu0 0
      %1636 = vmatpush1.bf16.msra.mxu0 %v1476
      %1637 = vmatprep.mubr.bf16.mxu0 %v1140
      %1638 = vmatmul.mubr.bf16.gmra.mrb[0].mxu0 %v1139
      %v1639 = vpop.f32.mrb[0].mxu0
      %v1640 = vadd.f32 %v1600, %v1639
      %v1641 = vpop.f32.mrb[0].mxu0
      %v1642 = vpop.f32.mrb[0].mxu0
      %v1643 = vpop.f32.mrb[0].mxu0
      %1644 = vdwg.mxu0
      %v1645 = vld [vmem:[%s5] sm:$0x1]
      %v1647 = vlaneseq
      %v1648 = vshrl.u32 %v1647, 7
      %v1649 = vsub.s32 0, %v1648
      %v1650 = vrot.slane %v1645, %v1649
      %v1652 = vmul.f32 %v1640, %v1650
      %v1653 = vld [vmem:[%s7] sm:$0x1]
      %v1655 = vlaneseq
      %v1656 = vshrl.u32 %v1655, 7
      %v1657 = vsub.s32 0, %v1656
      %v1658 = vrot.slane %v1653, %v1657
      %v1660 = vadd.f32 %v1652, %v1658
      %v1661 = vmax.f32 %v1660, 0.0
      %v1662 = vpack.c.bf16 %v1661, %v1661
      %v1664 = vshrl.u32 %v1662, 16
      %v1666 = vrot.slane %v1664, 7
      %v1667 = vshll.u32 %v1662, 16
      %v1669 = vor.u32 %v1666, %v1667
      %vm1671 = vcmask 1040384
      %vm1672 = vsmask.f32 256
      %vm1673 = vmand %vm1671, %vm1672
      %v1674 = vsel %vm1673, 0, %v1669
      %v1675 = vrot.slane %v1667, 1
      %v1676 = vor.u32 %v1664, %v1675
      %vm1678 = vcmask 1043456
      %vm1679 = vsmask.f32 3328
      %vm1680 = vmand %vm1678, %vm1679
      %v1681 = vsel %vm1680, %v1676, 0
      %v1682 = vld [vmem:[%s9] sm:$0xf]
      %v1683 = vld [vmem:[%s9 + $0x4] sm:$0xf]
      %v1684 = vld [vmem:[%s9 + $0x8] sm:$0xf]
      %v1685 = vld [vmem:[%s9 + $0xc] sm:$0xf]
      %v1686 = vld [vmem:[%s9 + $0x10] sm:$0xf]
      %v1687 = vld [vmem:[%s9 + $0x14] sm:$0xf]
      %v1688 = vld [vmem:[%s9 + $0x18] sm:$0xf]
      %v1689 = vld [vmem:[%s9 + $0x1c] sm:$0xf]
      %v1690 = vld [vmem:[%s9 + $0x20] sm:$0xf]
      %v1691 = vld [vmem:[%s9 + $0x24] sm:$0xf]
      %v1692 = vld [vmem:[%s9 + $0x28] sm:$0xf]
      %v1693 = vld [vmem:[%s9 + $0x2c] sm:$0xf]
      %v1694 = vld [vmem:[%s9 + $0x30] sm:$0xf]
      %v1695 = vld [vmem:[%s9 + $0x34] sm:$0xf]
      %v1696 = vld [vmem:[%s9 + $0x38] sm:$0xf]
      %v1697 = vld [vmem:[%s9 + $0x3c] sm:$0xf]
      %v1698 = vld [vmem:[%s9 + $0x40] sm:$0xf]
      %v1699 = vld [vmem:[%s9 + $0x44] sm:$0xf]
      %v1700 = vld [vmem:[%s9 + $0x48] sm:$0xf]
      %v1701 = vld [vmem:[%s9 + $0x4c] sm:$0xf]
      %v1702 = vld [vmem:[%s9 + $0x50] sm:$0xf]
      %v1703 = vld [vmem:[%s9 + $0x54] sm:$0xf]
      %v1704 = vld [vmem:[%s9 + $0x58] sm:$0xf]
      %v1705 = vld [vmem:[%s9 + $0x5c] sm:$0xf]
      %v1706 = vld [vmem:[%s9 + $0x60] sm:$0xf]
      %v1707 = vld [vmem:[%s9 + $0x64] sm:$0xf]
      %v1708 = vld [vmem:[%s9 + $0x68] sm:$0xf]
      %v1709 = vld [vmem:[%s9 + $0x6c] sm:$0xf]
      %v1710 = vld [vmem:[%s9 + $0x70] sm:$0xf]
      %v1711 = vld [vmem:[%s9 + $0x74] sm:$0xf]
      %v1712 = vld [vmem:[%s9 + $0x78] sm:$0xf]
      %v1713 = vld [vmem:[%s9 + $0x7c] sm:$0xf]
      %v1714 = vld [vmem:[%s9 + $0x80] sm:$0xf]
      %v1715 = vld [vmem:[%s9 + $0x84] sm:$0xf]
      %v1716 = vld [vmem:[%s9 + $0x88] sm:$0xf]
      %v1717 = vld [vmem:[%s9 + $0x8c] sm:$0xf]
      %v1718 = vld [vmem:[%s9 + $0x90] sm:$0xf]
      %v1719 = vld [vmem:[%s9 + $0x94] sm:$0xf]
      %v1720 = vld [vmem:[%s9 + $0x98] sm:$0xf]
      %v1721 = vld [vmem:[%s9 + $0x9c] sm:$0xf]
      %v1722 = vld [vmem:[%s9 + $0xa0] sm:$0xf]
      %v1723 = vld [vmem:[%s9 + $0xa4] sm:$0xf]
      %v1724 = vld [vmem:[%s9 + $0xa8] sm:$0xf]
      %v1725 = vld [vmem:[%s9 + $0xac] sm:$0xf]
      %v1726 = vld [vmem:[%s9 + $0xb0] sm:$0xf]
      %v1727 = vld [vmem:[%s9 + $0xb4] sm:$0xf]
      %v1728 = vld [vmem:[%s9 + $0xb8] sm:$0xf]
      %v1729 = vld [vmem:[%s9 + $0xbc] sm:$0xf]
      %v1778 = vunpack.c.l.b16 %v1682
      %v1779 = vunpack.c.l.b16 %v1683
      %v1780 = vunpack.c.l.b16 %v1684
      %v1781 = vunpack.c.l.b16 %v1685
      %v1782 = vunpack.c.l.b16 %v1686
      %v1783 = vunpack.c.l.b16 %v1687
      %v1784 = vunpack.c.l.b16 %v1688
      %v1785 = vunpack.c.l.b16 %v1689
      %v1786 = vunpack.c.l.b16 %v1690
      %v1787 = vunpack.c.l.b16 %v1691
      %v1788 = vunpack.c.l.b16 %v1692
      %v1789 = vunpack.c.l.b16 %v1693
      %v1790 = vunpack.c.l.b16 %v1694
      %v1791 = vunpack.c.l.b16 %v1695
      %v1792 = vunpack.c.l.b16 %v1696
      %v1793 = vunpack.c.l.b16 %v1697
      %v1794 = vunpack.c.l.b16 %v1698
      %v1795 = vunpack.c.l.b16 %v1699
      %v1796 = vunpack.c.l.b16 %v1700
      %v1797 = vunpack.c.l.b16 %v1701
      %v1798 = vunpack.c.l.b16 %v1702
      %v1799 = vunpack.c.l.b16 %v1703
      %v1800 = vunpack.c.l.b16 %v1704
      %v1801 = vunpack.c.l.b16 %v1705
      %v1802 = vunpack.c.l.b16 %v1706
      %v1803 = vunpack.c.l.b16 %v1707
      %v1804 = vunpack.c.l.b16 %v1708
      %v1805 = vunpack.c.l.b16 %v1709
      %v1806 = vunpack.c.l.b16 %v1710
      %v1807 = vunpack.c.l.b16 %v1711
      %v1808 = vunpack.c.l.b16 %v1712
      %v1809 = vunpack.c.l.b16 %v1713
      %v1810 = vunpack.c.l.b16 %v1714
      %v1811 = vunpack.c.l.b16 %v1715
      %v1812 = vunpack.c.l.b16 %v1716
      %v1813 = vunpack.c.l.b16 %v1717
      %v1814 = vunpack.c.l.b16 %v1718
      %v1815 = vunpack.c.l.b16 %v1719
      %v1816 = vunpack.c.l.b16 %v1720
      %v1817 = vunpack.c.l.b16 %v1721
      %v1818 = vunpack.c.l.b16 %v1722
      %v1819 = vunpack.c.l.b16 %v1723
      %v1820 = vunpack.c.l.b16 %v1724
      %v1821 = vunpack.c.l.b16 %v1725
      %v1822 = vunpack.c.l.b16 %v1726
      %v1823 = vunpack.c.l.b16 %v1727
      %v1824 = vunpack.c.l.b16 %v1728
      %v1825 = vunpack.c.l.b16 %v1729
      %v1826 = vpack.c.b16 %v1779, %v1778
      %v1827 = vpack.c.b16 %v1781, %v1780
      %v1828 = vpack.c.b16 %v1783, %v1782
      %v1829 = vpack.c.b16 %v1785, %v1784
      %v1830 = vpack.c.b16 %v1787, %v1786
      %v1831 = vpack.c.b16 %v1789, %v1788
      %v1832 = vpack.c.b16 %v1791, %v1790
      %v1833 = vpack.c.b16 %v1793, %v1792
      %v1834 = vpack.c.b16 %v1795, %v1794
      %v1835 = vpack.c.b16 %v1797, %v1796
      %v1836 = vpack.c.b16 %v1799, %v1798
      %v1837 = vpack.c.b16 %v1801, %v1800
      %v1838 = vpack.c.b16 %v1803, %v1802
      %v1839 = vpack.c.b16 %v1805, %v1804
      %v1840 = vpack.c.b16 %v1807, %v1806
      %v1841 = vpack.c.b16 %v1809, %v1808
      %v1842 = vpack.c.b16 %v1811, %v1810
      %v1843 = vpack.c.b16 %v1813, %v1812
      %v1844 = vpack.c.b16 %v1815, %v1814
      %v1845 = vpack.c.b16 %v1817, %v1816
      %v1846 = vpack.c.b16 %v1819, %v1818
      %v1847 = vpack.c.b16 %v1821, %v1820
      %v1848 = vpack.c.b16 %v1823, %v1822
      %v1849 = vpack.c.b16 %v1825, %v1824
      %1874 = vmatprep.subr.bf16.mxu0 0
      %1875 = vmatpush1.bf16.msra.mxu0 %v1826
      %1876 = vmatprep.subr.bf16.mxu0 0
      %1877 = vmatpush1.bf16.msra.mxu0 %v1827
      %1878 = vmatprep.subr.bf16.mxu0 0
      %1879 = vmatpush1.bf16.msra.mxu0 %v1828
      %1880 = vmatprep.subr.bf16.mxu0 0
      %1881 = vmatpush1.bf16.msra.mxu0 %v1829
      %1882 = vmatprep.subr.bf16.mxu0 0
      %1883 = vmatpush1.bf16.msra.mxu0 %v1830
      %1884 = vmatprep.subr.bf16.mxu0 0
      %1885 = vmatpush1.bf16.msra.mxu0 %v1831
      %1886 = vmatprep.subr.bf16.mxu0 0
      %1887 = vmatpush1.bf16.msra.mxu0 %v1832
      %1888 = vmatprep.subr.bf16.mxu0 0
      %1889 = vmatpush1.bf16.msra.mxu0 %v1833
      %1890 = vmatprep.subr.bf16.mxu0 0
      %1891 = vmatpush1.bf16.msra.mxu0 %v1834
      %1892 = vmatprep.subr.bf16.mxu0 0
      %1893 = vmatpush1.bf16.msra.mxu0 %v1835
      %1894 = vmatprep.subr.bf16.mxu0 0
      %1895 = vmatpush1.bf16.msra.mxu0 %v1836
      %1896 = vmatprep.subr.bf16.mxu0 0
      %1897 = vmatpush1.bf16.msra.mxu0 %v1837
      %1898 = vmatprep.subr.bf16.mxu0 0
      %1899 = vmatpush1.bf16.msra.mxu0 %v1838
      %1900 = vmatprep.subr.bf16.mxu0 0
      %1901 = vmatpush1.bf16.msra.mxu0 %v1839
      %1902 = vmatprep.subr.bf16.mxu0 0
      %1903 = vmatpush1.bf16.msra.mxu0 %v1840
      %1904 = vmatprep.subr.bf16.mxu0 0
      %1905 = vmatpush1.bf16.msra.mxu0 %v1841
      %1906 = vmatprep.mubr.bf16.mxu0 %v1662
      %1907 = vmatmul.mubr.bf16.gmra.mrb[0].mxu0 %v1674
      %v1908 = vpop.f32.mrb[0].mxu0
      %v1909 = vadd.f32 0.0, %v1908
      %v1910 = vpop.f32.mrb[0].mxu0
      %v1911 = vpop.f32.mrb[0].mxu0
      %v1912 = vpop.f32.mrb[0].mxu0
      %1913 = vdwg.mxu0
      %1914 = vmatprep.subr.bf16.mxu0 0
      %1915 = vmatpush1.bf16.msra.mxu0 %v1842
      %1916 = vmatprep.subr.bf16.mxu0 0
      %1917 = vmatpush1.bf16.msra.mxu0 %v1843
      %1918 = vmatprep.subr.bf16.mxu0 0
      %1919 = vmatpush1.bf16.msra.mxu0 %v1844
      %1920 = vmatprep.subr.bf16.mxu0 0
      %1921 = vmatpush1.bf16.msra.mxu0 %v1845
      %1922 = vmatprep.subr.bf16.mxu0 0
      %1923 = vmatpush1.bf16.msra.mxu0 %v1846
      %1924 = vmatprep.subr.bf16.mxu0 0
      %1925 = vmatpush1.bf16.msra.mxu0 %v1847
      %1926 = vmatprep.subr.bf16.mxu0 0
      %1927 = vmatpush1.bf16.msra.mxu0 %v1848
      %1928 = vmatprep.subr.bf16.mxu0 0
      %1929 = vmatpush1.bf16.msra.mxu0 %v1849
      %1930 = vmatprep.subr.bf16.mxu0 0
      %1931 = vmatpush1.bf16.msra.mxu0 0
      %1932 = vmatprep.subr.bf16.mxu0 0
      %1933 = vmatpush1.bf16.msra.mxu0 0
      %1934 = vmatprep.subr.bf16.mxu0 0
      %1935 = vmatpush1.bf16.msra.mxu0 0
      %1936 = vmatprep.subr.bf16.mxu0 0
      %1937 = vmatpush1.bf16.msra.mxu0 0
      %1938 = vmatprep.subr.bf16.mxu0 0
      %1939 = vmatpush1.bf16.msra.mxu0 0
      %1940 = vmatprep.subr.bf16.mxu0 0
      %1941 = vmatpush1.bf16.msra.mxu0 0
      %1942 = vmatprep.subr.bf16.mxu0 0
      %1943 = vmatpush1.bf16.msra.mxu0 0
      %1944 = vmatprep.subr.bf16.mxu0 0
      %1945 = vmatpush1.bf16.msra.mxu0 0
      %1946 = vmatprep.mubr.bf16.mxu0 0
      %1947 = vmatmul.mubr.bf16.gmra.mrb[0].mxu0 %v1681
      %v1948 = vpop.f32.mrb[0].mxu0
      %v1949 = vadd.f32 %v1909, %v1948
      %v1950 = vpop.f32.mrb[0].mxu0
      %v1951 = vpop.f32.mrb[0].mxu0
      %v1952 = vpop.f32.mrb[0].mxu0
      %1953 = vdwg.mxu0
      %v1954 = vld [vmem:[%s11] sm:$0x1]
      %v1956 = vlaneseq
      %v1957 = vshrl.u32 %v1956, 7
      %v1958 = vsub.s32 0, %v1957
      %v1959 = vrot.slane %v1954, %v1958
      %v1961 = vmul.f32 %v1949, %v1959
      %v1962 = vld [vmem:[%s13] sm:$0x1]
      %v1964 = vlaneseq
      %v1965 = vshrl.u32 %v1964, 7
      %v1966 = vsub.s32 0, %v1965
      %v1967 = vrot.slane %v1962, %v1966
      %v1969 = vadd.f32 %v1961, %v1967
      %v1970 = vmax.f32 %v1969, 0.0
      %v1971 = vpack.c.bf16 %v1970, %v1970
      %v1972 = vld [vmem:[%s15] sm:$0xff]
      %v1973 = vld [vmem:[%s15 + $0x8] sm:$0xff]
      %v1974 = vld [vmem:[%s15 + $0x10] sm:$0xff]
      %v1975 = vld [vmem:[%s15 + $0x18] sm:$0xff]
      %v1976 = vld [vmem:[%s15 + $0x20] sm:$0xff]
      %v1977 = vld [vmem:[%s15 + $0x28] sm:$0xff]
      %v1978 = vld [vmem:[%s15 + $0x30] sm:$0xff]
      %v1979 = vld [vmem:[%s15 + $0x38] sm:$0xff]
      %v1980 = vld [vmem:[%s15 + $0x40] sm:$0xff]
      %v1981 = vld [vmem:[%s15 + $0x48] sm:$0xff]
      %v1982 = vld [vmem:[%s15 + $0x50] sm:$0xff]
      %v1983 = vld [vmem:[%s15 + $0x58] sm:$0xff]
      %v1984 = vld [vmem:[%s15 + $0x60] sm:$0xff]
      %v1985 = vld [vmem:[%s15 + $0x68] sm:$0xff]
      %v1986 = vld [vmem:[%s15 + $0x70] sm:$0xff]
      %v1987 = vld [vmem:[%s15 + $0x78] sm:$0xff]
      %v2004 = vunpack.c.l.b16 %v1972
      %v2005 = vunpack.c.h.b16 %v1972
      %v2006 = vunpack.c.l.b16 %v1973
      %v2007 = vunpack.c.h.b16 %v1973
      %v2008 = vunpack.c.l.b16 %v1974
      %v2009 = vunpack.c.h.b16 %v1974
      %v2010 = vunpack.c.l.b16 %v1975
      %v2011 = vunpack.c.h.b16 %v1975
      %v2012 = vunpack.c.l.b16 %v1976
      %v2013 = vunpack.c.h.b16 %v1976
      %v2014 = vunpack.c.l.b16 %v1977
      %v2015 = vunpack.c.h.b16 %v1977
      %v2016 = vunpack.c.l.b16 %v1978
      %v2017 = vunpack.c.h.b16 %v1978
      %v2018 = vunpack.c.l.b16 %v1979
      %v2019 = vunpack.c.h.b16 %v1979
      %v2020 = vunpack.c.l.b16 %v1980
      %v2021 = vunpack.c.h.b16 %v1980
      %v2022 = vunpack.c.l.b16 %v1981
      %v2023 = vunpack.c.h.b16 %v1981
      %v2024 = vunpack.c.l.b16 %v1982
      %v2025 = vunpack.c.h.b16 %v1982
      %v2026 = vunpack.c.l.b16 %v1983
      %v2027 = vunpack.c.h.b16 %v1983
      %v2028 = vunpack.c.l.b16 %v1984
      %v2029 = vunpack.c.h.b16 %v1984
      %v2030 = vunpack.c.l.b16 %v1985
      %v2031 = vunpack.c.h.b16 %v1985
      %v2032 = vunpack.c.l.b16 %v1986
      %v2033 = vunpack.c.h.b16 %v1986
      %v2034 = vunpack.c.l.b16 %v1987
      %v2035 = vunpack.c.h.b16 %v1987
      %v2036 = vpack.c.b16 %v2006, %v2004
      %v2037 = vpack.c.b16 %v2007, %v2005
      %v2038 = vpack.c.b16 %v2010, %v2008
      %v2039 = vpack.c.b16 %v2011, %v2009
      %v2040 = vpack.c.b16 %v2014, %v2012
      %v2041 = vpack.c.b16 %v2015, %v2013
      %v2042 = vpack.c.b16 %v2018, %v2016
      %v2043 = vpack.c.b16 %v2019, %v2017
      %v2044 = vpack.c.b16 %v2022, %v2020
      %v2045 = vpack.c.b16 %v2023, %v2021
      %v2046 = vpack.c.b16 %v2026, %v2024
      %v2047 = vpack.c.b16 %v2027, %v2025
      %v2048 = vpack.c.b16 %v2030, %v2028
      %v2049 = vpack.c.b16 %v2031, %v2029
      %v2050 = vpack.c.b16 %v2034, %v2032
      %v2051 = vpack.c.b16 %v2035, %v2033
      %2068 = vmatprep.subr.bf16.mxu0 %v2037
      %2069 = vmatpush1.bf16.msra.mxu0 %v2036
      %2070 = vmatprep.subr.bf16.mxu0 %v2039
      %2071 = vmatpush1.bf16.msra.mxu0 %v2038
      %2072 = vmatprep.subr.bf16.mxu0 %v2041
      %2073 = vmatpush1.bf16.msra.mxu0 %v2040
      %2074 = vmatprep.subr.bf16.mxu0 %v2043
      %2075 = vmatpush1.bf16.msra.mxu0 %v2042
      %2076 = vmatprep.subr.bf16.mxu0 %v2045
      %2077 = vmatpush1.bf16.msra.mxu0 %v2044
      %2078 = vmatprep.subr.bf16.mxu0 %v2047
      %2079 = vmatpush1.bf16.msra.mxu0 %v2046
      %2080 = vmatprep.subr.bf16.mxu0 %v2049
      %2081 = vmatpush1.bf16.msra.mxu0 %v2048
      %2082 = vmatprep.subr.bf16.mxu0 %v2051
      %2083 = vmatpush1.bf16.msra.mxu0 %v2050
      %2084 = vmatprep.subr.bf16.mxu0 0
      %2085 = vmatpush1.bf16.msra.mxu0 0
      %2086 = vmatprep.subr.bf16.mxu0 0
      %2087 = vmatpush1.bf16.msra.mxu0 0
      %2088 = vmatprep.subr.bf16.mxu0 0
      %2089 = vmatpush1.bf16.msra.mxu0 0
      %2090 = vmatprep.subr.bf16.mxu0 0
      %2091 = vmatpush1.bf16.msra.mxu0 0
      %2092 = vmatprep.subr.bf16.mxu0 0
      %2093 = vmatpush1.bf16.msra.mxu0 0
      %2094 = vmatprep.subr.bf16.mxu0 0
      %2095 = vmatpush1.bf16.msra.mxu0 0
      %2096 = vmatprep.subr.bf16.mxu0 0
      %2097 = vmatpush1.bf16.msra.mxu0 0
      %2098 = vmatprep.subr.bf16.mxu0 0
      %2099 = vmatpush1.bf16.msra.mxu0 0
      %2100 = vmatprep.mubr.bf16.mxu0 0
      %2101 = vmatmul.mubr.bf16.gmra.mrb[0].mxu0 %v1971
      %v2102 = vpop.f32.mrb[0].mxu0
      %v2103 = vadd.f32 0.0, %v2102
      %v2104 = vpop.f32.mrb[0].mxu0
      %v2105 = vadd.f32 0.0, %v2104
      %v2106 = vpop.f32.mrb[0].mxu0
      %v2107 = vpop.f32.mrb[0].mxu0
      %2108 = vdwg.mxu0
      %v2109 = vld [vmem:[%s17] sm:$0x3]
      %v2111 = vlaneseq
      %v2112 = vshrl.u32 %v2111, 7
      %v2113 = vsub.s32 0, %v2112
      %v2114 = vrot.slane %v2109, %v2113
      %v2115 = vlaneseq
      %v2116 = vshrl.u32 %v2115, 7
      %v2117 = vsub.s32 1, %v2116
      %v2118 = vrot.slane %v2109, %v2117
      %v2121 = vmul.f32 %v2103, %v2114
      %v2122 = vmul.f32 %v2105, %v2118
      %v2123 = vld [vmem:[%s19] sm:$0x3]
      %v2125 = vlaneseq
      %v2126 = vshrl.u32 %v2125, 7
      %v2127 = vsub.s32 0, %v2126
      %v2128 = vrot.slane %v2123, %v2127
      %v2129 = vlaneseq
      %v2130 = vshrl.u32 %v2129, 7
      %v2131 = vsub.s32 1, %v2130
      %v2132 = vrot.slane %v2123, %v2131
      %v2135 = vadd.f32 %v2121, %v2128
      %v2136 = vadd.f32 %v2122, %v2132
      %v2137 = vmax.f32 %v2135, 0.0
      %v2138 = vmax.f32 %v2136, 0.0
      %vm2139 = vcmask 64512
      %v2140 = vsel %vm2139, %v983, 0
      %vm2142 = vcmask 1043456
      %v2144 = vsel %vm2142, %v1971, 0
      %2146 = vmatprep.subr.bf16.mxu0 0
      %2147 = vmatpush1.bf16.msra.mxu0 %v2144
      %2148 = vmatprep.subr.bf16.mxu0 0
      %2149 = vmatpush1.bf16.msra.mxu0 0
      %2150 = vmatprep.subr.bf16.mxu0 0
      %2151 = vmatpush1.bf16.msra.mxu0 0
      %2152 = vmatprep.subr.bf16.mxu0 0
      %2153 = vmatpush1.bf16.msra.mxu0 0
      %2154 = vmatprep.subr.bf16.mxu0 0
      %2155 = vmatpush1.bf16.msra.mxu0 0
      %2156 = vmatprep.subr.bf16.mxu0 0
      %2157 = vmatpush1.bf16.msra.mxu0 0
      %2158 = vmatprep.subr.bf16.mxu0 0
      %2159 = vmatpush1.bf16.msra.mxu0 0
      %2160 = vmatprep.subr.bf16.mxu0 0
      %2161 = vmatpush1.bf16.msra.mxu0 0
      %2162 = vmatprep.subr.bf16.mxu0 0
      %2163 = vmatpush1.bf16.msra.mxu0 0
      %2164 = vmatprep.subr.bf16.mxu0 0
      %2165 = vmatpush1.bf16.msra.mxu0 0
      %2166 = vmatprep.subr.bf16.mxu0 0
      %2167 = vmatpush1.bf16.msra.mxu0 0
      %2168 = vmatprep.subr.bf16.mxu0 0
      %2169 = vmatpush1.bf16.msra.mxu0 0
      %2170 = vmatprep.subr.bf16.mxu0 0
      %2171 = vmatpush1.bf16.msra.mxu0 0
      %2172 = vmatprep.subr.bf16.mxu0 0
      %2173 = vmatpush1.bf16.msra.mxu0 0
      %2174 = vmatprep.subr.bf16.mxu0 0
      %2175 = vmatpush1.bf16.msra.mxu0 0
      %2176 = vmatprep.subr.bf16.mxu0 0
      %2177 = vmatpush1.bf16.msra.mxu0 0
      %2178 = vmatprep.mubr.bf16.mxu0 0
      %2179 = vmatmul.mubr.bf16.gmra.mrb[0].mxu0 %v2140
      %v2180 = vpop.f32.mrb[0].mxu0
      %v2181 = vadd.f32 0.0, %v2180
      %v2182 = vpop.f32.mrb[0].mxu0
      %v2183 = vpop.f32.mrb[0].mxu0
      %v2184 = vpop.f32.mrb[0].mxu0
      %2185 = vdwg.mxu0
      %v2186 = vpack.c.bf16 %v2181, %v2181
      %v2187 = vsel %vm2139, %v1043, 0
      %2189 = vmatprep.subr.bf16.mxu0 0
      %2190 = vmatpush1.bf16.msra.mxu0 %v2144
      %2191 = vmatprep.subr.bf16.mxu0 0
      %2192 = vmatpush1.bf16.msra.mxu0 0
      %2193 = vmatprep.subr.bf16.mxu0 0
      %2194 = vmatpush1.bf16.msra.mxu0 0
      %2195 = vmatprep.subr.bf16.mxu0 0
      %2196 = vmatpush1.bf16.msra.mxu0 0
      %2197 = vmatprep.subr.bf16.mxu0 0
      %2198 = vmatpush1.bf16.msra.mxu0 0
      %2199 = vmatprep.subr.bf16.mxu0 0
      %2200 = vmatpush1.bf16.msra.mxu0 0
      %2201 = vmatprep.subr.bf16.mxu0 0
      %2202 = vmatpush1.bf16.msra.mxu0 0
      %2203 = vmatprep.subr.bf16.mxu0 0
      %2204 = vmatpush1.bf16.msra.mxu0 0
      %2205 = vmatprep.subr.bf16.mxu0 0
      %2206 = vmatpush1.bf16.msra.mxu0 0
      %2207 = vmatprep.subr.bf16.mxu0 0
      %2208 = vmatpush1.bf16.msra.mxu0 0
      %2209 = vmatprep.subr.bf16.mxu0 0
      %2210 = vmatpush1.bf16.msra.mxu0 0
      %2211 = vmatprep.subr.bf16.mxu0 0
      %2212 = vmatpush1.bf16.msra.mxu0 0
      %2213 = vmatprep.subr.bf16.mxu0 0
      %2214 = vmatpush1.bf16.msra.mxu0 0
      %2215 = vmatprep.subr.bf16.mxu0 0
      %2216 = vmatpush1.bf16.msra.mxu0 0
      %2217 = vmatprep.subr.bf16.mxu0 0
      %2218 = vmatpush1.bf16.msra.mxu0 0
      %2219 = vmatprep.subr.bf16.mxu0 0
      %2220 = vmatpush1.bf16.msra.mxu0 0
      %2221 = vmatprep.mubr.bf16.mxu0 0
      %2222 = vmatmul.mubr.bf16.gmra.mrb[0].mxu0 %v2187
      %v2223 = vpop.f32.mrb[0].mxu0
      %v2224 = vadd.f32 0.0, %v2223
      %v2225 = vpop.f32.mrb[0].mxu0
      %v2226 = vpop.f32.mrb[0].mxu0
      %v2227 = vpop.f32.mrb[0].mxu0
      %2228 = vdwg.mxu0
      %v2229 = vpack.c.bf16 %v2224, %v2224
      %v2230 = vsel %vm2139, %v1094, 0
      %2232 = vmatprep.subr.bf16.mxu0 0
      %2233 = vmatpush1.bf16.msra.mxu0 %v2144
      %2234 = vmatprep.subr.bf16.mxu0 0
      %2235 = vmatpush1.bf16.msra.mxu0 0
      %2236 = vmatprep.subr.bf16.mxu0 0
      %2237 = vmatpush1.bf16.msra.mxu0 0
      %2238 = vmatprep.subr.bf16.mxu0 0
      %2239 = vmatpush1.bf16.msra.mxu0 0
      %2240 = vmatprep.subr.bf16.mxu0 0
      %2241 = vmatpush1.bf16.msra.mxu0 0
      %2242 = vmatprep.subr.bf16.mxu0 0
      %2243 = vmatpush1.bf16.msra.mxu0 0
      %2244 = vmatprep.subr.bf16.mxu0 0
      %2245 = vmatpush1.bf16.msra.mxu0 0
      %2246 = vmatprep.subr.bf16.mxu0 0
      %2247 = vmatpush1.bf16.msra.mxu0 0
      %2248 = vmatprep.subr.bf16.mxu0 0
      %2249 = vmatpush1.bf16.msra.mxu0 0
      %2250 = vmatprep.subr.bf16.mxu0 0
      %2251 = vmatpush1.bf16.msra.mxu0 0
      %2252 = vmatprep.subr.bf16.mxu0 0
      %2253 = vmatpush1.bf16.msra.mxu0 0
      %2254 = vmatprep.subr.bf16.mxu0 0
      %2255 = vmatpush1.bf16.msra.mxu0 0
      %2256 = vmatprep.subr.bf16.mxu0 0
      %2257 = vmatpush1.bf16.msra.mxu0 0
      %2258 = vmatprep.subr.bf16.mxu0 0
      %2259 = vmatpush1.bf16.msra.mxu0 0
      %2260 = vmatprep.subr.bf16.mxu0 0
      %2261 = vmatpush1.bf16.msra.mxu0 0
      %2262 = vmatprep.subr.bf16.mxu0 0
      %2263 = vmatpush1.bf16.msra.mxu0 0
      %2264 = vmatprep.mubr.bf16.mxu0 0
      %2265 = vmatmul.mubr.bf16.gmra.mrb[0].mxu0 %v2230
      %v2266 = vpop.f32.mrb[0].mxu0
      %v2267 = vadd.f32 0.0, %v2266
      %v2268 = vpop.f32.mrb[0].mxu0
      %v2269 = vpop.f32.mrb[0].mxu0
      %v2270 = vpop.f32.mrb[0].mxu0
      %2271 = vdwg.mxu0
      %v2272 = vpack.c.bf16 %v2267, %v2267
      %v2273 = vld [vmem:[%s21] sm:$0xf]
      %v2274 = vld [vmem:[%s21 + $0x4] sm:$0xf]
      %v2275 = vld [vmem:[%s21 + $0x8] sm:$0xf]
      %v2276 = vld [vmem:[%s21 + $0xc] sm:$0xf]
      %v2277 = vld [vmem:[%s21 + $0x10] sm:$0xf]
      %v2278 = vld [vmem:[%s21 + $0x14] sm:$0xf]
      %v2279 = vld [vmem:[%s21 + $0x18] sm:$0xf]
      %v2280 = vld [vmem:[%s21 + $0x1c] sm:$0xf]
      %v2281 = vld [vmem:[%s21 + $0x20] sm:$0xf]
      %v2282 = vld [vmem:[%s21 + $0x24] sm:$0xf]
      %v2283 = vld [vmem:[%s21 + $0x28] sm:$0xf]
      %v2284 = vld [vmem:[%s21 + $0x2c] sm:$0xf]
      %v2285 = vld [vmem:[%s21 + $0x30] sm:$0xf]
      %v2286 = vld [vmem:[%s21 + $0x34] sm:$0xf]
      %v2287 = vld [vmem:[%s21 + $0x38] sm:$0xf]
      %v2288 = vld [vmem:[%s21 + $0x3c] sm:$0xf]
      %v2289 = vld [vmem:[%s21 + $0x40] sm:$0xf]
      %v2290 = vld [vmem:[%s21 + $0x44] sm:$0xf]
      %v2291 = vld [vmem:[%s21 + $0x48] sm:$0xf]
      %v2292 = vld [vmem:[%s21 + $0x4c] sm:$0xf]
      %v2293 = vld [vmem:[%s21 + $0x50] sm:$0xf]
      %v2294 = vld [vmem:[%s21 + $0x54] sm:$0xf]
      %v2295 = vld [vmem:[%s21 + $0x58] sm:$0xf]
      %v2296 = vld [vmem:[%s21 + $0x5c] sm:$0xf]
      %v2297 = vld [vmem:[%s21 + $0x60] sm:$0xf]
      %v2298 = vld [vmem:[%s21 + $0x64] sm:$0xf]
      %v2299 = vld [vmem:[%s21 + $0x68] sm:$0xf]
      %v2300 = vld [vmem:[%s21 + $0x6c] sm:$0xf]
      %v2301 = vld [vmem:[%s21 + $0x70] sm:$0xf]
      %v2302 = vld [vmem:[%s21 + $0x74] sm:$0xf]
      %v2303 = vld [vmem:[%s21 + $0x78] sm:$0xf]
      %v2304 = vld [vmem:[%s21 + $0x7c] sm:$0xf]
      %v2305 = vld [vmem:[%s21 + $0x80] sm:$0xf]
      %v2306 = vld [vmem:[%s21 + $0x84] sm:$0xf]
      %v2307 = vld [vmem:[%s21 + $0x88] sm:$0xf]
      %v2308 = vld [vmem:[%s21 + $0x8c] sm:$0xf]
      %v2309 = vld [vmem:[%s21 + $0x90] sm:$0xf]
      %v2310 = vld [vmem:[%s21 + $0x94] sm:$0xf]
      %v2311 = vld [vmem:[%s21 + $0x98] sm:$0xf]
      %v2312 = vld [vmem:[%s21 + $0x9c] sm:$0xf]
      %v2313 = vld [vmem:[%s21 + $0xa0] sm:$0xf]
      %v2314 = vld [vmem:[%s21 + $0xa4] sm:$0xf]
      %v2315 = vld [vmem:[%s21 + $0xa8] sm:$0xf]
      %v2316 = vld [vmem:[%s21 + $0xac] sm:$0xf]
      %v2317 = vld [vmem:[%s21 + $0xb0] sm:$0xf]
      %v2318 = vld [vmem:[%s21 + $0xb4] sm:$0xf]
      %v2319 = vld [vmem:[%s21 + $0xb8] sm:$0xf]
      %v2320 = vld [vmem:[%s21 + $0xbc] sm:$0xf]
      %v2369 = vunpack.c.l.b16 %v2273
      %v2370 = vunpack.c.l.b16 %v2274
      %v2371 = vunpack.c.l.b16 %v2275
      %v2372 = vunpack.c.l.b16 %v2276
      %v2373 = vunpack.c.l.b16 %v2277
      %v2374 = vunpack.c.l.b16 %v2278
      %v2375 = vunpack.c.l.b16 %v2279
      %v2376 = vunpack.c.l.b16 %v2280
      %v2377 = vunpack.c.l.b16 %v2281
      %v2378 = vunpack.c.l.b16 %v2282
      %v2379 = vunpack.c.l.b16 %v2283
      %v2380 = vunpack.c.l.b16 %v2284
      %v2381 = vunpack.c.l.b16 %v2285
      %v2382 = vunpack.c.l.b16 %v2286
      %v2383 = vunpack.c.l.b16 %v2287
      %v2384 = vunpack.c.l.b16 %v2288
      %v2385 = vunpack.c.l.b16 %v2289
      %v2386 = vunpack.c.l.b16 %v2290
      %v2387 = vunpack.c.l.b16 %v2291
      %v2388 = vunpack.c.l.b16 %v2292
      %v2389 = vunpack.c.l.b16 %v2293
      %v2390 = vunpack.c.l.b16 %v2294
      %v2391 = vunpack.c.l.b16 %v2295
      %v2392 = vunpack.c.l.b16 %v2296
      %v2393 = vunpack.c.l.b16 %v2297
      %v2394 = vunpack.c.l.b16 %v2298
      %v2395 = vunpack.c.l.b16 %v2299
      %v2396 = vunpack.c.l.b16 %v2300
      %v2397 = vunpack.c.l.b16 %v2301
      %v2398 = vunpack.c.l.b16 %v2302
      %v2399 = vunpack.c.l.b16 %v2303
      %v2400 = vunpack.c.l.b16 %v2304
      %v2401 = vunpack.c.l.b16 %v2305
      %v2402 = vunpack.c.l.b16 %v2306
      %v2403 = vunpack.c.l.b16 %v2307
      %v2404 = vunpack.c.l.b16 %v2308
      %v2405 = vunpack.c.l.b16 %v2309
      %v2406 = vunpack.c.l.b16 %v2310
      %v2407 = vunpack.c.l.b16 %v2311
      %v2408 = vunpack.c.l.b16 %v2312
      %v2409 = vunpack.c.l.b16 %v2313
      %v2410 = vunpack.c.l.b16 %v2314
      %v2411 = vunpack.c.l.b16 %v2315
      %v2412 = vunpack.c.l.b16 %v2316
      %v2413 = vunpack.c.l.b16 %v2317
      %v2414 = vunpack.c.l.b16 %v2318
      %v2415 = vunpack.c.l.b16 %v2319
      %v2416 = vunpack.c.l.b16 %v2320
      %v2417 = vpack.c.b16 %v2370, %v2369
      %v2418 = vpack.c.b16 %v2372, %v2371
      %v2419 = vpack.c.b16 %v2374, %v2373
      %v2420 = vpack.c.b16 %v2376, %v2375
      %v2421 = vpack.c.b16 %v2378, %v2377
      %v2422 = vpack.c.b16 %v2380, %v2379
      %v2423 = vpack.c.b16 %v2382, %v2381
      %v2424 = vpack.c.b16 %v2384, %v2383
      %v2425 = vpack.c.b16 %v2386, %v2385
      %v2426 = vpack.c.b16 %v2388, %v2387
      %v2427 = vpack.c.b16 %v2390, %v2389
      %v2428 = vpack.c.b16 %v2392, %v2391
      %v2429 = vpack.c.b16 %v2394, %v2393
      %v2430 = vpack.c.b16 %v2396, %v2395
      %v2431 = vpack.c.b16 %v2398, %v2397
      %v2432 = vpack.c.b16 %v2400, %v2399
      %v2433 = vpack.c.b16 %v2402, %v2401
      %v2434 = vpack.c.b16 %v2404, %v2403
      %v2435 = vpack.c.b16 %v2406, %v2405
      %v2436 = vpack.c.b16 %v2408, %v2407
      %v2437 = vpack.c.b16 %v2410, %v2409
      %v2438 = vpack.c.b16 %v2412, %v2411
      %v2439 = vpack.c.b16 %v2414, %v2413
      %v2440 = vpack.c.b16 %v2416, %v2415
      %2465 = vmatprep.subr.bf16.mxu0 0
      %2466 = vmatpush1.bf16.msra.mxu0 %v2417
      %2467 = vmatprep.subr.bf16.mxu0 0
      %2468 = vmatpush1.bf16.msra.mxu0 %v2418
      %2469 = vmatprep.subr.bf16.mxu0 0
      %2470 = vmatpush1.bf16.msra.mxu0 %v2419
      %2471 = vmatprep.subr.bf16.mxu0 0
      %2472 = vmatpush1.bf16.msra.mxu0 %v2420
      %2473 = vmatprep.subr.bf16.mxu0 0
      %2474 = vmatpush1.bf16.msra.mxu0 %v2421
      %2475 = vmatprep.subr.bf16.mxu0 0
      %2476 = vmatpush1.bf16.msra.mxu0 %v2422
      %2477 = vmatprep.subr.bf16.mxu0 0
      %2478 = vmatpush1.bf16.msra.mxu0 %v2423
      %2479 = vmatprep.subr.bf16.mxu0 0
      %2480 = vmatpush1.bf16.msra.mxu0 %v2424
      %2481 = vmatprep.subr.bf16.mxu0 0
      %2482 = vmatpush1.bf16.msra.mxu0 %v2425
      %2483 = vmatprep.subr.bf16.mxu0 0
      %2484 = vmatpush1.bf16.msra.mxu0 %v2426
      %2485 = vmatprep.subr.bf16.mxu0 0
      %2486 = vmatpush1.bf16.msra.mxu0 %v2427
      %2487 = vmatprep.subr.bf16.mxu0 0
      %2488 = vmatpush1.bf16.msra.mxu0 %v2428
      %2489 = vmatprep.subr.bf16.mxu0 0
      %2490 = vmatpush1.bf16.msra.mxu0 %v2429
      %2491 = vmatprep.subr.bf16.mxu0 0
      %2492 = vmatpush1.bf16.msra.mxu0 %v2430
      %2493 = vmatprep.subr.bf16.mxu0 0
      %2494 = vmatpush1.bf16.msra.mxu0 %v2431
      %2495 = vmatprep.subr.bf16.mxu0 0
      %2496 = vmatpush1.bf16.msra.mxu0 %v2432
      %2497 = vmatprep.mubr.bf16.mxu0 %v2229
      %2498 = vmatmul.mubr.bf16.gmra.mrb[0].mxu0 %v2186
      %v2499 = vpop.f32.mrb[0].mxu0
      %v2500 = vadd.f32 0.0, %v2499
      %v2501 = vpop.f32.mrb[0].mxu0
      %v2502 = vpop.f32.mrb[0].mxu0
      %v2503 = vpop.f32.mrb[0].mxu0
      %2504 = vdwg.mxu0
      %2505 = vmatprep.subr.bf16.mxu0 0
      %2506 = vmatpush1.bf16.msra.mxu0 %v2433
      %2507 = vmatprep.subr.bf16.mxu0 0
      %2508 = vmatpush1.bf16.msra.mxu0 %v2434
      %2509 = vmatprep.subr.bf16.mxu0 0
      %2510 = vmatpush1.bf16.msra.mxu0 %v2435
      %2511 = vmatprep.subr.bf16.mxu0 0
      %2512 = vmatpush1.bf16.msra.mxu0 %v2436
      %2513 = vmatprep.subr.bf16.mxu0 0
      %2514 = vmatpush1.bf16.msra.mxu0 %v2437
      %2515 = vmatprep.subr.bf16.mxu0 0
      %2516 = vmatpush1.bf16.msra.mxu0 %v2438
      %2517 = vmatprep.subr.bf16.mxu0 0
      %2518 = vmatpush1.bf16.msra.mxu0 %v2439
      %2519 = vmatprep.subr.bf16.mxu0 0
      %2520 = vmatpush1.bf16.msra.mxu0 %v2440
      %2521 = vmatprep.subr.bf16.mxu0 0
      %2522 = vmatpush1.bf16.msra.mxu0 0
      %2523 = vmatprep.subr.bf16.mxu0 0
      %2524 = vmatpush1.bf16.msra.mxu0 0
      %2525 = vmatprep.subr.bf16.mxu0 0
      %2526 = vmatpush1.bf16.msra.mxu0 0
      %2527 = vmatprep.subr.bf16.mxu0 0
      %2528 = vmatpush1.bf16.msra.mxu0 0
      %2529 = vmatprep.subr.bf16.mxu0 0
      %2530 = vmatpush1.bf16.msra.mxu0 0
      %2531 = vmatprep.subr.bf16.mxu0 0
      %2532 = vmatpush1.bf16.msra.mxu0 0
      %2533 = vmatprep.subr.bf16.mxu0 0
      %2534 = vmatpush1.bf16.msra.mxu0 0
      %2535 = vmatprep.subr.bf16.mxu0 0
      %2536 = vmatpush1.bf16.msra.mxu0 0
      %2537 = vmatprep.mubr.bf16.mxu0 0
      %2538 = vmatmul.mubr.bf16.gmra.mrb[0].mxu0 %v2272
      %v2539 = vpop.f32.mrb[0].mxu0
      %v2540 = vadd.f32 %v2500, %v2539
      %v2541 = vpop.f32.mrb[0].mxu0
      %v2542 = vpop.f32.mrb[0].mxu0
      %v2543 = vpop.f32.mrb[0].mxu0
      %2544 = vdwg.mxu0
      %v2545 = vld [vmem:[%s23] sm:$0x1]
      %v2547 = vlaneseq
      %v2548 = vshrl.u32 %v2547, 7
      %v2549 = vsub.s32 0, %v2548
      %v2550 = vrot.slane %v2545, %v2549
      %v2552 = vmul.f32 %v2540, %v2550
      %v2553 = vld [vmem:[%s25] sm:$0x1]
      %v2555 = vlaneseq
      %v2556 = vshrl.u32 %v2555, 7
      %v2557 = vsub.s32 0, %v2556
      %v2558 = vrot.slane %v2553, %v2557
      %v2560 = vadd.f32 %v2552, %v2558
      %v2561 = vmax.f32 %v2560, 0.0
      %v2562 = vpack.c.bf16 %v2561, %v2561
      %v2564 = vshrl.u32 %v2562, 16
      %v2566 = vrot.slane %v2564, 7
      %v2567 = vshll.u32 %v2562, 16
      %v2569 = vor.u32 %v2566, %v2567
      %v2571 = vsel %vm1673, 0, %v2569
      %v2572 = vrot.slane %v2567, 1
      %v2573 = vor.u32 %v2564, %v2572
      %vm2575 = vcmask 1041408
      %vm2576 = vsmask.f32 1280
      %vm2577 = vmand %vm2575, %vm2576
      %v2578 = vsel %vm2577, %v2573, 0
      %2580 = vrot.lane.b32.xlu0 %v2562, 64
      %v2581 = vpop.permute.xlu0 %2580
      %vm2582 = vcmask 523264
      %v2585 = vsel %vm2582, %v2571, %v2581
      %v2587 = vld [vmem:[%s27] sm:$0xf]
      %v2588 = vld [vmem:[%s27 + $0x4] sm:$0xf]
      %v2589 = vld [vmem:[%s27 + $0x8] sm:$0xf]
      %v2590 = vld [vmem:[%s27 + $0xc] sm:$0xf]
      %v2591 = vld [vmem:[%s27 + $0x10] sm:$0xf]
      %v2592 = vld [vmem:[%s27 + $0x14] sm:$0xf]
      %v2593 = vld [vmem:[%s27 + $0x18] sm:$0xf]
      %v2594 = vld [vmem:[%s27 + $0x1c] sm:$0xf]
      %v2595 = vld [vmem:[%s27 + $0x20] sm:$0xf]
      %v2596 = vld [vmem:[%s27 + $0x24] sm:$0xf]
      %v2597 = vld [vmem:[%s27 + $0x28] sm:$0xf]
      %v2598 = vld [vmem:[%s27 + $0x2c] sm:$0xf]
      %v2599 = vld [vmem:[%s27 + $0x30] sm:$0xf]
      %v2600 = vld [vmem:[%s27 + $0x34] sm:$0xf]
      %v2601 = vld [vmem:[%s27 + $0x38] sm:$0xf]
      %v2602 = vld [vmem:[%s27 + $0x3c] sm:$0xf]
      %v2603 = vld [vmem:[%s27 + $0x40] sm:$0xf]
      %v2604 = vld [vmem:[%s27 + $0x44] sm:$0xf]
      %v2605 = vld [vmem:[%s27 + $0x48] sm:$0xf]
      %v2606 = vld [vmem:[%s27 + $0x4c] sm:$0xf]
      %v2607 = vld [vmem:[%s27 + $0x50] sm:$0xf]
      %v2608 = vld [vmem:[%s27 + $0x54] sm:$0xf]
      %v2609 = vld [vmem:[%s27 + $0x58] sm:$0xf]
      %v2610 = vld [vmem:[%s27 + $0x5c] sm:$0xf]
      %v2635 = vunpack.c.l.b16 %v2587
      %v2636 = vunpack.c.l.b16 %v2588
      %v2637 = vunpack.c.l.b16 %v2589
      %v2638 = vunpack.c.l.b16 %v2590
      %v2639 = vunpack.c.l.b16 %v2591
      %v2640 = vunpack.c.l.b16 %v2592
      %v2641 = vunpack.c.l.b16 %v2593
      %v2642 = vunpack.c.l.b16 %v2594
      %v2643 = vunpack.c.l.b16 %v2595
      %v2644 = vunpack.c.l.b16 %v2596
      %v2645 = vunpack.c.l.b16 %v2597
      %v2646 = vunpack.c.l.b16 %v2598
      %v2647 = vunpack.c.l.b16 %v2599
      %v2648 = vunpack.c.l.b16 %v2600
      %v2649 = vunpack.c.l.b16 %v2601
      %v2650 = vunpack.c.l.b16 %v2602
      %v2651 = vunpack.c.l.b16 %v2603
      %v2652 = vunpack.c.l.b16 %v2604
      %v2653 = vunpack.c.l.b16 %v2605
      %v2654 = vunpack.c.l.b16 %v2606
      %v2655 = vunpack.c.l.b16 %v2607
      %v2656 = vunpack.c.l.b16 %v2608
      %v2657 = vunpack.c.l.b16 %v2609
      %v2658 = vunpack.c.l.b16 %v2610
      %v2659 = vpack.c.b16 %v2636, %v2635
      %v2660 = vpack.c.b16 %v2638, %v2637
      %v2661 = vpack.c.b16 %v2640, %v2639
      %v2662 = vpack.c.b16 %v2642, %v2641
      %v2663 = vpack.c.b16 %v2644, %v2643
      %v2664 = vpack.c.b16 %v2646, %v2645
      %v2665 = vpack.c.b16 %v2648, %v2647
      %v2666 = vpack.c.b16 %v2650, %v2649
      %v2667 = vpack.c.b16 %v2652, %v2651
      %v2668 = vpack.c.b16 %v2654, %v2653
      %v2669 = vpack.c.b16 %v2656, %v2655
      %v2670 = vpack.c.b16 %v2658, %v2657
      %v2684 = vsel %vm2582, %v2578, 0
      %2686 = vmatprep.subr.bf16.mxu0 0
      %2687 = vmatpush1.bf16.msra.mxu0 %v2659
      %2688 = vmatprep.subr.bf16.mxu0 0
      %2689 = vmatpush1.bf16.msra.mxu0 %v2660
      %2690 = vmatprep.subr.bf16.mxu0 0
      %2691 = vmatpush1.bf16.msra.mxu0 %v2661
      %2692 = vmatprep.subr.bf16.mxu0 0
      %2693 = vmatpush1.bf16.msra.mxu0 %v2662
      %2694 = vmatprep.subr.bf16.mxu0 0
      %2695 = vmatpush1.bf16.msra.mxu0 %v2663
      %2696 = vmatprep.subr.bf16.mxu0 0
      %2697 = vmatpush1.bf16.msra.mxu0 %v2664
      %2698 = vmatprep.subr.bf16.mxu0 0
      %2699 = vmatpush1.bf16.msra.mxu0 %v2665
      %2700 = vmatprep.subr.bf16.mxu0 0
      %2701 = vmatpush1.bf16.msra.mxu0 %v2666
      %2702 = vmatprep.subr.bf16.mxu0 0
      %2703 = vmatpush1.bf16.msra.mxu0 %v2667
      %2704 = vmatprep.subr.bf16.mxu0 0
      %2705 = vmatpush1.bf16.msra.mxu0 %v2668
      %2706 = vmatprep.subr.bf16.mxu0 0
      %2707 = vmatpush1.bf16.msra.mxu0 %v2669
      %2708 = vmatprep.subr.bf16.mxu0 0
      %2709 = vmatpush1.bf16.msra.mxu0 %v2670
      %2710 = vmatprep.subr.bf16.mxu0 0
      %2711 = vmatpush1.bf16.msra.mxu0 0
      %2712 = vmatprep.subr.bf16.mxu0 0
      %2713 = vmatpush1.bf16.msra.mxu0 0
      %2714 = vmatprep.subr.bf16.mxu0 0
      %2715 = vmatpush1.bf16.msra.mxu0 0
      %2716 = vmatprep.subr.bf16.mxu0 0
      %2717 = vmatpush1.bf16.msra.mxu0 0
      %2718 = vmatprep.mubr.bf16.mxu0 %v2684
      %2719 = vmatmul.mubr.bf16.gmra.mrb[0].mxu0 %v2585
      %v2720 = vpop.f32.mrb[0].mxu0
      %v2721 = vadd.f32 0.0, %v2720
      %v2722 = vpop.f32.mrb[0].mxu0
      %v2723 = vpop.f32.mrb[0].mxu0
      %v2724 = vpop.f32.mrb[0].mxu0
      %2725 = vdwg.mxu0
      %v2726 = vld [vmem:[%s29] sm:$0x1]
      %v2728 = vlaneseq
      %v2729 = vshrl.u32 %v2728, 7
      %v2730 = vsub.s32 0, %v2729
      %v2731 = vrot.slane %v2726, %v2730
      %v2733 = vmul.f32 %v2721, %v2731
      %v2734 = vld [vmem:[%s31] sm:$0x1]
      %v2736 = vlaneseq
      %v2737 = vshrl.u32 %v2736, 7
      %v2738 = vsub.s32 0, %v2737
      %v2739 = vrot.slane %v2734, %v2738
      %v2741 = vadd.f32 %v2733, %v2739
      %v2742 = vmax.f32 %v2741, 0.0
      %v2743 = vpack.c.bf16 %v2742, %v2742
      %v2744 = vmul.u32 %v978, 2
      %vm2745 = vcmp.eq.s32.totalorder %v976, %v2744
      %v2746 = vsel %vm2745, 1.0, 0.0
      %v2747 = vpack.c.bf16 %v2746, %v2746
      %vm2748 = vcmask 31744
      %v2750 = vsel %vm2748, %v2747, 0
      %vm2752 = vcmask 1041408
      %v2754 = vsel %vm2752, %v2743, 0
      %2756 = vmatprep.subr.bf16.mxu0 0
      %2757 = vmatpush1.bf16.msra.mxu0 %v2754
      %2758 = vmatprep.subr.bf16.mxu0 0
      %2759 = vmatpush1.bf16.msra.mxu0 0
      %2760 = vmatprep.subr.bf16.mxu0 0
      %2761 = vmatpush1.bf16.msra.mxu0 0
      %2762 = vmatprep.subr.bf16.mxu0 0
      %2763 = vmatpush1.bf16.msra.mxu0 0
      %2764 = vmatprep.subr.bf16.mxu0 0
      %2765 = vmatpush1.bf16.msra.mxu0 0
      %2766 = vmatprep.subr.bf16.mxu0 0
      %2767 = vmatpush1.bf16.msra.mxu0 0
      %2768 = vmatprep.subr.bf16.mxu0 0
      %2769 = vmatpush1.bf16.msra.mxu0 0
      %2770 = vmatprep.subr.bf16.mxu0 0
      %2771 = vmatpush1.bf16.msra.mxu0 0
      %2772 = vmatprep.subr.bf16.mxu0 0
      %2773 = vmatpush1.bf16.msra.mxu0 0
      %2774 = vmatprep.subr.bf16.mxu0 0
      %2775 = vmatpush1.bf16.msra.mxu0 0
      %2776 = vmatprep.subr.bf16.mxu0 0
      %2777 = vmatpush1.bf16.msra.mxu0 0
      %2778 = vmatprep.subr.bf16.mxu0 0
      %2779 = vmatpush1.bf16.msra.mxu0 0
      %2780 = vmatprep.subr.bf16.mxu0 0
      %2781 = vmatpush1.bf16.msra.mxu0 0
      %2782 = vmatprep.subr.bf16.mxu0 0
      %2783 = vmatpush1.bf16.msra.mxu0 0
      %2784 = vmatprep.subr.bf16.mxu0 0
      %2785 = vmatpush1.bf16.msra.mxu0 0
      %2786 = vmatprep.subr.bf16.mxu0 0
      %2787 = vmatpush1.bf16.msra.mxu0 0
      %2788 = vmatprep.mubr.bf16.mxu0 0
      %2789 = vmatmul.mubr.bf16.gmra.mrb[0].mxu0 %v2750
      %v2790 = vpop.f32.mrb[0].mxu0
      %v2791 = vadd.f32 0.0, %v2790
      %v2792 = vpop.f32.mrb[0].mxu0
      %v2793 = vpop.f32.mrb[0].mxu0
      %v2794 = vpop.f32.mrb[0].mxu0
      %2795 = vdwg.mxu0
      %v2796 = vpack.c.bf16 %v2791, %v2791
      %v2797 = vadd.s32 %v2744, 1
      %vm2798 = vcmp.eq.s32.totalorder %v976, %v2797
      %v2799 = vsel %vm2798, 1.0, 0.0
      %v2800 = vpack.c.bf16 %v2799, %v2799
      %v2802 = vsel %vm2748, %v2800, 0
      %2804 = vmatprep.subr.bf16.mxu0 0
      %2805 = vmatpush1.bf16.msra.mxu0 %v2754
      %2806 = vmatprep.subr.bf16.mxu0 0
      %2807 = vmatpush1.bf16.msra.mxu0 0
      %2808 = vmatprep.subr.bf16.mxu0 0
      %2809 = vmatpush1.bf16.msra.mxu0 0
      %2810 = vmatprep.subr.bf16.mxu0 0
      %2811 = vmatpush1.bf16.msra.mxu0 0
      %2812 = vmatprep.subr.bf16.mxu0 0
      %2813 = vmatpush1.bf16.msra.mxu0 0
      %2814 = vmatprep.subr.bf16.mxu0 0
      %2815 = vmatpush1.bf16.msra.mxu0 0
      %2816 = vmatprep.subr.bf16.mxu0 0
      %2817 = vmatpush1.bf16.msra.mxu0 0
      %2818 = vmatprep.subr.bf16.mxu0 0
      %2819 = vmatpush1.bf16.msra.mxu0 0
      %2820 = vmatprep.subr.bf16.mxu0 0
      %2821 = vmatpush1.bf16.msra.mxu0 0
      %2822 = vmatprep.subr.bf16.mxu0 0
      %2823 = vmatpush1.bf16.msra.mxu0 0
      %2824 = vmatprep.subr.bf16.mxu0 0
      %2825 = vmatpush1.bf16.msra.mxu0 0
      %2826 = vmatprep.subr.bf16.mxu0 0
      %2827 = vmatpush1.bf16.msra.mxu0 0
      %2828 = vmatprep.subr.bf16.mxu0 0
      %2829 = vmatpush1.bf16.msra.mxu0 0
      %2830 = vmatprep.subr.bf16.mxu0 0
      %2831 = vmatpush1.bf16.msra.mxu0 0
      %2832 = vmatprep.subr.bf16.mxu0 0
      %2833 = vmatpush1.bf16.msra.mxu0 0
      %2834 = vmatprep.subr.bf16.mxu0 0
      %2835 = vmatpush1.bf16.msra.mxu0 0
      %2836 = vmatprep.mubr.bf16.mxu0 0
      %2837 = vmatmul.mubr.bf16.gmra.mrb[0].mxu0 %v2802
      %v2838 = vpop.f32.mrb[0].mxu0
      %v2839 = vadd.f32 0.0, %v2838
      %v2840 = vpop.f32.mrb[0].mxu0
      %v2841 = vpop.f32.mrb[0].mxu0
      %v2842 = vpop.f32.mrb[0].mxu0
      %2843 = vdwg.mxu0
      %v2844 = vpack.c.bf16 %v2839, %v2839
      %2846 = vrot.lane.b32.xlu0 %v2844, 64
      %v2847 = vpop.permute.xlu0 %2846
      %v2850 = vsel %vm2582, %v2796, %v2847
      %v2852 = vld [vmem:[%s33] sm:$0xff]
      %v2853 = vld [vmem:[%s33 + $0x8] sm:$0xff]
      %v2854 = vld [vmem:[%s33 + $0x10] sm:$0xff]
      %v2855 = vld [vmem:[%s33 + $0x18] sm:$0xff]
      %v2856 = vld [vmem:[%s33 + $0x20] sm:$0xff]
      %v2857 = vld [vmem:[%s33 + $0x28] sm:$0xff]
      %v2858 = vld [vmem:[%s33 + $0x30] sm:$0xff]
      %v2859 = vld [vmem:[%s33 + $0x38] sm:$0xff]
      %v2860 = vld [vmem:[%s33 + $0x40] sm:$0xff]
      %v2861 = vld [vmem:[%s33 + $0x48] sm:$0xff]
      %v2862 = vld [vmem:[%s33 + $0x50] sm:$0xff]
      %v2863 = vld [vmem:[%s33 + $0x58] sm:$0xff]
      %v2864 = vld [vmem:[%s33 + $0x60] sm:$0xff]
      %v2865 = vld [vmem:[%s33 + $0x68] sm:$0xff]
      %v2866 = vld [vmem:[%s33 + $0x70] sm:$0xff]
      %v2867 = vld [vmem:[%s33 + $0x78] sm:$0xff]
      %v2884 = vunpack.c.l.b16 %v2852
      %v2885 = vunpack.c.h.b16 %v2852
      %v2886 = vunpack.c.l.b16 %v2853
      %v2887 = vunpack.c.h.b16 %v2853
      %v2888 = vunpack.c.l.b16 %v2854
      %v2889 = vunpack.c.h.b16 %v2854
      %v2890 = vunpack.c.l.b16 %v2855
      %v2891 = vunpack.c.h.b16 %v2855
      %v2892 = vunpack.c.l.b16 %v2856
      %v2893 = vunpack.c.h.b16 %v2856
      %v2894 = vunpack.c.l.b16 %v2857
      %v2895 = vunpack.c.h.b16 %v2857
      %v2896 = vunpack.c.l.b16 %v2858
      %v2897 = vunpack.c.h.b16 %v2858
      %v2898 = vunpack.c.l.b16 %v2859
      %v2899 = vunpack.c.h.b16 %v2859
      %v2900 = vunpack.c.l.b16 %v2860
      %v2901 = vunpack.c.h.b16 %v2860
      %v2902 = vunpack.c.l.b16 %v2861
      %v2903 = vunpack.c.h.b16 %v2861
      %v2904 = vunpack.c.l.b16 %v2862
      %v2905 = vunpack.c.h.b16 %v2862
      %v2906 = vunpack.c.l.b16 %v2863
      %v2907 = vunpack.c.h.b16 %v2863
      %v2908 = vunpack.c.l.b16 %v2864
      %v2909 = vunpack.c.h.b16 %v2864
      %v2910 = vunpack.c.l.b16 %v2865
      %v2911 = vunpack.c.h.b16 %v2865
      %v2912 = vunpack.c.l.b16 %v2866
      %v2913 = vunpack.c.h.b16 %v2866
      %v2914 = vunpack.c.l.b16 %v2867
      %v2915 = vunpack.c.h.b16 %v2867
      %v2916 = vpack.c.b16 %v2886, %v2884
      %v2917 = vpack.c.b16 %v2887, %v2885
      %v2918 = vpack.c.b16 %v2890, %v2888
      %v2919 = vpack.c.b16 %v2891, %v2889
      %v2920 = vpack.c.b16 %v2894, %v2892
      %v2921 = vpack.c.b16 %v2895, %v2893
      %v2922 = vpack.c.b16 %v2898, %v2896
      %v2923 = vpack.c.b16 %v2899, %v2897
      %v2924 = vpack.c.b16 %v2902, %v2900
      %v2925 = vpack.c.b16 %v2903, %v2901
      %v2926 = vpack.c.b16 %v2906, %v2904
      %v2927 = vpack.c.b16 %v2907, %v2905
      %v2928 = vpack.c.b16 %v2910, %v2908
      %v2929 = vpack.c.b16 %v2911, %v2909
      %v2930 = vpack.c.b16 %v2914, %v2912
      %v2931 = vpack.c.b16 %v2915, %v2913
      %2948 = vmatprep.subr.bf16.mxu0 %v2917
      %2949 = vmatpush1.bf16.msra.mxu0 %v2916
      %2950 = vmatprep.subr.bf16.mxu0 %v2919
      %2951 = vmatpush1.bf16.msra.mxu0 %v2918
      %2952 = vmatprep.subr.bf16.mxu0 %v2921
      %2953 = vmatpush1.bf16.msra.mxu0 %v2920
      %2954 = vmatprep.subr.bf16.mxu0 %v2923
      %2955 = vmatpush1.bf16.msra.mxu0 %v2922
      %2956 = vmatprep.subr.bf16.mxu0 %v2925
      %2957 = vmatpush1.bf16.msra.mxu0 %v2924
      %2958 = vmatprep.subr.bf16.mxu0 %v2927
      %2959 = vmatpush1.bf16.msra.mxu0 %v2926
      %2960 = vmatprep.subr.bf16.mxu0 %v2929
      %2961 = vmatpush1.bf16.msra.mxu0 %v2928
      %2962 = vmatprep.subr.bf16.mxu0 %v2931
      %2963 = vmatpush1.bf16.msra.mxu0 %v2930
      %2964 = vmatprep.subr.bf16.mxu0 0
      %2965 = vmatpush1.bf16.msra.mxu0 0
      %2966 = vmatprep.subr.bf16.mxu0 0
      %2967 = vmatpush1.bf16.msra.mxu0 0
      %2968 = vmatprep.subr.bf16.mxu0 0
      %2969 = vmatpush1.bf16.msra.mxu0 0
      %2970 = vmatprep.subr.bf16.mxu0 0
      %2971 = vmatpush1.bf16.msra.mxu0 0
      %2972 = vmatprep.subr.bf16.mxu0 0
      %2973 = vmatpush1.bf16.msra.mxu0 0
      %2974 = vmatprep.subr.bf16.mxu0 0
      %2975 = vmatpush1.bf16.msra.mxu0 0
      %2976 = vmatprep.subr.bf16.mxu0 0
      %2977 = vmatpush1.bf16.msra.mxu0 0
      %2978 = vmatprep.subr.bf16.mxu0 0
      %2979 = vmatpush1.bf16.msra.mxu0 0
      %2980 = vmatprep.mubr.bf16.mxu0 0
      %2981 = vmatmul.mubr.bf16.gmra.mrb[0].mxu0 %v2850
      %v2982 = vpop.f32.mrb[0].mxu0
      %v2983 = vadd.f32 0.0, %v2982
      %v2984 = vpop.f32.mrb[0].mxu0
      %v2985 = vadd.f32 0.0, %v2984
      %v2986 = vpop.f32.mrb[0].mxu0
      %v2987 = vpop.f32.mrb[0].mxu0
      %2988 = vdwg.mxu0
      %v2989 = vld [vmem:[%s35] sm:$0x3]
      %v2991 = vlaneseq
      %v2992 = vshrl.u32 %v2991, 7
      %v2993 = vsub.s32 0, %v2992
      %v2994 = vrot.slane %v2989, %v2993
      %v2995 = vlaneseq
      %v2996 = vshrl.u32 %v2995, 7
      %v2997 = vsub.s32 1, %v2996
      %v2998 = vrot.slane %v2989, %v2997
      %v3001 = vmul.f32 %v2983, %v2994
      %v3002 = vmul.f32 %v2985, %v2998
      %v3003 = vld [vmem:[%s37] sm:$0x3]
      %v3005 = vlaneseq
      %v3006 = vshrl.u32 %v3005, 7
      %v3007 = vsub.s32 0, %v3006
      %v3008 = vrot.slane %v3003, %v3007
      %v3009 = vlaneseq
      %v3010 = vshrl.u32 %v3009, 7
      %v3011 = vsub.s32 1, %v3010
      %v3012 = vrot.slane %v3003, %v3011
      %v3015 = vadd.f32 %v3001, %v3008
      %v3016 = vadd.f32 %v3002, %v3012
      %v3017 = vmax.f32 %v3015, 0.0
      %v3018 = vmax.f32 %v3016, 0.0
      %v3019 = vsel %vm2748, %v983, 0
      %3021 = vmatprep.subr.bf16.mxu0 0
      %3022 = vmatpush1.bf16.msra.mxu0 %v2754
      %3023 = vmatprep.subr.bf16.mxu0 0
      %3024 = vmatpush1.bf16.msra.mxu0 0
      %3025 = vmatprep.subr.bf16.mxu0 0
      %3026 = vmatpush1.bf16.msra.mxu0 0
      %3027 = vmatprep.subr.bf16.mxu0 0
      %3028 = vmatpush1.bf16.msra.mxu0 0
      %3029 = vmatprep.subr.bf16.mxu0 0
      %3030 = vmatpush1.bf16.msra.mxu0 0
      %3031 = vmatprep.subr.bf16.mxu0 0
      %3032 = vmatpush1.bf16.msra.mxu0 0
      %3033 = vmatprep.subr.bf16.mxu0 0
      %3034 = vmatpush1.bf16.msra.mxu0 0
      %3035 = vmatprep.subr.bf16.mxu0 0
      %3036 = vmatpush1.bf16.msra.mxu0 0
      %3037 = vmatprep.subr.bf16.mxu0 0
      %3038 = vmatpush1.bf16.msra.mxu0 0
      %3039 = vmatprep.subr.bf16.mxu0 0
      %3040 = vmatpush1.bf16.msra.mxu0 0
      %3041 = vmatprep.subr.bf16.mxu0 0
      %3042 = vmatpush1.bf16.msra.mxu0 0
      %3043 = vmatprep.subr.bf16.mxu0 0
      %3044 = vmatpush1.bf16.msra.mxu0 0
      %3045 = vmatprep.subr.bf16.mxu0 0
      %3046 = vmatpush1.bf16.msra.mxu0 0
      %3047 = vmatprep.subr.bf16.mxu0 0
      %3048 = vmatpush1.bf16.msra.mxu0 0
      %3049 = vmatprep.subr.bf16.mxu0 0
      %3050 = vmatpush1.bf16.msra.mxu0 0
      %3051 = vmatprep.subr.bf16.mxu0 0
      %3052 = vmatpush1.bf16.msra.mxu0 0
      %3053 = vmatprep.mubr.bf16.mxu0 0
      %3054 = vmatmul.mubr.bf16.gmra.mrb[0].mxu0 %v3019
      %v3055 = vpop.f32.mrb[0].mxu0
      %v3056 = vadd.f32 0.0, %v3055
      %v3057 = vpop.f32.mrb[0].mxu0
      %v3058 = vpop.f32.mrb[0].mxu0
      %v3059 = vpop.f32.mrb[0].mxu0
      %3060 = vdwg.mxu0
      %v3061 = vpack.c.bf16 %v3056, %v3056
      %v3062 = vsel %vm2748, %v1043, 0
      %3064 = vmatprep.subr.bf16.mxu0 0
      %3065 = vmatpush1.bf16.msra.mxu0 %v2754
      %3066 = vmatprep.subr.bf16.mxu0 0
      %3067 = vmatpush1.bf16.msra.mxu0 0
      %3068 = vmatprep.subr.bf16.mxu0 0
      %3069 = vmatpush1.bf16.msra.mxu0 0
      %3070 = vmatprep.subr.bf16.mxu0 0
      %3071 = vmatpush1.bf16.msra.mxu0 0
      %3072 = vmatprep.subr.bf16.mxu0 0
      %3073 = vmatpush1.bf16.msra.mxu0 0
      %3074 = vmatprep.subr.bf16.mxu0 0
      %3075 = vmatpush1.bf16.msra.mxu0 0
      %3076 = vmatprep.subr.bf16.mxu0 0
      %3077 = vmatpush1.bf16.msra.mxu0 0
      %3078 = vmatprep.subr.bf16.mxu0 0
      %3079 = vmatpush1.bf16.msra.mxu0 0
      %3080 = vmatprep.subr.bf16.mxu0 0
      %3081 = vmatpush1.bf16.msra.mxu0 0
      %3082 = vmatprep.subr.bf16.mxu0 0
      %3083 = vmatpush1.bf16.msra.mxu0 0
      %3084 = vmatprep.subr.bf16.mxu0 0
      %3085 = vmatpush1.bf16.msra.mxu0 0
      %3086 = vmatprep.subr.bf16.mxu0 0
      %3087 = vmatpush1.bf16.msra.mxu0 0
      %3088 = vmatprep.subr.bf16.mxu0 0
      %3089 = vmatpush1.bf16.msra.mxu0 0
      %3090 = vmatprep.subr.bf16.mxu0 0
      %3091 = vmatpush1.bf16.msra.mxu0 0
      %3092 = vmatprep.subr.bf16.mxu0 0
      %3093 = vmatpush1.bf16.msra.mxu0 0
      %3094 = vmatprep.subr.bf16.mxu0 0
      %3095 = vmatpush1.bf16.msra.mxu0 0
      %3096 = vmatprep.mubr.bf16.mxu0 0
      %3097 = vmatmul.mubr.bf16.gmra.mrb[0].mxu0 %v3062
      %v3098 = vpop.f32.mrb[0].mxu0
      %v3099 = vadd.f32 0.0, %v3098
      %v3100 = vpop.f32.mrb[0].mxu0
      %v3101 = vpop.f32.mrb[0].mxu0
      %v3102 = vpop.f32.mrb[0].mxu0
      %3103 = vdwg.mxu0
      %v3104 = vpack.c.bf16 %v3099, %v3099
      %v3105 = vsel %vm2748, %v1094, 0
      %3107 = vmatprep.subr.bf16.mxu0 0
      %3108 = vmatpush1.bf16.msra.mxu0 %v2754
      %3109 = vmatprep.subr.bf16.mxu0 0
      %3110 = vmatpush1.bf16.msra.mxu0 0
      %3111 = vmatprep.subr.bf16.mxu0 0
      %3112 = vmatpush1.bf16.msra.mxu0 0
      %3113 = vmatprep.subr.bf16.mxu0 0
      %3114 = vmatpush1.bf16.msra.mxu0 0
      %3115 = vmatprep.subr.bf16.mxu0 0
      %3116 = vmatpush1.bf16.msra.mxu0 0
      %3117 = vmatprep.subr.bf16.mxu0 0
      %3118 = vmatpush1.bf16.msra.mxu0 0
      %3119 = vmatprep.subr.bf16.mxu0 0
      %3120 = vmatpush1.bf16.msra.mxu0 0
      %3121 = vmatprep.subr.bf16.mxu0 0
      %3122 = vmatpush1.bf16.msra.mxu0 0
      %3123 = vmatprep.subr.bf16.mxu0 0
      %3124 = vmatpush1.bf16.msra.mxu0 0
      %3125 = vmatprep.subr.bf16.mxu0 0
      %3126 = vmatpush1.bf16.msra.mxu0 0
      %3127 = vmatprep.subr.bf16.mxu0 0
      %3128 = vmatpush1.bf16.msra.mxu0 0
      %3129 = vmatprep.subr.bf16.mxu0 0
      %3130 = vmatpush1.bf16.msra.mxu0 0
      %3131 = vmatprep.subr.bf16.mxu0 0
      %3132 = vmatpush1.bf16.msra.mxu0 0
      %3133 = vmatprep.subr.bf16.mxu0 0
      %3134 = vmatpush1.bf16.msra.mxu0 0
      %3135 = vmatprep.subr.bf16.mxu0 0
      %3136 = vmatpush1.bf16.msra.mxu0 0
      %3137 = vmatprep.subr.bf16.mxu0 0
      %3138 = vmatpush1.bf16.msra.mxu0 0
      %3139 = vmatprep.mubr.bf16.mxu0 0
      %3140 = vmatmul.mubr.bf16.gmra.mrb[0].mxu0 %v3105
      %v3141 = vpop.f32.mrb[0].mxu0
      %v3142 = vadd.f32 0.0, %v3141
      %v3143 = vpop.f32.mrb[0].mxu0
      %v3144 = vpop.f32.mrb[0].mxu0
      %v3145 = vpop.f32.mrb[0].mxu0
      %3146 = vdwg.mxu0
      %v3147 = vpack.c.bf16 %v3142, %v3142
      %3149 = vrot.lane.b32.xlu0 %v3104, 64
      %v3150 = vpop.permute.xlu0 %3149
      %v3153 = vsel %vm2582, %v3061, %v3150
      %v3155 = vld [vmem:[%s39] sm:$0xf]
      %v3156 = vld [vmem:[%s39 + $0x4] sm:$0xf]
      %v3157 = vld [vmem:[%s39 + $0x8] sm:$0xf]
      %v3158 = vld [vmem:[%s39 + $0xc] sm:$0xf]
      %v3159 = vld [vmem:[%s39 + $0x10] sm:$0xf]
      %v3160 = vld [vmem:[%s39 + $0x14] sm:$0xf]
      %v3161 = vld [vmem:[%s39 + $0x18] sm:$0xf]
      %v3162 = vld [vmem:[%s39 + $0x1c] sm:$0xf]
      %v3163 = vld [vmem:[%s39 + $0x20] sm:$0xf]
      %v3164 = vld [vmem:[%s39 + $0x24] sm:$0xf]
      %v3165 = vld [vmem:[%s39 + $0x28] sm:$0xf]
      %v3166 = vld [vmem:[%s39 + $0x2c] sm:$0xf]
      %v3167 = vld [vmem:[%s39 + $0x30] sm:$0xf]
      %v3168 = vld [vmem:[%s39 + $0x34] sm:$0xf]
      %v3169 = vld [vmem:[%s39 + $0x38] sm:$0xf]
      %v3170 = vld [vmem:[%s39 + $0x3c] sm:$0xf]
      %v3171 = vld [vmem:[%s39 + $0x40] sm:$0xf]
      %v3172 = vld [vmem:[%s39 + $0x44] sm:$0xf]
      %v3173 = vld [vmem:[%s39 + $0x48] sm:$0xf]
      %v3174 = vld [vmem:[%s39 + $0x4c] sm:$0xf]
      %v3175 = vld [vmem:[%s39 + $0x50] sm:$0xf]
      %v3176 = vld [vmem:[%s39 + $0x54] sm:$0xf]
      %v3177 = vld [vmem:[%s39 + $0x58] sm:$0xf]
      %v3178 = vld [vmem:[%s39 + $0x5c] sm:$0xf]
      %v3203 = vunpack.c.l.b16 %v3155
      %v3204 = vunpack.c.l.b16 %v3156
      %v3205 = vunpack.c.l.b16 %v3157
      %v3206 = vunpack.c.l.b16 %v3158
      %v3207 = vunpack.c.l.b16 %v3159
      %v3208 = vunpack.c.l.b16 %v3160
      %v3209 = vunpack.c.l.b16 %v3161
      %v3210 = vunpack.c.l.b16 %v3162
      %v3211 = vunpack.c.l.b16 %v3163
      %v3212 = vunpack.c.l.b16 %v3164
      %v3213 = vunpack.c.l.b16 %v3165
      %v3214 = vunpack.c.l.b16 %v3166
      %v3215 = vunpack.c.l.b16 %v3167
      %v3216 = vunpack.c.l.b16 %v3168
      %v3217 = vunpack.c.l.b16 %v3169
      %v3218 = vunpack.c.l.b16 %v3170
      %v3219 = vunpack.c.l.b16 %v3171
      %v3220 = vunpack.c.l.b16 %v3172
      %v3221 = vunpack.c.l.b16 %v3173
      %v3222 = vunpack.c.l.b16 %v3174
      %v3223 = vunpack.c.l.b16 %v3175
      %v3224 = vunpack.c.l.b16 %v3176
      %v3225 = vunpack.c.l.b16 %v3177
      %v3226 = vunpack.c.l.b16 %v3178
      %v3227 = vpack.c.b16 %v3204, %v3203
      %v3228 = vpack.c.b16 %v3206, %v3205
      %v3229 = vpack.c.b16 %v3208, %v3207
      %v3230 = vpack.c.b16 %v3210, %v3209
      %v3231 = vpack.c.b16 %v3212, %v3211
      %v3232 = vpack.c.b16 %v3214, %v3213
      %v3233 = vpack.c.b16 %v3216, %v3215
      %v3234 = vpack.c.b16 %v3218, %v3217
      %v3235 = vpack.c.b16 %v3220, %v3219
      %v3236 = vpack.c.b16 %v3222, %v3221
      %v3237 = vpack.c.b16 %v3224, %v3223
      %v3238 = vpack.c.b16 %v3226, %v3225
      %v3252 = vsel %vm2582, %v3147, 0
      %3254 = vmatprep.subr.bf16.mxu0 0
      %3255 = vmatpush1.bf16.msra.mxu0 %v3227
      %3256 = vmatprep.subr.bf16.mxu0 0
      %3257 = vmatpush1.bf16.msra.mxu0 %v3228
      %3258 = vmatprep.subr.bf16.mxu0 0
      %3259 = vmatpush1.bf16.msra.mxu0 %v3229
      %3260 = vmatprep.subr.bf16.mxu0 0
      %3261 = vmatpush1.bf16.msra.mxu0 %v3230
      %3262 = vmatprep.subr.bf16.mxu0 0
      %3263 = vmatpush1.bf16.msra.mxu0 %v3231
      %3264 = vmatprep.subr.bf16.mxu0 0
      %3265 = vmatpush1.bf16.msra.mxu0 %v3232
      %3266 = vmatprep.subr.bf16.mxu0 0
      %3267 = vmatpush1.bf16.msra.mxu0 %v3233
      %3268 = vmatprep.subr.bf16.mxu0 0
      %3269 = vmatpush1.bf16.msra.mxu0 %v3234
      %3270 = vmatprep.subr.bf16.mxu0 0
      %3271 = vmatpush1.bf16.msra.mxu0 %v3235
      %3272 = vmatprep.subr.bf16.mxu0 0
      %3273 = vmatpush1.bf16.msra.mxu0 %v3236
      %3274 = vmatprep.subr.bf16.mxu0 0
      %3275 = vmatpush1.bf16.msra.mxu0 %v3237
      %3276 = vmatprep.subr.bf16.mxu0 0
      %3277 = vmatpush1.bf16.msra.mxu0 %v3238
      %3278 = vmatprep.subr.bf16.mxu0 0
      %3279 = vmatpush1.bf16.msra.mxu0 0
      %3280 = vmatprep.subr.bf16.mxu0 0
      %3281 = vmatpush1.bf16.msra.mxu0 0
      %3282 = vmatprep.subr.bf16.mxu0 0
      %3283 = vmatpush1.bf16.msra.mxu0 0
      %3284 = vmatprep.subr.bf16.mxu0 0
      %3285 = vmatpush1.bf16.msra.mxu0 0
      %3286 = vmatprep.mubr.bf16.mxu0 %v3252
      %3287 = vmatmul.mubr.bf16.gmra.mrb[0].mxu0 %v3153
      %v3288 = vpop.f32.mrb[0].mxu0
      %v3289 = vadd.f32 0.0, %v3288
      %v3290 = vpop.f32.mrb[0].mxu0
      %v3291 = vpop.f32.mrb[0].mxu0
      %v3292 = vpop.f32.mrb[0].mxu0
      %3293 = vdwg.mxu0
      %v3294 = vld [vmem:[%s41] sm:$0x1]
      %v3296 = vlaneseq
      %v3297 = vshrl.u32 %v3296, 7
      %v3298 = vsub.s32 0, %v3297
      %v3299 = vrot.slane %v3294, %v3298
      %v3301 = vmul.f32 %v3289, %v3299
      %v3302 = vld [vmem:[%s43] sm:$0x1]
      %v3304 = vlaneseq
      %v3305 = vshrl.u32 %v3304, 7
      %v3306 = vsub.s32 0, %v3305
      %v3307 = vrot.slane %v3302, %v3306
      %v3309 = vadd.f32 %v3301, %v3307
      %v3310 = vmax.f32 %v3309, 0.0
      %v3311 = vpack.c.bf16 %v3310, %v3310
      %v3313 = vshll.u32 %v3311, 16
      %v3316 = vsel %vm1673, 0, %v3313
      %v3317 = vshrl.u32 %v3311, 16
      %v3320 = vsel %vm1673, %v3317, 0
      %3322 = vrot.lane.b32.xlu0 %v3311, 64
      %v3323 = vpop.permute.xlu0 %3322
      %v3326 = vsel %vm2582, %v3316, %v3323
      %v3328 = vld [vmem:[%s45] sm:$0xf]
      %v3329 = vld [vmem:[%s45 + $0x4] sm:$0xf]
      %v3330 = vld [vmem:[%s45 + $0x8] sm:$0xf]
      %v3331 = vld [vmem:[%s45 + $0xc] sm:$0xf]
      %v3332 = vld [vmem:[%s45 + $0x10] sm:$0xf]
      %v3333 = vld [vmem:[%s45 + $0x14] sm:$0xf]
      %v3334 = vld [vmem:[%s45 + $0x18] sm:$0xf]
      %v3335 = vld [vmem:[%s45 + $0x1c] sm:$0xf]
      %v3336 = vld [vmem:[%s45 + $0x20] sm:$0xf]
      %v3337 = vld [vmem:[%s45 + $0x24] sm:$0xf]
      %v3338 = vld [vmem:[%s45 + $0x28] sm:$0xf]
      %v3339 = vld [vmem:[%s45 + $0x2c] sm:$0xf]
      %v3340 = vld [vmem:[%s45 + $0x30] sm:$0xf]
      %v3341 = vld [vmem:[%s45 + $0x34] sm:$0xf]
      %v3342 = vld [vmem:[%s45 + $0x38] sm:$0xf]
      %v3343 = vld [vmem:[%s45 + $0x3c] sm:$0xf]
      %v3344 = vld [vmem:[%s45 + $0x40] sm:$0xf]
      %v3345 = vld [vmem:[%s45 + $0x44] sm:$0xf]
      %v3346 = vld [vmem:[%s45 + $0x48] sm:$0xf]
      %v3347 = vld [vmem:[%s45 + $0x4c] sm:$0xf]
      %v3348 = vld [vmem:[%s45 + $0x50] sm:$0xf]
      %v3349 = vld [vmem:[%s45 + $0x54] sm:$0xf]
      %v3350 = vld [vmem:[%s45 + $0x58] sm:$0xf]
      %v3351 = vld [vmem:[%s45 + $0x5c] sm:$0xf]
      %v3376 = vunpack.c.l.b16 %v3328
      %v3377 = vunpack.c.l.b16 %v3329
      %v3378 = vunpack.c.l.b16 %v3330
      %v3379 = vunpack.c.l.b16 %v3331
      %v3380 = vunpack.c.l.b16 %v3332
      %v3381 = vunpack.c.l.b16 %v3333
      %v3382 = vunpack.c.l.b16 %v3334
      %v3383 = vunpack.c.l.b16 %v3335
      %v3384 = vunpack.c.l.b16 %v3336
      %v3385 = vunpack.c.l.b16 %v3337
      %v3386 = vunpack.c.l.b16 %v3338
      %v3387 = vunpack.c.l.b16 %v3339
      %v3388 = vunpack.c.l.b16 %v3340
      %v3389 = vunpack.c.l.b16 %v3341
      %v3390 = vunpack.c.l.b16 %v3342
      %v3391 = vunpack.c.l.b16 %v3343
      %v3392 = vunpack.c.l.b16 %v3344
      %v3393 = vunpack.c.l.b16 %v3345
      %v3394 = vunpack.c.l.b16 %v3346
      %v3395 = vunpack.c.l.b16 %v3347
      %v3396 = vunpack.c.l.b16 %v3348
      %v3397 = vunpack.c.l.b16 %v3349
      %v3398 = vunpack.c.l.b16 %v3350
      %v3399 = vunpack.c.l.b16 %v3351
      %v3400 = vpack.c.b16 %v3377, %v3376
      %v3401 = vpack.c.b16 %v3379, %v3378
      %v3402 = vpack.c.b16 %v3381, %v3380
      %v3403 = vpack.c.b16 %v3383, %v3382
      %v3404 = vpack.c.b16 %v3385, %v3384
      %v3405 = vpack.c.b16 %v3387, %v3386
      %v3406 = vpack.c.b16 %v3389, %v3388
      %v3407 = vpack.c.b16 %v3391, %v3390
      %v3408 = vpack.c.b16 %v3393, %v3392
      %v3409 = vpack.c.b16 %v3395, %v3394
      %v3410 = vpack.c.b16 %v3397, %v3396
      %v3411 = vpack.c.b16 %v3399, %v3398
      %v3425 = vsel %vm2582, %v3320, 0
      %3427 = vmatprep.subr.bf16.mxu0 0
      %3428 = vmatpush1.bf16.msra.mxu0 %v3400
      %3429 = vmatprep.subr.bf16.mxu0 0
      %3430 = vmatpush1.bf16.msra.mxu0 %v3401
      %3431 = vmatprep.subr.bf16.mxu0 0
      %3432 = vmatpush1.bf16.msra.mxu0 %v3402
      %3433 = vmatprep.subr.bf16.mxu0 0
      %3434 = vmatpush1.bf16.msra.mxu0 %v3403
      %3435 = vmatprep.subr.bf16.mxu0 0
      %3436 = vmatpush1.bf16.msra.mxu0 %v3404
      %3437 = vmatprep.subr.bf16.mxu0 0
      %3438 = vmatpush1.bf16.msra.mxu0 %v3405
      %3439 = vmatprep.subr.bf16.mxu0 0
      %3440 = vmatpush1.bf16.msra.mxu0 %v3406
      %3441 = vmatprep.subr.bf16.mxu0 0
      %3442 = vmatpush1.bf16.msra.mxu0 %v3407
      %3443 = vmatprep.subr.bf16.mxu0 0
      %3444 = vmatpush1.bf16.msra.mxu0 %v3408
      %3445 = vmatprep.subr.bf16.mxu0 0
      %3446 = vmatpush1.bf16.msra.mxu0 %v3409
      %3447 = vmatprep.subr.bf16.mxu0 0
      %3448 = vmatpush1.bf16.msra.mxu0 %v3410
      %3449 = vmatprep.subr.bf16.mxu0 0
      %3450 = vmatpush1.bf16.msra.mxu0 %v3411
      %3451 = vmatprep.subr.bf16.mxu0 0
      %3452 = vmatpush1.bf16.msra.mxu0 0
      %3453 = vmatprep.subr.bf16.mxu0 0
      %3454 = vmatpush1.bf16.msra.mxu0 0
      %3455 = vmatprep.subr.bf16.mxu0 0
      %3456 = vmatpush1.bf16.msra.mxu0 0
      %3457 = vmatprep.subr.bf16.mxu0 0
      %3458 = vmatpush1.bf16.msra.mxu0 0
      %3459 = vmatprep.mubr.bf16.mxu0 %v3425
      %3460 = vmatmul.mubr.bf16.gmra.mrb[0].mxu0 %v3326
      %v3461 = vpop.f32.mrb[0].mxu0
      %v3462 = vadd.f32 0.0, %v3461
      %v3463 = vpop.f32.mrb[0].mxu0
      %v3464 = vpop.f32.mrb[0].mxu0
      %v3465 = vpop.f32.mrb[0].mxu0
      %3466 = vdwg.mxu0
      %v3467 = vld [vmem:[%s47] sm:$0x1]
      %v3469 = vlaneseq
      %v3470 = vshrl.u32 %v3469, 7
      %v3471 = vsub.s32 0, %v3470
      %v3472 = vrot.slane %v3467, %v3471
      %v3474 = vmul.f32 %v3462, %v3472
      %v3475 = vld [vmem:[%s49] sm:$0x1]
      %v3477 = vlaneseq
      %v3478 = vshrl.u32 %v3477, 7
      %v3479 = vsub.s32 0, %v3478
      %v3480 = vrot.slane %v3475, %v3479
      %v3482 = vadd.f32 %v3474, %v3480
      %v3483 = vmax.f32 %v3482, 0.0
      %v3484 = vpack.c.bf16 %v3483, %v3483
      %v3485 = vmul.u32 %v978, 4
      %vm3486 = vcmp.eq.s32.totalorder %v976, %v3485
      %v3487 = vsel %vm3486, 1.0, 0.0
      %v3488 = vpack.c.bf16 %v3487, %v3487
      %vm3489 = vcmask 15360
      %v3491 = vsel %vm3489, %v3488, 0
      %vm3493 = vcmask 1040384
      %v3495 = vsel %vm3493, %v3484, 0
      %3497 = vmatprep.subr.bf16.mxu0 0
      %3498 = vmatpush1.bf16.msra.mxu0 %v3495
      %3499 = vmatprep.subr.bf16.mxu0 0
      %3500 = vmatpush1.bf16.msra.mxu0 0
      %3501 = vmatprep.subr.bf16.mxu0 0
      %3502 = vmatpush1.bf16.msra.mxu0 0
      %3503 = vmatprep.subr.bf16.mxu0 0
      %3504 = vmatpush1.bf16.msra.mxu0 0
      %3505 = vmatprep.subr.bf16.mxu0 0
      %3506 = vmatpush1.bf16.msra.mxu0 0
      %3507 = vmatprep.subr.bf16.mxu0 0
      %3508 = vmatpush1.bf16.msra.mxu0 0
      %3509 = vmatprep.subr.bf16.mxu0 0
      %3510 = vmatpush1.bf16.msra.mxu0 0
      %3511 = vmatprep.subr.bf16.mxu0 0
      %3512 = vmatpush1.bf16.msra.mxu0 0
      %3513 = vmatprep.subr.bf16.mxu0 0
      %3514 = vmatpush1.bf16.msra.mxu0 0
      %3515 = vmatprep.subr.bf16.mxu0 0
      %3516 = vmatpush1.bf16.msra.mxu0 0
      %3517 = vmatprep.subr.bf16.mxu0 0
      %3518 = vmatpush1.bf16.msra.mxu0 0
      %3519 = vmatprep.subr.bf16.mxu0 0
      %3520 = vmatpush1.bf16.msra.mxu0 0
      %3521 = vmatprep.subr.bf16.mxu0 0
      %3522 = vmatpush1.bf16.msra.mxu0 0
      %3523 = vmatprep.subr.bf16.mxu0 0
      %3524 = vmatpush1.bf16.msra.mxu0 0
      %3525 = vmatprep.subr.bf16.mxu0 0
      %3526 = vmatpush1.bf16.msra.mxu0 0
      %3527 = vmatprep.subr.bf16.mxu0 0
      %3528 = vmatpush1.bf16.msra.mxu0 0
      %3529 = vmatprep.mubr.bf16.mxu0 0
      %3530 = vmatmul.mubr.bf16.gmra.mrb[0].mxu0 %v3491
      %v3531 = vpop.f32.mrb[0].mxu0
      %v3532 = vadd.f32 0.0, %v3531
      %v3533 = vpop.f32.mrb[0].mxu0
      %v3534 = vpop.f32.mrb[0].mxu0
      %v3535 = vpop.f32.mrb[0].mxu0
      %3536 = vdwg.mxu0
      %v3537 = vpack.c.bf16 %v3532, %v3532
      %v3538 = vadd.s32 %v3485, 1
      %vm3539 = vcmp.eq.s32.totalorder %v976, %v3538
      %v3540 = vsel %vm3539, 1.0, 0.0
      %v3541 = vpack.c.bf16 %v3540, %v3540
      %v3543 = vsel %vm3489, %v3541, 0
      %3545 = vmatprep.subr.bf16.mxu0 0
      %3546 = vmatpush1.bf16.msra.mxu0 %v3495
      %3547 = vmatprep.subr.bf16.mxu0 0
      %3548 = vmatpush1.bf16.msra.mxu0 0
      %3549 = vmatprep.subr.bf16.mxu0 0
      %3550 = vmatpush1.bf16.msra.mxu0 0
      %3551 = vmatprep.subr.bf16.mxu0 0
      %3552 = vmatpush1.bf16.msra.mxu0 0
      %3553 = vmatprep.subr.bf16.mxu0 0
      %3554 = vmatpush1.bf16.msra.mxu0 0
      %3555 = vmatprep.subr.bf16.mxu0 0
      %3556 = vmatpush1.bf16.msra.mxu0 0
      %3557 = vmatprep.subr.bf16.mxu0 0
      %3558 = vmatpush1.bf16.msra.mxu0 0
      %3559 = vmatprep.subr.bf16.mxu0 0
      %3560 = vmatpush1.bf16.msra.mxu0 0
      %3561 = vmatprep.subr.bf16.mxu0 0
      %3562 = vmatpush1.bf16.msra.mxu0 0
      %3563 = vmatprep.subr.bf16.mxu0 0
      %3564 = vmatpush1.bf16.msra.mxu0 0
      %3565 = vmatprep.subr.bf16.mxu0 0
      %3566 = vmatpush1.bf16.msra.mxu0 0
      %3567 = vmatprep.subr.bf16.mxu0 0
      %3568 = vmatpush1.bf16.msra.mxu0 0
      %3569 = vmatprep.subr.bf16.mxu0 0
      %3570 = vmatpush1.bf16.msra.mxu0 0
      %3571 = vmatprep.subr.bf16.mxu0 0
      %3572 = vmatpush1.bf16.msra.mxu0 0
      %3573 = vmatprep.subr.bf16.mxu0 0
      %3574 = vmatpush1.bf16.msra.mxu0 0
      %3575 = vmatprep.subr.bf16.mxu0 0
      %3576 = vmatpush1.bf16.msra.mxu0 0
      %3577 = vmatprep.mubr.bf16.mxu0 0
      %3578 = vmatmul.mubr.bf16.gmra.mrb[0].mxu0 %v3543
      %v3579 = vpop.f32.mrb[0].mxu0
      %v3580 = vadd.f32 0.0, %v3579
      %v3581 = vpop.f32.mrb[0].mxu0
      %v3582 = vpop.f32.mrb[0].mxu0
      %v3583 = vpop.f32.mrb[0].mxu0
      %3584 = vdwg.mxu0
      %v3585 = vpack.c.bf16 %v3580, %v3580
      %v3586 = vadd.s32 %v3485, 2
      %vm3587 = vcmp.eq.s32.totalorder %v976, %v3586
      %v3588 = vsel %vm3587, 1.0, 0.0
      %v3589 = vpack.c.bf16 %v3588, %v3588
      %v3591 = vsel %vm3489, %v3589, 0
      %3593 = vmatprep.subr.bf16.mxu0 0
      %3594 = vmatpush1.bf16.msra.mxu0 %v3495
      %3595 = vmatprep.subr.bf16.mxu0 0
      %3596 = vmatpush1.bf16.msra.mxu0 0
      %3597 = vmatprep.subr.bf16.mxu0 0
      %3598 = vmatpush1.bf16.msra.mxu0 0
      %3599 = vmatprep.subr.bf16.mxu0 0
      %3600 = vmatpush1.bf16.msra.mxu0 0
      %3601 = vmatprep.subr.bf16.mxu0 0
      %3602 = vmatpush1.bf16.msra.mxu0 0
      %3603 = vmatprep.subr.bf16.mxu0 0
      %3604 = vmatpush1.bf16.msra.mxu0 0
      %3605 = vmatprep.subr.bf16.mxu0 0
      %3606 = vmatpush1.bf16.msra.mxu0 0
      %3607 = vmatprep.subr.bf16.mxu0 0
      %3608 = vmatpush1.bf16.msra.mxu0 0
      %3609 = vmatprep.subr.bf16.mxu0 0
      %3610 = vmatpush1.bf16.msra.mxu0 0
      %3611 = vmatprep.subr.bf16.mxu0 0
      %3612 = vmatpush1.bf16.msra.mxu0 0
      %3613 = vmatprep.subr.bf16.mxu0 0
      %3614 = vmatpush1.bf16.msra.mxu0 0
      %3615 = vmatprep.subr.bf16.mxu0 0
      %3616 = vmatpush1.bf16.msra.mxu0 0
      %3617 = vmatprep.subr.bf16.mxu0 0
      %3618 = vmatpush1.bf16.msra.mxu0 0
      %3619 = vmatprep.subr.bf16.mxu0 0
      %3620 = vmatpush1.bf16.msra.mxu0 0
      %3621 = vmatprep.subr.bf16.mxu0 0
      %3622 = vmatpush1.bf16.msra.mxu0 0
      %3623 = vmatprep.subr.bf16.mxu0 0
      %3624 = vmatpush1.bf16.msra.mxu0 0
      %3625 = vmatprep.mubr.bf16.mxu0 0
      %3626 = vmatmul.mubr.bf16.gmra.mrb[0].mxu0 %v3591
      %v3627 = vpop.f32.mrb[0].mxu0
      %v3628 = vadd.f32 0.0, %v3627
      %v3629 = vpop.f32.mrb[0].mxu0
      %v3630 = vpop.f32.mrb[0].mxu0
      %v3631 = vpop.f32.mrb[0].mxu0
      %3632 = vdwg.mxu0
      %v3633 = vpack.c.bf16 %v3628, %v3628
      %v3634 = vadd.s32 %v3485, 3
      %vm3635 = vcmp.eq.s32.totalorder %v976, %v3634
      %v3636 = vsel %vm3635, 1.0, 0.0
      %v3637 = vpack.c.bf16 %v3636, %v3636
      %v3639 = vsel %vm3489, %v3637, 0
      %3641 = vmatprep.subr.bf16.mxu0 0
      %3642 = vmatpush1.bf16.msra.mxu0 %v3495
      %3643 = vmatprep.subr.bf16.mxu0 0
      %3644 = vmatpush1.bf16.msra.mxu0 0
      %3645 = vmatprep.subr.bf16.mxu0 0
      %3646 = vmatpush1.bf16.msra.mxu0 0
      %3647 = vmatprep.subr.bf16.mxu0 0
      %3648 = vmatpush1.bf16.msra.mxu0 0
      %3649 = vmatprep.subr.bf16.mxu0 0
      %3650 = vmatpush1.bf16.msra.mxu0 0
      %3651 = vmatprep.subr.bf16.mxu0 0
      %3652 = vmatpush1.bf16.msra.mxu0 0
      %3653 = vmatprep.subr.bf16.mxu0 0
      %3654 = vmatpush1.bf16.msra.mxu0 0
      %3655 = vmatprep.subr.bf16.mxu0 0
      %3656 = vmatpush1.bf16.msra.mxu0 0
      %3657 = vmatprep.subr.bf16.mxu0 0
      %3658 = vmatpush1.bf16.msra.mxu0 0
      %3659 = vmatprep.subr.bf16.mxu0 0
      %3660 = vmatpush1.bf16.msra.mxu0 0
      %3661 = vmatprep.subr.bf16.mxu0 0
      %3662 = vmatpush1.bf16.msra.mxu0 0
      %3663 = vmatprep.subr.bf16.mxu0 0
      %3664 = vmatpush1.bf16.msra.mxu0 0
      %3665 = vmatprep.subr.bf16.mxu0 0
      %3666 = vmatpush1.bf16.msra.mxu0 0
      %3667 = vmatprep.subr.bf16.mxu0 0
      %3668 = vmatpush1.bf16.msra.mxu0 0
      %3669 = vmatprep.subr.bf16.mxu0 0
      %3670 = vmatpush1.bf16.msra.mxu0 0
      %3671 = vmatprep.subr.bf16.mxu0 0
      %3672 = vmatpush1.bf16.msra.mxu0 0
      %3673 = vmatprep.mubr.bf16.mxu0 0
      %3674 = vmatmul.mubr.bf16.gmra.mrb[0].mxu0 %v3639
      %v3675 = vpop.f32.mrb[0].mxu0
      %v3676 = vadd.f32 0.0, %v3675
      %v3677 = vpop.f32.mrb[0].mxu0
      %v3678 = vpop.f32.mrb[0].mxu0
      %v3679 = vpop.f32.mrb[0].mxu0
      %3680 = vdwg.mxu0
      %v3681 = vpack.c.bf16 %v3676, %v3676
      %3683 = vrot.lane.b32.xlu0 %v3585, 64
      %v3684 = vpop.permute.xlu0 %3683
      %3686 = vrot.lane.b32.xlu0 %v3681, 64
      %v3687 = vpop.permute.xlu0 %3686
      %v3690 = vsel %vm2582, %v3537, %v3684
      %v3694 = vsel %vm2582, %v3633, %v3687
      %v3696 = vld [vmem:[%s51] sm:$0xff]
      %v3697 = vld [vmem:[%s51 + $0x8] sm:$0xff]
      %v3698 = vld [vmem:[%s51 + $0x10] sm:$0xff]
      %v3699 = vld [vmem:[%s51 + $0x18] sm:$0xff]
      %v3700 = vld [vmem:[%s51 + $0x20] sm:$0xff]
      %v3701 = vld [vmem:[%s51 + $0x28] sm:$0xff]
      %v3702 = vld [vmem:[%s51 + $0x30] sm:$0xff]
      %v3703 = vld [vmem:[%s51 + $0x38] sm:$0xff]
      %v3704 = vld [vmem:[%s51 + $0x40] sm:$0xff]
      %v3705 = vld [vmem:[%s51 + $0x48] sm:$0xff]
      %v3706 = vld [vmem:[%s51 + $0x50] sm:$0xff]
      %v3707 = vld [vmem:[%s51 + $0x58] sm:$0xff]
      %v3708 = vld [vmem:[%s51 + $0x60] sm:$0xff]
      %v3709 = vld [vmem:[%s51 + $0x68] sm:$0xff]
      %v3710 = vld [vmem:[%s51 + $0x70] sm:$0xff]
      %v3711 = vld [vmem:[%s51 + $0x78] sm:$0xff]
      %v3712 = vld [vmem:[%s51 + $0x80] sm:$0xff]
      %v3713 = vld [vmem:[%s51 + $0x88] sm:$0xff]
      %v3714 = vld [vmem:[%s51 + $0x90] sm:$0xff]
      %v3715 = vld [vmem:[%s51 + $0x98] sm:$0xff]
      %v3716 = vld [vmem:[%s51 + $0xa0] sm:$0xff]
      %v3717 = vld [vmem:[%s51 + $0xa8] sm:$0xff]
      %v3718 = vld [vmem:[%s51 + $0xb0] sm:$0xff]
      %v3719 = vld [vmem:[%s51 + $0xb8] sm:$0xff]
      %v3720 = vld [vmem:[%s51 + $0xc0] sm:$0xff]
      %v3721 = vld [vmem:[%s51 + $0xc8] sm:$0xff]
      %v3722 = vld [vmem:[%s51 + $0xd0] sm:$0xff]
      %v3723 = vld [vmem:[%s51 + $0xd8] sm:$0xff]
      %v3724 = vld [vmem:[%s51 + $0xe0] sm:$0xff]
      %v3725 = vld [vmem:[%s51 + $0xe8] sm:$0xff]
      %v3726 = vld [vmem:[%s51 + $0xf0] sm:$0xff]
      %v3727 = vld [vmem:[%s51 + $0xf8] sm:$0xff]
      %v3760 = vunpack.c.l.b16 %v3696
      %v3761 = vunpack.c.h.b16 %v3696
      %v3762 = vunpack.c.l.b16 %v3697
      %v3763 = vunpack.c.h.b16 %v3697
      %v3764 = vunpack.c.l.b16 %v3698
      %v3765 = vunpack.c.h.b16 %v3698
      %v3766 = vunpack.c.l.b16 %v3699
      %v3767 = vunpack.c.h.b16 %v3699
      %v3768 = vunpack.c.l.b16 %v3700
      %v3769 = vunpack.c.h.b16 %v3700
      %v3770 = vunpack.c.l.b16 %v3701
      %v3771 = vunpack.c.h.b16 %v3701
      %v3772 = vunpack.c.l.b16 %v3702
      %v3773 = vunpack.c.h.b16 %v3702
      %v3774 = vunpack.c.l.b16 %v3703
      %v3775 = vunpack.c.h.b16 %v3703
      %v3776 = vunpack.c.l.b16 %v3704
      %v3777 = vunpack.c.h.b16 %v3704
      %v3778 = vunpack.c.l.b16 %v3705
      %v3779 = vunpack.c.h.b16 %v3705
      %v3780 = vunpack.c.l.b16 %v3706
      %v3781 = vunpack.c.h.b16 %v3706
      %v3782 = vunpack.c.l.b16 %v3707
      %v3783 = vunpack.c.h.b16 %v3707
      %v3784 = vunpack.c.l.b16 %v3708
      %v3785 = vunpack.c.h.b16 %v3708
      %v3786 = vunpack.c.l.b16 %v3709
      %v3787 = vunpack.c.h.b16 %v3709
      %v3788 = vunpack.c.l.b16 %v3710
      %v3789 = vunpack.c.h.b16 %v3710
      %v3790 = vunpack.c.l.b16 %v3711
      %v3791 = vunpack.c.h.b16 %v3711
      %v3792 = vunpack.c.l.b16 %v3712
      %v3793 = vunpack.c.h.b16 %v3712
      %v3794 = vunpack.c.l.b16 %v3713
      %v3795 = vunpack.c.h.b16 %v3713
      %v3796 = vunpack.c.l.b16 %v3714
      %v3797 = vunpack.c.h.b16 %v3714
      %v3798 = vunpack.c.l.b16 %v3715
      %v3799 = vunpack.c.h.b16 %v3715
      %v3800 = vunpack.c.l.b16 %v3716
      %v3801 = vunpack.c.h.b16 %v3716
      %v3802 = vunpack.c.l.b16 %v3717
      %v3803 = vunpack.c.h.b16 %v3717
      %v3804 = vunpack.c.l.b16 %v3718
      %v3805 = vunpack.c.h.b16 %v3718
      %v3806 = vunpack.c.l.b16 %v3719
      %v3807 = vunpack.c.h.b16 %v3719
      %v3808 = vunpack.c.l.b16 %v3720
      %v3809 = vunpack.c.h.b16 %v3720
      %v3810 = vunpack.c.l.b16 %v3721
      %v3811 = vunpack.c.h.b16 %v3721
      %v3812 = vunpack.c.l.b16 %v3722
      %v3813 = vunpack.c.h.b16 %v3722
      %v3814 = vunpack.c.l.b16 %v3723
      %v3815 = vunpack.c.h.b16 %v3723
      %v3816 = vunpack.c.l.b16 %v3724
      %v3817 = vunpack.c.h.b16 %v3724
      %v3818 = vunpack.c.l.b16 %v3725
      %v3819 = vunpack.c.h.b16 %v3725
      %v3820 = vunpack.c.l.b16 %v3726
      %v3821 = vunpack.c.h.b16 %v3726
      %v3822 = vunpack.c.l.b16 %v3727
      %v3823 = vunpack.c.h.b16 %v3727
      %v3824 = vpack.c.b16 %v3762, %v3760
      %v3825 = vpack.c.b16 %v3763, %v3761
      %v3826 = vpack.c.b16 %v3766, %v3764
      %v3827 = vpack.c.b16 %v3767, %v3765
      %v3828 = vpack.c.b16 %v3770, %v3768
      %v3829 = vpack.c.b16 %v3771, %v3769
      %v3830 = vpack.c.b16 %v3774, %v3772
      %v3831 = vpack.c.b16 %v3775, %v3773
      %v3832 = vpack.c.b16 %v3778, %v3776
      %v3833 = vpack.c.b16 %v3779, %v3777
      %v3834 = vpack.c.b16 %v3782, %v3780
      %v3835 = vpack.c.b16 %v3783, %v3781
      %v3836 = vpack.c.b16 %v3786, %v3784
      %v3837 = vpack.c.b16 %v3787, %v3785
      %v3838 = vpack.c.b16 %v3790, %v3788
      %v3839 = vpack.c.b16 %v3791, %v3789
      %v3840 = vpack.c.b16 %v3794, %v3792
      %v3841 = vpack.c.b16 %v3795, %v3793
      %v3842 = vpack.c.b16 %v3798, %v3796
      %v3843 = vpack.c.b16 %v3799, %v3797
      %v3844 = vpack.c.b16 %v3802, %v3800
      %v3845 = vpack.c.b16 %v3803, %v3801
      %v3846 = vpack.c.b16 %v3806, %v3804
      %v3847 = vpack.c.b16 %v3807, %v3805
      %v3848 = vpack.c.b16 %v3810, %v3808
      %v3849 = vpack.c.b16 %v3811, %v3809
      %v3850 = vpack.c.b16 %v3814, %v3812
      %v3851 = vpack.c.b16 %v3815, %v3813
      %v3852 = vpack.c.b16 %v3818, %v3816
      %v3853 = vpack.c.b16 %v3819, %v3817
      %v3854 = vpack.c.b16 %v3822, %v3820
      %v3855 = vpack.c.b16 %v3823, %v3821
      %3888 = vmatprep.subr.bf16.mxu0 %v3825
      %3889 = vmatpush1.bf16.msra.mxu0 %v3824
      %3890 = vmatprep.subr.bf16.mxu0 %v3827
      %3891 = vmatpush1.bf16.msra.mxu0 %v3826
      %3892 = vmatprep.subr.bf16.mxu0 %v3829
      %3893 = vmatpush1.bf16.msra.mxu0 %v3828
      %3894 = vmatprep.subr.bf16.mxu0 %v3831
      %3895 = vmatpush1.bf16.msra.mxu0 %v3830
      %3896 = vmatprep.subr.bf16.mxu0 %v3833
      %3897 = vmatpush1.bf16.msra.mxu0 %v3832
      %3898 = vmatprep.subr.bf16.mxu0 %v3835
      %3899 = vmatpush1.bf16.msra.mxu0 %v3834
      %3900 = vmatprep.subr.bf16.mxu0 %v3837
      %3901 = vmatpush1.bf16.msra.mxu0 %v3836
      %3902 = vmatprep.subr.bf16.mxu0 %v3839
      %3903 = vmatpush1.bf16.msra.mxu0 %v3838
      %3904 = vmatprep.subr.bf16.mxu0 %v3841
      %3905 = vmatpush1.bf16.msra.mxu0 %v3840
      %3906 = vmatprep.subr.bf16.mxu0 %v3843
      %3907 = vmatpush1.bf16.msra.mxu0 %v3842
      %3908 = vmatprep.subr.bf16.mxu0 %v3845
      %3909 = vmatpush1.bf16.msra.mxu0 %v3844
      %3910 = vmatprep.subr.bf16.mxu0 %v3847
      %3911 = vmatpush1.bf16.msra.mxu0 %v3846
      %3912 = vmatprep.subr.bf16.mxu0 %v3849
      %3913 = vmatpush1.bf16.msra.mxu0 %v3848
      %3914 = vmatprep.subr.bf16.mxu0 %v3851
      %3915 = vmatpush1.bf16.msra.mxu0 %v3850
      %3916 = vmatprep.subr.bf16.mxu0 %v3853
      %3917 = vmatpush1.bf16.msra.mxu0 %v3852
      %3918 = vmatprep.subr.bf16.mxu0 %v3855
      %3919 = vmatpush1.bf16.msra.mxu0 %v3854
      %3920 = vmatprep.mubr.bf16.mxu0 %v3694
      %3921 = vmatmul.mubr.bf16.gmra.mrb[0].mxu0 %v3690
      %v3922 = vpop.f32.mrb[0].mxu0
      %v3923 = vadd.f32 0.0, %v3922
      %v3924 = vpop.f32.mrb[0].mxu0
      %v3925 = vadd.f32 0.0, %v3924
      %v3926 = vpop.f32.mrb[0].mxu0
      %v3927 = vpop.f32.mrb[0].mxu0
      %3928 = vdwg.mxu0
      %v3929 = vld [vmem:[%s53] sm:$0x3]
      %v3931 = vlaneseq
      %v3932 = vshrl.u32 %v3931, 7
      %v3933 = vsub.s32 0, %v3932
      %v3934 = vrot.slane %v3929, %v3933
      %v3935 = vlaneseq
      %v3936 = vshrl.u32 %v3935, 7
      %v3937 = vsub.s32 1, %v3936
      %v3938 = vrot.slane %v3929, %v3937
      %v3941 = vmul.f32 %v3923, %v3934
      %v3942 = vmul.f32 %v3925, %v3938
      %v3943 = vld [vmem:[%s55] sm:$0x3]
      %v3945 = vlaneseq
      %v3946 = vshrl.u32 %v3945, 7
      %v3947 = vsub.s32 0, %v3946
      %v3948 = vrot.slane %v3943, %v3947
      %v3949 = vlaneseq
      %v3950 = vshrl.u32 %v3949, 7
      %v3951 = vsub.s32 1, %v3950
      %v3952 = vrot.slane %v3943, %v3951
      %v3955 = vadd.f32 %v3941, %v3948
      %v3956 = vadd.f32 %v3942, %v3952
      %v3957 = vmax.f32 %v3955, 0.0
      %v3958 = vmax.f32 %v3956, 0.0
      %3959 = vst [vmem:[%s966] sm:$0xff] %v2137
      %3960 = vst [vmem:[%s966 + $0x8] sm:$0xff] %v2138
      %3961 = vst [vmem:[%s966 + $0x10] sm:$0xff] %v3017
      %3962 = vst [vmem:[%s966 + $0x18] sm:$0xff] %v3018
      %3963 = vst [vmem:[%s966 + $0x20] sm:$0xff] %v3957
      %3964 = vst [vmem:[%s966 + $0x28] sm:$0xff] %v3958
      %v3965 = vpack.c.bf16 %v2137, %v2137
      %v3966 = vpack.c.bf16 %v2138, %v2138
      %v3967 = vpack.c.bf16 %v3017, %v3017
      %v3968 = vpack.c.bf16 %v3018, %v3018
      %v3969 = vpack.c.bf16 %v3957, %v3957
      %v3970 = vpack.c.bf16 %v3958, %v3958
      %v3971 = vld [vmem:[%s57] sm:$0xff]
      %v3972 = vld [vmem:[%s57 + $0x8] sm:$0xff]
      %v3973 = vld [vmem:[%s57 + $0x10] sm:$0xff]
      %v3974 = vld [vmem:[%s57 + $0x18] sm:$0xff]
      %v3975 = vld [vmem:[%s57 + $0x20] sm:$0xff]
      %v3976 = vld [vmem:[%s57 + $0x28] sm:$0xff]
      %v3977 = vld [vmem:[%s57 + $0x30] sm:$0xff]
      %v3978 = vld [vmem:[%s57 + $0x38] sm:$0xff]
      %v3979 = vld [vmem:[%s57 + $0x40] sm:$0xff]
      %v3980 = vld [vmem:[%s57 + $0x48] sm:$0xff]
      %v3981 = vld [vmem:[%s57 + $0x50] sm:$0xff]
      %v3982 = vld [vmem:[%s57 + $0x58] sm:$0xff]
      %v3983 = vld [vmem:[%s57 + $0x60] sm:$0xff]
      %v3984 = vld [vmem:[%s57 + $0x68] sm:$0xff]
      %v3985 = vld [vmem:[%s57 + $0x70] sm:$0xff]
      %v3986 = vld [vmem:[%s57 + $0x78] sm:$0xff]
      %v3987 = vld [vmem:[%s57 + $0x80] sm:$0xff]
      %v3988 = vld [vmem:[%s57 + $0x88] sm:$0xff]
      %v3989 = vld [vmem:[%s57 + $0x90] sm:$0xff]
      %v3990 = vld [vmem:[%s57 + $0x98] sm:$0xff]
      %v3991 = vld [vmem:[%s57 + $0xa0] sm:$0xff]
      %v3992 = vld [vmem:[%s57 + $0xa8] sm:$0xff]
      %v3993 = vld [vmem:[%s57 + $0xb0] sm:$0xff]
      %v3994 = vld [vmem:[%s57 + $0xb8] sm:$0xff]
      %v3995 = vld [vmem:[%s57 + $0xc0] sm:$0xff]
      %v3996 = vld [vmem:[%s57 + $0xc8] sm:$0xff]
      %v3997 = vld [vmem:[%s57 + $0xd0] sm:$0xff]
      %v3998 = vld [vmem:[%s57 + $0xd8] sm:$0xff]
      %v3999 = vld [vmem:[%s57 + $0xe0] sm:$0xff]
      %v4000 = vld [vmem:[%s57 + $0xe8] sm:$0xff]
      %v4001 = vld [vmem:[%s57 + $0xf0] sm:$0xff]
      %v4002 = vld [vmem:[%s57 + $0xf8] sm:$0xff]
      %v4003 = vld [vmem:[%s57 + $0x100] sm:$0xff]
      %v4004 = vld [vmem:[%s57 + $0x108] sm:$0xff]
      %v4005 = vld [vmem:[%s57 + $0x110] sm:$0xff]
      %v4006 = vld [vmem:[%s57 + $0x118] sm:$0xff]
      %v4007 = vld [vmem:[%s57 + $0x120] sm:$0xff]
      %v4008 = vld [vmem:[%s57 + $0x128] sm:$0xff]
      %v4009 = vld [vmem:[%s57 + $0x130] sm:$0xff]
      %v4010 = vld [vmem:[%s57 + $0x138] sm:$0xff]
      %v4011 = vld [vmem:[%s57 + $0x140] sm:$0xff]
      %v4012 = vld [vmem:[%s57 + $0x148] sm:$0xff]
      %v4013 = vld [vmem:[%s57 + $0x150] sm:$0xff]
      %v4014 = vld [vmem:[%s57 + $0x158] sm:$0xff]
      %v4015 = vld [vmem:[%s57 + $0x160] sm:$0xff]
      %v4016 = vld [vmem:[%s57 + $0x168] sm:$0xff]
      %v4017 = vld [vmem:[%s57 + $0x170] sm:$0xff]
      %v4018 = vld [vmem:[%s57 + $0x178] sm:$0xff]
      %v4019 = vld [vmem:[%s57 + $0x180] sm:$0xff]
      %v4020 = vld [vmem:[%s57 + $0x188] sm:$0xff]
      %v4021 = vld [vmem:[%s57 + $0x190] sm:$0xff]
      %v4022 = vld [vmem:[%s57 + $0x198] sm:$0xff]
      %v4023 = vld [vmem:[%s57 + $0x1a0] sm:$0xff]
      %v4024 = vld [vmem:[%s57 + $0x1a8] sm:$0xff]
      %v4025 = vld [vmem:[%s57 + $0x1b0] sm:$0xff]
      %v4026 = vld [vmem:[%s57 + $0x1b8] sm:$0xff]
      %v4027 = vld [vmem:[%s57 + $0x1c0] sm:$0xff]
      %v4028 = vld [vmem:[%s57 + $0x1c8] sm:$0xff]
      %v4029 = vld [vmem:[%s57 + $0x1d0] sm:$0xff]
      %v4030 = vld [vmem:[%s57 + $0x1d8] sm:$0xff]
      %v4031 = vld [vmem:[%s57 + $0x1e0] sm:$0xff]
      %v4032 = vld [vmem:[%s57 + $0x1e8] sm:$0xff]
      %v4033 = vld [vmem:[%s57 + $0x1f0] sm:$0xff]
      %v4034 = vld [vmem:[%s57 + $0x1f8] sm:$0xff]
      %v4035 = vld [vmem:[%s57 + $0x200] sm:$0xff]
      %v4036 = vld [vmem:[%s57 + $0x208] sm:$0xff]
      %v4037 = vld [vmem:[%s57 + $0x210] sm:$0xff]
      %v4038 = vld [vmem:[%s57 + $0x218] sm:$0xff]
      %v4039 = vld [vmem:[%s57 + $0x220] sm:$0xff]
      %v4040 = vld [vmem:[%s57 + $0x228] sm:$0xff]
      %v4041 = vld [vmem:[%s57 + $0x230] sm:$0xff]
      %v4042 = vld [vmem:[%s57 + $0x238] sm:$0xff]
      %v4043 = vld [vmem:[%s57 + $0x240] sm:$0xff]
      %v4044 = vld [vmem:[%s57 + $0x248] sm:$0xff]
      %v4045 = vld [vmem:[%s57 + $0x250] sm:$0xff]
      %v4046 = vld [vmem:[%s57 + $0x258] sm:$0xff]
      %v4047 = vld [vmem:[%s57 + $0x260] sm:$0xff]
      %v4048 = vld [vmem:[%s57 + $0x268] sm:$0xff]
      %v4049 = vld [vmem:[%s57 + $0x270] sm:$0xff]
      %v4050 = vld [vmem:[%s57 + $0x278] sm:$0xff]
      %v4051 = vld [vmem:[%s57 + $0x280] sm:$0xff]
      %v4052 = vld [vmem:[%s57 + $0x288] sm:$0xff]
      %v4053 = vld [vmem:[%s57 + $0x290] sm:$0xff]
      %v4054 = vld [vmem:[%s57 + $0x298] sm:$0xff]
      %v4055 = vld [vmem:[%s57 + $0x2a0] sm:$0xff]
      %v4056 = vld [vmem:[%s57 + $0x2a8] sm:$0xff]
      %v4057 = vld [vmem:[%s57 + $0x2b0] sm:$0xff]
      %v4058 = vld [vmem:[%s57 + $0x2b8] sm:$0xff]
      %v4059 = vld [vmem:[%s57 + $0x2c0] sm:$0xff]
      %v4060 = vld [vmem:[%s57 + $0x2c8] sm:$0xff]
      %v4061 = vld [vmem:[%s57 + $0x2d0] sm:$0xff]
      %v4062 = vld [vmem:[%s57 + $0x2d8] sm:$0xff]
      %v4063 = vld [vmem:[%s57 + $0x2e0] sm:$0xff]
      %v4064 = vld [vmem:[%s57 + $0x2e8] sm:$0xff]
      %v4065 = vld [vmem:[%s57 + $0x2f0] sm:$0xff]
      %v4066 = vld [vmem:[%s57 + $0x2f8] sm:$0xff]
      %v4067 = vld [vmem:[%s59] sm:$0x3]
      %v4069 = vlaneseq
      %v4070 = vshrl.u32 %v4069, 7
      %v4071 = vsub.s32 0, %v4070
      %v4072 = vrot.slane %v4067, %v4071
      %v4073 = vlaneseq
      %v4074 = vshrl.u32 %v4073, 7
      %v4075 = vsub.s32 1, %v4074
      %v4076 = vrot.slane %v4067, %v4075
      %v4175 = vunpack.c.l.b16 %v3971
      %v4176 = vunpack.c.h.b16 %v3971
      %v4177 = vunpack.c.l.b16 %v3972
      %v4178 = vunpack.c.h.b16 %v3972
      %v4179 = vunpack.c.l.b16 %v3973
      %v4180 = vunpack.c.h.b16 %v3973
      %v4181 = vunpack.c.l.b16 %v3974
      %v4182 = vunpack.c.h.b16 %v3974
      %v4183 = vunpack.c.l.b16 %v3975
      %v4184 = vunpack.c.h.b16 %v3975
      %v4185 = vunpack.c.l.b16 %v3976
      %v4186 = vunpack.c.h.b16 %v3976
      %v4187 = vunpack.c.l.b16 %v3977
      %v4188 = vunpack.c.h.b16 %v3977
      %v4189 = vunpack.c.l.b16 %v3978
      %v4190 = vunpack.c.h.b16 %v3978
      %v4191 = vunpack.c.l.b16 %v3979
      %v4192 = vunpack.c.h.b16 %v3979
      %v4193 = vunpack.c.l.b16 %v3980
      %v4194 = vunpack.c.h.b16 %v3980
      %v4195 = vunpack.c.l.b16 %v3981
      %v4196 = vunpack.c.h.b16 %v3981
      %v4197 = vunpack.c.l.b16 %v3982
      %v4198 = vunpack.c.h.b16 %v3982
      %v4199 = vunpack.c.l.b16 %v3983
      %v4200 = vunpack.c.h.b16 %v3983
      %v4201 = vunpack.c.l.b16 %v3984
      %v4202 = vunpack.c.h.b16 %v3984
      %v4203 = vunpack.c.l.b16 %v3985
      %v4204 = vunpack.c.h.b16 %v3985
      %v4205 = vunpack.c.l.b16 %v3986
      %v4206 = vunpack.c.h.b16 %v3986
      %v4207 = vunpack.c.l.b16 %v3987
      %v4208 = vunpack.c.h.b16 %v3987
      %v4209 = vunpack.c.l.b16 %v3988
      %v4210 = vunpack.c.h.b16 %v3988
      %v4211 = vunpack.c.l.b16 %v3989
      %v4212 = vunpack.c.h.b16 %v3989
      %v4213 = vunpack.c.l.b16 %v3990
      %v4214 = vunpack.c.h.b16 %v3990
      %v4215 = vunpack.c.l.b16 %v3991
      %v4216 = vunpack.c.h.b16 %v3991
      %v4217 = vunpack.c.l.b16 %v3992
      %v4218 = vunpack.c.h.b16 %v3992
      %v4219 = vunpack.c.l.b16 %v3993
      %v4220 = vunpack.c.h.b16 %v3993
      %v4221 = vunpack.c.l.b16 %v3994
      %v4222 = vunpack.c.h.b16 %v3994
      %v4223 = vunpack.c.l.b16 %v3995
      %v4224 = vunpack.c.h.b16 %v3995
      %v4225 = vunpack.c.l.b16 %v3996
      %v4226 = vunpack.c.h.b16 %v3996
      %v4227 = vunpack.c.l.b16 %v3997
      %v4228 = vunpack.c.h.b16 %v3997
      %v4229 = vunpack.c.l.b16 %v3998
      %v4230 = vunpack.c.h.b16 %v3998
      %v4231 = vunpack.c.l.b16 %v3999
      %v4232 = vunpack.c.h.b16 %v3999
      %v4233 = vunpack.c.l.b16 %v4000
      %v4234 = vunpack.c.h.b16 %v4000
      %v4235 = vunpack.c.l.b16 %v4001
      %v4236 = vunpack.c.h.b16 %v4001
      %v4237 = vunpack.c.l.b16 %v4002
      %v4238 = vunpack.c.h.b16 %v4002
      %v4239 = vunpack.c.l.b16 %v4003
      %v4240 = vunpack.c.h.b16 %v4003
      %v4241 = vunpack.c.l.b16 %v4004
      %v4242 = vunpack.c.h.b16 %v4004
      %v4243 = vunpack.c.l.b16 %v4005
      %v4244 = vunpack.c.h.b16 %v4005
      %v4245 = vunpack.c.l.b16 %v4006
      %v4246 = vunpack.c.h.b16 %v4006
      %v4247 = vunpack.c.l.b16 %v4007
      %v4248 = vunpack.c.h.b16 %v4007
      %v4249 = vunpack.c.l.b16 %v4008
      %v4250 = vunpack.c.h.b16 %v4008
      %v4251 = vunpack.c.l.b16 %v4009
      %v4252 = vunpack.c.h.b16 %v4009
      %v4253 = vunpack.c.l.b16 %v4010
      %v4254 = vunpack.c.h.b16 %v4010
      %v4255 = vunpack.c.l.b16 %v4011
      %v4256 = vunpack.c.h.b16 %v4011
      %v4257 = vunpack.c.l.b16 %v4012
      %v4258 = vunpack.c.h.b16 %v4012
      %v4259 = vunpack.c.l.b16 %v4013
      %v4260 = vunpack.c.h.b16 %v4013
      %v4261 = vunpack.c.l.b16 %v4014
      %v4262 = vunpack.c.h.b16 %v4014
      %v4263 = vunpack.c.l.b16 %v4015
      %v4264 = vunpack.c.h.b16 %v4015
      %v4265 = vunpack.c.l.b16 %v4016
      %v4266 = vunpack.c.h.b16 %v4016
      %v4267 = vunpack.c.l.b16 %v4017
      %v4268 = vunpack.c.h.b16 %v4017
      %v4269 = vunpack.c.l.b16 %v4018
      %v4270 = vunpack.c.h.b16 %v4018
      %v4271 = vunpack.c.l.b16 %v4019
      %v4272 = vunpack.c.h.b16 %v4019
      %v4273 = vunpack.c.l.b16 %v4020
      %v4274 = vunpack.c.h.b16 %v4020
      %v4275 = vunpack.c.l.b16 %v4021
      %v4276 = vunpack.c.h.b16 %v4021
      %v4277 = vunpack.c.l.b16 %v4022
      %v4278 = vunpack.c.h.b16 %v4022
      %v4279 = vunpack.c.l.b16 %v4023
      %v4280 = vunpack.c.h.b16 %v4023
      %v4281 = vunpack.c.l.b16 %v4024
      %v4282 = vunpack.c.h.b16 %v4024
      %v4283 = vunpack.c.l.b16 %v4025
      %v4284 = vunpack.c.h.b16 %v4025
      %v4285 = vunpack.c.l.b16 %v4026
      %v4286 = vunpack.c.h.b16 %v4026
      %v4287 = vunpack.c.l.b16 %v4027
      %v4288 = vunpack.c.h.b16 %v4027
      %v4289 = vunpack.c.l.b16 %v4028
      %v4290 = vunpack.c.h.b16 %v4028
      %v4291 = vunpack.c.l.b16 %v4029
      %v4292 = vunpack.c.h.b16 %v4029
      %v4293 = vunpack.c.l.b16 %v4030
      %v4294 = vunpack.c.h.b16 %v4030
      %v4295 = vunpack.c.l.b16 %v4031
      %v4296 = vunpack.c.h.b16 %v4031
      %v4297 = vunpack.c.l.b16 %v4032
      %v4298 = vunpack.c.h.b16 %v4032
      %v4299 = vunpack.c.l.b16 %v4033
      %v4300 = vunpack.c.h.b16 %v4033
      %v4301 = vunpack.c.l.b16 %v4034
      %v4302 = vunpack.c.h.b16 %v4034
      %v4303 = vunpack.c.l.b16 %v4035
      %v4304 = vunpack.c.h.b16 %v4035
      %v4305 = vunpack.c.l.b16 %v4036
      %v4306 = vunpack.c.h.b16 %v4036
      %v4307 = vunpack.c.l.b16 %v4037
      %v4308 = vunpack.c.h.b16 %v4037
      %v4309 = vunpack.c.l.b16 %v4038
      %v4310 = vunpack.c.h.b16 %v4038
      %v4311 = vunpack.c.l.b16 %v4039
      %v4312 = vunpack.c.h.b16 %v4039
      %v4313 = vunpack.c.l.b16 %v4040
      %v4314 = vunpack.c.h.b16 %v4040
      %v4315 = vunpack.c.l.b16 %v4041
      %v4316 = vunpack.c.h.b16 %v4041
      %v4317 = vunpack.c.l.b16 %v4042
      %v4318 = vunpack.c.h.b16 %v4042
      %v4319 = vunpack.c.l.b16 %v4043
      %v4320 = vunpack.c.h.b16 %v4043
      %v4321 = vunpack.c.l.b16 %v4044
      %v4322 = vunpack.c.h.b16 %v4044
      %v4323 = vunpack.c.l.b16 %v4045
      %v4324 = vunpack.c.h.b16 %v4045
      %v4325 = vunpack.c.l.b16 %v4046
      %v4326 = vunpack.c.h.b16 %v4046
      %v4327 = vunpack.c.l.b16 %v4047
      %v4328 = vunpack.c.h.b16 %v4047
      %v4329 = vunpack.c.l.b16 %v4048
      %v4330 = vunpack.c.h.b16 %v4048
      %v4331 = vunpack.c.l.b16 %v4049
      %v4332 = vunpack.c.h.b16 %v4049
      %v4333 = vunpack.c.l.b16 %v4050
      %v4334 = vunpack.c.h.b16 %v4050
      %v4335 = vunpack.c.l.b16 %v4051
      %v4336 = vunpack.c.h.b16 %v4051
      %v4337 = vunpack.c.l.b16 %v4052
      %v4338 = vunpack.c.h.b16 %v4052
      %v4339 = vunpack.c.l.b16 %v4053
      %v4340 = vunpack.c.h.b16 %v4053
      %v4341 = vunpack.c.l.b16 %v4054
      %v4342 = vunpack.c.h.b16 %v4054
      %v4343 = vunpack.c.l.b16 %v4055
      %v4344 = vunpack.c.h.b16 %v4055
      %v4345 = vunpack.c.l.b16 %v4056
      %v4346 = vunpack.c.h.b16 %v4056
      %v4347 = vunpack.c.l.b16 %v4057
      %v4348 = vunpack.c.h.b16 %v4057
      %v4349 = vunpack.c.l.b16 %v4058
      %v4350 = vunpack.c.h.b16 %v4058
      %v4351 = vunpack.c.l.b16 %v4059
      %v4352 = vunpack.c.h.b16 %v4059
      %v4353 = vunpack.c.l.b16 %v4060
      %v4354 = vunpack.c.h.b16 %v4060
      %v4355 = vunpack.c.l.b16 %v4061
      %v4356 = vunpack.c.h.b16 %v4061
      %v4357 = vunpack.c.l.b16 %v4062
      %v4358 = vunpack.c.h.b16 %v4062
      %v4359 = vunpack.c.l.b16 %v4063
      %v4360 = vunpack.c.h.b16 %v4063
      %v4361 = vunpack.c.l.b16 %v4064
      %v4362 = vunpack.c.h.b16 %v4064
      %v4363 = vunpack.c.l.b16 %v4065
      %v4364 = vunpack.c.h.b16 %v4065
      %v4365 = vunpack.c.l.b16 %v4066
      %v4366 = vunpack.c.h.b16 %v4066
      %v4367 = vpack.c.b16 %v4177, %v4175
      %v4368 = vpack.c.b16 %v4178, %v4176
      %v4369 = vpack.c.b16 %v4181, %v4179
      %v4370 = vpack.c.b16 %v4182, %v4180
      %v4371 = vpack.c.b16 %v4185, %v4183
      %v4372 = vpack.c.b16 %v4186, %v4184
      %v4373 = vpack.c.b16 %v4189, %v4187
      %v4374 = vpack.c.b16 %v4190, %v4188
      %v4375 = vpack.c.b16 %v4193, %v4191
      %v4376 = vpack.c.b16 %v4194, %v4192
      %v4377 = vpack.c.b16 %v4197, %v4195
      %v4378 = vpack.c.b16 %v4198, %v4196
      %v4379 = vpack.c.b16 %v4201, %v4199
      %v4380 = vpack.c.b16 %v4202, %v4200
      %v4381 = vpack.c.b16 %v4205, %v4203
      %v4382 = vpack.c.b16 %v4206, %v4204
      %v4383 = vpack.c.b16 %v4209, %v4207
      %v4384 = vpack.c.b16 %v4210, %v4208
      %v4385 = vpack.c.b16 %v4213, %v4211
      %v4386 = vpack.c.b16 %v4214, %v4212
      %v4387 = vpack.c.b16 %v4217, %v4215
      %v4388 = vpack.c.b16 %v4218, %v4216
      %v4389 = vpack.c.b16 %v4221, %v4219
      %v4390 = vpack.c.b16 %v4222, %v4220
      %v4391 = vpack.c.b16 %v4225, %v4223
      %v4392 = vpack.c.b16 %v4226, %v4224
      %v4393 = vpack.c.b16 %v4229, %v4227
      %v4394 = vpack.c.b16 %v4230, %v4228
      %v4395 = vpack.c.b16 %v4233, %v4231
      %v4396 = vpack.c.b16 %v4234, %v4232
      %v4397 = vpack.c.b16 %v4237, %v4235
      %v4398 = vpack.c.b16 %v4238, %v4236
      %v4399 = vpack.c.b16 %v4241, %v4239
      %v4400 = vpack.c.b16 %v4242, %v4240
      %v4401 = vpack.c.b16 %v4245, %v4243
      %v4402 = vpack.c.b16 %v4246, %v4244
      %v4403 = vpack.c.b16 %v4249, %v4247
      %v4404 = vpack.c.b16 %v4250, %v4248
      %v4405 = vpack.c.b16 %v4253, %v4251
      %v4406 = vpack.c.b16 %v4254, %v4252
      %v4407 = vpack.c.b16 %v4257, %v4255
      %v4408 = vpack.c.b16 %v4258, %v4256
      %v4409 = vpack.c.b16 %v4261, %v4259
      %v4410 = vpack.c.b16 %v4262, %v4260
      %v4411 = vpack.c.b16 %v4265, %v4263
      %v4412 = vpack.c.b16 %v4266, %v4264
      %v4413 = vpack.c.b16 %v4269, %v4267
      %v4414 = vpack.c.b16 %v4270, %v4268
      %v4415 = vpack.c.b16 %v4273, %v4271
      %v4416 = vpack.c.b16 %v4274, %v4272
      %v4417 = vpack.c.b16 %v4277, %v4275
      %v4418 = vpack.c.b16 %v4278, %v4276
      %v4419 = vpack.c.b16 %v4281, %v4279
      %v4420 = vpack.c.b16 %v4282, %v4280
      %v4421 = vpack.c.b16 %v4285, %v4283
      %v4422 = vpack.c.b16 %v4286, %v4284
      %v4423 = vpack.c.b16 %v4289, %v4287
      %v4424 = vpack.c.b16 %v4290, %v4288
      %v4425 = vpack.c.b16 %v4293, %v4291
      %v4426 = vpack.c.b16 %v4294, %v4292
      %v4427 = vpack.c.b16 %v4297, %v4295
      %v4428 = vpack.c.b16 %v4298, %v4296
      %v4429 = vpack.c.b16 %v4301, %v4299
      %v4430 = vpack.c.b16 %v4302, %v4300
      %v4431 = vpack.c.b16 %v4305, %v4303
      %v4432 = vpack.c.b16 %v4306, %v4304
      %v4433 = vpack.c.b16 %v4309, %v4307
      %v4434 = vpack.c.b16 %v4310, %v4308
      %v4435 = vpack.c.b16 %v4313, %v4311
      %v4436 = vpack.c.b16 %v4314, %v4312
      %v4437 = vpack.c.b16 %v4317, %v4315
      %v4438 = vpack.c.b16 %v4318, %v4316
      %v4439 = vpack.c.b16 %v4321, %v4319
      %v4440 = vpack.c.b16 %v4322, %v4320
      %v4441 = vpack.c.b16 %v4325, %v4323
      %v4442 = vpack.c.b16 %v4326, %v4324
      %v4443 = vpack.c.b16 %v4329, %v4327
      %v4444 = vpack.c.b16 %v4330, %v4328
      %v4445 = vpack.c.b16 %v4333, %v4331
      %v4446 = vpack.c.b16 %v4334, %v4332
      %v4447 = vpack.c.b16 %v4337, %v4335
      %v4448 = vpack.c.b16 %v4338, %v4336
      %v4449 = vpack.c.b16 %v4341, %v4339
      %v4450 = vpack.c.b16 %v4342, %v4340
      %v4451 = vpack.c.b16 %v4345, %v4343
      %v4452 = vpack.c.b16 %v4346, %v4344
      %v4453 = vpack.c.b16 %v4349, %v4347
      %v4454 = vpack.c.b16 %v4350, %v4348
      %v4455 = vpack.c.b16 %v4353, %v4351
      %v4456 = vpack.c.b16 %v4354, %v4352
      %v4457 = vpack.c.b16 %v4357, %v4355
      %v4458 = vpack.c.b16 %v4358, %v4356
      %v4459 = vpack.c.b16 %v4361, %v4359
      %v4460 = vpack.c.b16 %v4362, %v4360
      %v4461 = vpack.c.b16 %v4365, %v4363
      %v4462 = vpack.c.b16 %v4366, %v4364
      %4559 = vmatprep.subr.bf16.mxu0 %v4368
      %4560 = vmatpush1.bf16.msra.mxu0 %v4367
      %4561 = vmatprep.subr.bf16.mxu0 %v4370
      %4562 = vmatpush1.bf16.msra.mxu0 %v4369
      %4563 = vmatprep.subr.bf16.mxu0 %v4372
      %4564 = vmatpush1.bf16.msra.mxu0 %v4371
      %4565 = vmatprep.subr.bf16.mxu0 %v4374
      %4566 = vmatpush1.bf16.msra.mxu0 %v4373
      %4567 = vmatprep.subr.bf16.mxu0 %v4376
      %4568 = vmatpush1.bf16.msra.mxu0 %v4375
      %4569 = vmatprep.subr.bf16.mxu0 %v4378
      %4570 = vmatpush1.bf16.msra.mxu0 %v4377
      %4571 = vmatprep.subr.bf16.mxu0 %v4380
      %4572 = vmatpush1.bf16.msra.mxu0 %v4379
      %4573 = vmatprep.subr.bf16.mxu0 %v4382
      %4574 = vmatpush1.bf16.msra.mxu0 %v4381
      %4575 = vmatprep.subr.bf16.mxu0 %v4384
      %4576 = vmatpush1.bf16.msra.mxu0 %v4383
      %4577 = vmatprep.subr.bf16.mxu0 %v4386
      %4578 = vmatpush1.bf16.msra.mxu0 %v4385
      %4579 = vmatprep.subr.bf16.mxu0 %v4388
      %4580 = vmatpush1.bf16.msra.mxu0 %v4387
      %4581 = vmatprep.subr.bf16.mxu0 %v4390
      %4582 = vmatpush1.bf16.msra.mxu0 %v4389
      %4583 = vmatprep.subr.bf16.mxu0 %v4392
      %4584 = vmatpush1.bf16.msra.mxu0 %v4391
      %4585 = vmatprep.subr.bf16.mxu0 %v4394
      %4586 = vmatpush1.bf16.msra.mxu0 %v4393
      %4587 = vmatprep.subr.bf16.mxu0 %v4396
      %4588 = vmatpush1.bf16.msra.mxu0 %v4395
      %4589 = vmatprep.subr.bf16.mxu0 %v4398
      %4590 = vmatpush1.bf16.msra.mxu0 %v4397
      %4591 = vmatprep.mubr.bf16.mxu0 %v3966
      %4592 = vmatmul.mubr.bf16.gmra.mrb[0].mxu0 %v3965
      %v4593 = vpop.f32.mrb[0].mxu0
      %v4594 = vadd.f32 %v4072, %v4593
      %v4595 = vpop.f32.mrb[0].mxu0
      %v4596 = vadd.f32 %v4076, %v4595
      %v4597 = vpop.f32.mrb[0].mxu0
      %v4598 = vpop.f32.mrb[0].mxu0
      %4599 = vdwg.mxu0
      %4600 = vmatprep.subr.bf16.mxu0 %v4400
      %4601 = vmatpush1.bf16.msra.mxu0 %v4399
      %4602 = vmatprep.subr.bf16.mxu0 %v4402
      %4603 = vmatpush1.bf16.msra.mxu0 %v4401
      %4604 = vmatprep.subr.bf16.mxu0 %v4404
      %4605 = vmatpush1.bf16.msra.mxu0 %v4403
      %4606 = vmatprep.subr.bf16.mxu0 %v4406
      %4607 = vmatpush1.bf16.msra.mxu0 %v4405
      %4608 = vmatprep.subr.bf16.mxu0 %v4408
      %4609 = vmatpush1.bf16.msra.mxu0 %v4407
      %4610 = vmatprep.subr.bf16.mxu0 %v4410
      %4611 = vmatpush1.bf16.msra.mxu0 %v4409
      %4612 = vmatprep.subr.bf16.mxu0 %v4412
      %4613 = vmatpush1.bf16.msra.mxu0 %v4411
      %4614 = vmatprep.subr.bf16.mxu0 %v4414
      %4615 = vmatpush1.bf16.msra.mxu0 %v4413
      %4616 = vmatprep.subr.bf16.mxu0 %v4416
      %4617 = vmatpush1.bf16.msra.mxu0 %v4415
      %4618 = vmatprep.subr.bf16.mxu0 %v4418
      %4619 = vmatpush1.bf16.msra.mxu0 %v4417
      %4620 = vmatprep.subr.bf16.mxu0 %v4420
      %4621 = vmatpush1.bf16.msra.mxu0 %v4419
      %4622 = vmatprep.subr.bf16.mxu0 %v4422
      %4623 = vmatpush1.bf16.msra.mxu0 %v4421
      %4624 = vmatprep.subr.bf16.mxu0 %v4424
      %4625 = vmatpush1.bf16.msra.mxu0 %v4423
      %4626 = vmatprep.subr.bf16.mxu0 %v4426
      %4627 = vmatpush1.bf16.msra.mxu0 %v4425
      %4628 = vmatprep.subr.bf16.mxu0 %v4428
      %4629 = vmatpush1.bf16.msra.mxu0 %v4427
      %4630 = vmatprep.subr.bf16.mxu0 %v4430
      %4631 = vmatpush1.bf16.msra.mxu0 %v4429
      %4632 = vmatprep.mubr.bf16.mxu0 %v3968
      %4633 = vmatmul.mubr.bf16.gmra.mrb[0].mxu0 %v3967
      %v4634 = vpop.f32.mrb[0].mxu0
      %v4635 = vadd.f32 %v4594, %v4634
      %v4636 = vpop.f32.mrb[0].mxu0
      %v4637 = vadd.f32 %v4596, %v4636
      %v4638 = vpop.f32.mrb[0].mxu0
      %v4639 = vpop.f32.mrb[0].mxu0
      %4640 = vdwg.mxu0
      %4641 = vmatprep.subr.bf16.mxu0 %v4432
      %4642 = vmatpush1.bf16.msra.mxu0 %v4431
      %4643 = vmatprep.subr.bf16.mxu0 %v4434
      %4644 = vmatpush1.bf16.msra.mxu0 %v4433
      %4645 = vmatprep.subr.bf16.mxu0 %v4436
      %4646 = vmatpush1.bf16.msra.mxu0 %v4435
      %4647 = vmatprep.subr.bf16.mxu0 %v4438
      %4648 = vmatpush1.bf16.msra.mxu0 %v4437
      %4649 = vmatprep.subr.bf16.mxu0 %v4440
      %4650 = vmatpush1.bf16.msra.mxu0 %v4439
      %4651 = vmatprep.subr.bf16.mxu0 %v4442
      %4652 = vmatpush1.bf16.msra.mxu0 %v4441
      %4653 = vmatprep.subr.bf16.mxu0 %v4444
      %4654 = vmatpush1.bf16.msra.mxu0 %v4443
      %4655 = vmatprep.subr.bf16.mxu0 %v4446
      %4656 = vmatpush1.bf16.msra.mxu0 %v4445
      %4657 = vmatprep.subr.bf16.mxu0 %v4448
      %4658 = vmatpush1.bf16.msra.mxu0 %v4447
      %4659 = vmatprep.subr.bf16.mxu0 %v4450
      %4660 = vmatpush1.bf16.msra.mxu0 %v4449
      %4661 = vmatprep.subr.bf16.mxu0 %v4452
      %4662 = vmatpush1.bf16.msra.mxu0 %v4451
      %4663 = vmatprep.subr.bf16.mxu0 %v4454
      %4664 = vmatpush1.bf16.msra.mxu0 %v4453
      %4665 = vmatprep.subr.bf16.mxu0 %v4456
      %4666 = vmatpush1.bf16.msra.mxu0 %v4455
      %4667 = vmatprep.subr.bf16.mxu0 %v4458
      %4668 = vmatpush1.bf16.msra.mxu0 %v4457
      %4669 = vmatprep.subr.bf16.mxu0 %v4460
      %4670 = vmatpush1.bf16.msra.mxu0 %v4459
      %4671 = vmatprep.subr.bf16.mxu0 %v4462
      %4672 = vmatpush1.bf16.msra.mxu0 %v4461
      %4673 = vmatprep.mubr.bf16.mxu0 %v3970
      %4674 = vmatmul.mubr.bf16.gmra.mrb[0].mxu0 %v3969
      %v4675 = vpop.f32.mrb[0].mxu0
      %v4676 = vadd.f32 %v4635, %v4675
      %v4677 = vpop.f32.mrb[0].mxu0
      %v4678 = vadd.f32 %v4637, %v4677
      %v4679 = vpop.f32.mrb[0].mxu0
      %v4680 = vpop.f32.mrb[0].mxu0
      %4681 = vdwg.mxu0
      %4682 = vst [vmem:[%s971] sm:$0xff] %v4676
      %4683 = vst [vmem:[%s971 + $0x8] sm:$0xff] %v4678
      %p4684 = scmp.lt.s32.totalorder %s75, 1
      %s4685 = scalar_select %p4684, %s75, 1
      %s4686 = smul.addr %s4685, 6
      %s4687 = smul.addr %s4686, 8
      %s4688 = scalar_lea.vmem %s61, %s4687
      %p4689 = scmp.lt.s32.totalorder %s75, 1
      %s4690 = scalar_select %p4689, %s75, 1
      %s4691 = smul.addr %s4690, 2
      %s4692 = smul.addr %s4691, 8
      %s4693 = scalar_lea.vmem %s63, %s4692
      // Predicated region
      $region141: #{forward.1} parent=139 // pred_check
        %p4694 = pneg %p728
      $region142: #{forward.1} parent=139 // pred_check_branch
        %4696 = sbr.rel (%p4694) target = $region144
      $region143: #{forward.1} parent=139 // pred_region
        _
      $region144: #{forward.1} parent=139 // pred_fallthru
        _
      // Predicated region
      $region145: #{forward.1} parent=139 // pred_check
        %p4697 = pneg %p754
      $region146: #{forward.1} parent=139 // pred_check_branch
        %4699 = sbr.rel (%p4697) target = $region148
      $region147: #{forward.1} parent=139 // pred_region
        _
      $region148: #{forward.1} parent=139 // pred_fallthru
        _
    $region140: #{forward.1} parent=5 // pred_fallthru
      _
    %p4700 = scmp.le.s32.totalorder 2, %s70
    // Predicated region
    $region149: #{forward.1} parent=5 // pred_check
      %p4701 = pneg %p4700
    $region150: #{forward.1} parent=5 // pred_check_branch
      %4703 = sbr.rel (%p4701) target = $region152
    $region151: #{forward.1} parent=5 // pred_region
      %s4704 = ssub.s32 %s70, 2
      // Predicated region
      $region153: #{forward.1} parent=151 // pred_check
        %p4705 = pneg %p734
      $region154: #{forward.1} parent=151 // pred_check_branch
        %4707 = sbr.rel (%p4705) target = $region156
      $region155: #{forward.1} parent=151 // pred_region
        %p4708 = scmp.lt.s32.totalorder %s76, 1
        %s4709 = scalar_select %p4708, %s76, 1
        %s4710 = smul.addr %s4709, 6
        %s4711 = smul.addr %s4710, 8
        %s4712 = scalar_lea.vmem %s61, %s4711
      $region156: #{forward.1} parent=151 // pred_fallthru
        _
      // Predicated region
      $region157: #{forward.1} parent=151 // pred_check
        %p4713 = pneg %p760
      $region158: #{forward.1} parent=151 // pred_check_branch
        %4715 = sbr.rel (%p4713) target = $region160
      $region159: #{forward.1} parent=151 // pred_region
        %p4716 = scmp.lt.s32.totalorder %s76, 1
        %s4717 = scalar_select %p4716, %s76, 1
        %s4718 = smul.addr %s4717, 2
        %s4719 = smul.addr %s4718, 8
        %s4720 = scalar_lea.vmem %s63, %s4719
      $region160: #{forward.1} parent=151 // pred_fallthru
        _
    $region152: #{forward.1} parent=5 // pred_fallthru
      _
  $region6: #{forward.1} parent=0 // loop_footer
    %s74 = sadd.s32 1, %s70
  $region7: #{forward.1} parent=0 // loop_footer_branch
    %69 = sbr.rel target = $region3
  $region8: #{forward.1} parent=0 // loop_exit
    _

</llo_original>
